<compile_context>
chip_gen: v7x
topology: tpu7x:2x2x1
jax: 0.10.0
libtpu: 0.0.40
codegen_flags: <defaults>
</compile_context>

<pallas_src>
import functools

import jax
import jax.numpy as jnp
from jax.experimental import pallas as pl
from jax.experimental.pallas import tpu as pltpu

_CIN, _C1, _C2, _C3 = 3, 32, 64, 128   # channel sizes fixed by the PyTorch module
_K1 = 32                               # conv1 contraction dim: 9*3 = 27, zero-padded to 32


def _round8(v):
    return -(-v // 8) * 8


def _plan(H, W):
    """Row counts for the flat (row = h*W + w, fixed stride W) over-compute layout."""
    H1, W1 = H - 2, W - 2            # conv1 output  (valid at stride-1 flat rows)
    H2, W2 = H1 - 2, W1 - 2          # conv2 output  (stride-1 rows)
    Hp, Wp = H2 // 2, W2 // 2        # pool1 output  (valid at stride-2 rows)
    H3, W3 = Hp - 2, Wp - 2          # conv3 output  (valid at stride-2 rows)
    Hf, Wf = H3 // 2, W3 // 2        # pool2 output  (valid at stride-4 rows)
    assert Hf >= 1 and Wf >= 1, "input spatially too small for CNNNetwork"

    # Each stage computes a dense range of flat rows; the range must cover (a) its own valid
    # pixels and (b) every row the next stage reads (next-stage rows + max tap/window offset).
    M4 = _round8(max(4 * ((Hf - 1) * W + (Wf - 1)) + 1, 8))                # pool2 rows
    M3 = _round8(max(M4 + 2 * W + 2, 2 * ((H3 - 1) * W + (W3 - 1)) + 1))   # conv3 rows
    MP = _round8(max(M3 + 4 * W + 4, 2 * ((Hp - 1) * W + (Wp - 1)) + 1))   # pool1 rows
    M2 = _round8(max(MP + W + 1, (H2 - 1) * W + W2))                       # conv2 rows
    M1 = _round8(max(M2 + 2 * W + 2, (H1 - 1) * W + W1))                   # conv1 rows
    RP = _round8(max(M1 + 2 * W + 2, H * W))                               # padded input rows
    return dict(W=W, M1=M1, M2=M2, MP=MP, M3=M3, M4=M4, RP=RP, Hf=Hf, Wf=Wf)


def _fused_cnn_kernel(x_ref, w1_ref, b1_ref, w2_ref, b2_ref, w3_ref, b3_ref, o_ref,
                      a1_ref, a2_ref, q1_ref, a3_ref, p4_ref,
                      *, W, M2, MP, M3, M4, Hf, Wf):
    f32 = jnp.float32
    bf16 = jnp.bfloat16

    # ---- conv1 + relu: one (M1, 32) x (32, 32) MXU matmul, f32 accumulate + bias + relu.
    # a1 stays f32: its conv2 tap offsets include odd rows (packed-sublane misaligned for
    # bf16), so the per-tap bf16 cast below is the safer, proven pattern.
    a1 = jnp.dot(x_ref[0], w1_ref[...], preferred_element_type=f32)
    a1_ref[...] = jnp.maximum(a1 + b1_ref[...], 0.0)

    # ---- conv2: 9 shift-and-accumulate matmuls (no im2col patch buffer / strip stores).
    acc2 = None
    for k in range(9):
        kh, kw = divmod(k, 3)
        t = jnp.dot(a1_ref[pl.ds(kh * W + kw, M2), :].astype(bf16), w2_ref[k],
                    preferred_element_type=f32)
        acc2 = t if acc2 is None else acc2 + t
    a2_ref[...] = acc2 + b2_ref[...]

    # ---- maxpool 2x2 + relu: elementwise max of four contiguous row-shifted slabs (VPU).
    # Cast once to bf16 here (instead of 9x inside conv3's taps); cast commutes with
    # max/relu, so this is bit-identical to pooling in f32 and casting at the matmul.
    q1_ref[...] = jnp.maximum(
        jnp.maximum(jnp.maximum(a2_ref[pl.ds(0, MP), :], a2_ref[pl.ds(1, MP), :]),
                    jnp.maximum(a2_ref[pl.ds(W, MP), :], a2_ref[pl.ds(W + 1, MP), :])),
        0.0).astype(bf16)

    # ---- conv3: 9 shift-and-accumulate matmuls on the stride-2 grid (tap offsets doubled;
    # all offsets even, so the packed bf16 q1 reads stay sublane-pair aligned).
    acc3 = None
    for k in range(9):
        kh, kw = divmod(k, 3)
        t = jnp.dot(q1_ref[pl.ds(2 * (kh * W + kw), M3), :], w3_ref[k],
                    preferred_element_type=f32)
        acc3 = t if acc3 is None else acc3 + t
    a3_ref[...] = acc3 + b3_ref[...]

    # ---- maxpool 2x2 + relu on the stride-2 grid (window offsets doubled again).
    p4_ref[...] = jnp.maximum(
        jnp.maximum(jnp.maximum(a3_ref[pl.ds(0, M4), :], a3_ref[pl.ds(2, M4), :]),
                    jnp.maximum(a3_ref[pl.ds(2 * W, M4), :],
                                a3_ref[pl.ds(2 * W + 2, M4), :])),
        0.0)

    # ---- Output: valid final pixels sit at flat rows 4*(h*W + w).  Hf strided row copies
    # (replaces the per-pixel scatter); all starts are static and 8-aligned when W % 2 == 0.
    for h in range(Hf):
        o_ref[0, pl.ds(h * Wf, Wf), :] = p4_ref[pl.ds(4 * h * W, Wf, stride=4), :]


def cnn_network_forward(x_nchw, params):
    """Pallas implementation of CNNNetwork.forward. Input/output are NCHW like PyTorch."""
    N, cin, H, Wd = x_nchw.shape
    assert cin == _CIN
    p = _plan(H, Wd)
    W, M1, RP = p["W"], p["M1"], p["RP"]

    # Glue on the raw input only: NCHW -> flat channels-last rows, zero-pad rows, build
    # conv1's (M1, 27) im2col patches and zero-pad K to 32 so the kernel's first op is a
    # single aligned MXU matmul.  (At these sizes the 9x patch duplication is a few KB.)
    x_flat = jnp.transpose(x_nchw, (0, 2, 3, 1)).reshape(N, H * Wd, _CIN)
    x_pad = jnp.pad(x_flat, ((0, 0), (0, RP - H * Wd), (0, 0)))
    patches1 = jnp.concatenate(
        [x_pad[:, kh * W + kw: kh * W + kw + M1, :]
         for kh in range(3) for kw in range(3)], axis=-1)
    patches1 = jnp.pad(patches1, ((0, 0), (0, 0), (0, _K1 - 9 * _CIN))).astype(jnp.bfloat16)

    kernel = functools.partial(
        _fused_cnn_kernel, W=W, M2=p["M2"], MP=p["MP"], M3=p["M3"], M4=p["M4"],
        Hf=p["Hf"], Wf=p["Wf"])

    out = pl.pallas_call(
        kernel,
        out_shape=jax.ShapeDtypeStruct((N, p["Hf"] * p["Wf"], _C3), jnp.float32),
        grid_spec=pltpu.PrefetchScalarGridSpec(
            num_scalar_prefetch=0,
            grid=(N,),
            in_specs=[
                pl.BlockSpec((1, M1, _K1), lambda n: (n, 0, 0)),     # conv1 patches (bf16)
                pl.BlockSpec((_K1, _C1), lambda n: (0, 0)),          # w1  (32, 32)
                pl.BlockSpec((1, _C1), lambda n: (0, 0)),            # b1
                pl.BlockSpec((9, _C1, _C2), lambda n: (0, 0, 0)),    # w2  taps (9, 32, 64)
                pl.BlockSpec((1, _C2), lambda n: (0, 0)),            # b2
                pl.BlockSpec((9, _C2, _C3), lambda n: (0, 0, 0)),    # w3  taps (9, 64, 128)
                pl.BlockSpec((1, _C3), lambda n: (0, 0)),            # b3
            ],
            out_specs=pl.BlockSpec((1, p["Hf"] * p["Wf"], _C3), lambda n: (n, 0, 0)),
            scratch_shapes=[
                pltpu.VMEM((M1, _C1), jnp.float32),       # conv1 + relu activations
                pltpu.VMEM((p["M2"], _C2), jnp.float32),  # conv2 activations (pre-pool)
                pltpu.VMEM((p["MP"], _C2), jnp.bfloat16), # pool1 + relu activations (bf16)
                pltpu.VMEM((p["M3"], _C3), jnp.float32),  # conv3 activations (pre-pool)
                pltpu.VMEM((p["M4"], _C3), jnp.float32),  # pool2 + relu activations
            ],
        ),
        compiler_params=pltpu.CompilerParams(
            dimension_semantics=("parallel",),
            vmem_limit_bytes=32 * 1024 * 1024),
    )(patches1, params["w1"], params["b1"], params["w2"], params["b2"],
      params["w3"], params["b3"])

    # (N, Hf*Wf, 128) -> NHWC -> NCHW (N, 128, Hf, Wf)
    return jnp.transpose(out.reshape(N, p["Hf"], p["Wf"], _C3), (0, 3, 1, 2))


def prepare_params(w1, b1, w2, b2, w3, b3):
    """OIHW conv weights -> matmul-friendly bf16 weights + (1, Cout) f32 biases.

    conv1: (27, 32) zero-padded to (32, 32), rows ordered (kh, kw, cin) to match patches1.
    conv2/conv3: (9, Cin, Cout) per-tap blocks, tap index k = kh*3 + kw.
    """
    def prep_taps(w_oihw):
        cout, cin = w_oihw.shape[0], w_oihw.shape[1]
        return (jnp.transpose(w_oihw, (2, 3, 1, 0))           # (kh, kw, cin, cout)
                .reshape(9, cin, cout).astype(jnp.bfloat16))

    w1m = jnp.transpose(w1, (2, 3, 1, 0)).reshape(9 * _CIN, _C1)
    w1m = jnp.pad(w1m, ((0, _K1 - 9 * _CIN), (0, 0))).astype(jnp.bfloat16)

    return {
        "w1": w1m, "b1": b1.reshape(1, -1).astype(jnp.float32),
        "w2": prep_taps(w2), "b2": b2.reshape(1, -1).astype(jnp.float32),
        "w3": prep_taps(w3), "b3": b3.reshape(1, -1).astype(jnp.float32),
    }


# ------------------------- plain-JAX references (for the in-script check) -----------------

def _conv_ref(x, w_oihw, b, dtype=None, **kw):
    lhs = x if dtype is None else x.astype(dtype)
    rhs = w_oihw if dtype is None else w_oihw.astype(dtype)
    y = jax.lax.conv_general_dilated(
        lhs, rhs, window_strides=(1, 1), padding="VALID",
        dimension_numbers=("NCHW", "OIHW", "NCHW"), **kw)
    return y + b[None, :, None, None]


def _pool_ref(x):
    return jax.lax.reduce_window(x, -jnp.inf, jax.lax.max,
                                 (1, 1, 2, 2), (1, 1, 2, 2), "VALID")


def reference_forward_f32(x, w1, b1, w2, b2, w3, b3):
    x = jax.nn.relu(_conv_ref(x, w1, b1))
    x = jax.nn.relu(_pool_ref(_conv_ref(x, w2, b2)))
    x = jax.nn.relu(_pool_ref(_conv_ref(x, w3, b3)))
    return x


def reference_forward_bf16(x, w1, b1, w2, b2, w3, b3):
    # Same numerics as the kernel: bf16 matmul operands, f32 accumulation / bias / pool.
    kw = dict(dtype=jnp.bfloat16, preferred_element_type=jnp.float32)
    x = jax.nn.relu(_conv_ref(x, w1, b1, **kw))
    x = jax.nn.relu(_pool_ref(_conv_ref(x, w2, b2, **kw)))
    x = jax.nn.relu(_pool_ref(_conv_ref(x, w3, b3, **kw)))
    return x


if __name__ == "__main__":
    key = jax.random.PRNGKey(0)
    k_x, k1, k2, k3, kb1, kb2, kb3 = jax.random.split(key, 7)

    N = 2
    x = jax.random.normal(k_x, (N, 3, 16, 16), dtype=jnp.float32)

    def init_conv(kw_, kb_, cin, cout):
        # PyTorch-default-like uniform(-1/sqrt(fan_in), 1/sqrt(fan_in)), deterministic
        bound = 1.0 / (cin * 9) ** 0.5
        w = jax.random.uniform(kw_, (cout, cin, 3, 3), jnp.float32, -bound, bound)  # OIHW
        b = jax.random.uniform(kb_, (cout,), jnp.float32, -bound, bound)
        return w, b

    w1, b1 = init_conv(k1, kb1, 3, 32)
    w2, b2 = init_conv(k2, kb2, 32, 64)
    w3, b3 = init_conv(k3, kb3, 64, 128)

    params = prepare_params(w1, b1, w2, b2, w3, b3)

    out = jax.jit(cnn_network_forward)(x, params)
    out = jax.block_until_ready(out)
    assert out.shape == (N, 128, 2, 2), out.shape
    assert out.dtype == jnp.float32, out.dtype

    # Tight check against a reference with matching numerics (bf16 operands, f32 accum).
    ref_match = reference_forward_bf16(x, w1, b1, w2, b2, w3, b3)
    err_match = float(jnp.max(jnp.abs(out - ref_match)))
    assert jnp.allclose(out, ref_match, rtol=5e-3, atol=5e-3), err_match

    # Semantic check against the pure-f32 PyTorch-equivalent forward.
    ref_f32 = reference_forward_f32(x, w1, b1, w2, b2, w3, b3)
    err_f32 = float(jnp.max(jnp.abs(out - ref_f32)))
    assert jnp.allclose(out, ref_f32, rtol=2e-2, atol=2e-2), err_f32

    print("KERNEL_OK")
</pallas_src>

<mosaic_0001>
module attributes {stable_mosaic.version = 11 : i64} {
  func.func @_fused_cnn_kernel(%arg0: i32, %arg1: memref<1x248x32xbf16, #tpu.memory_space<vmem>>, %arg2: memref<32x32xbf16, #tpu.memory_space<vmem>>, %arg3: memref<1x32xf32, #tpu.memory_space<vmem>>, %arg4: memref<9x32x64xbf16, #tpu.memory_space<vmem>>, %arg5: memref<1x64xf32, #tpu.memory_space<vmem>>, %arg6: memref<9x64x128xbf16, #tpu.memory_space<vmem>>, %arg7: memref<1x128xf32, #tpu.memory_space<vmem>>, %arg8: memref<1x4x128xf32, #tpu.memory_space<vmem>>, %arg9: memref<248x32xf32, #tpu.memory_space<vmem>>, %arg10: memref<208x64xf32, #tpu.memory_space<vmem>>, %arg11: memref<184x64xbf16, #tpu.memory_space<vmem>>, %arg12: memref<112x128xf32, #tpu.memory_space<vmem>>, %arg13: memref<72x128xf32, #tpu.memory_space<vmem>>) attributes {dimension_semantics = [#tpu.dimension_semantics<parallel>], iteration_bounds = array<i64: 2>, scalar_prefetch = 0 : i64, scratch_operands = 5 : i64, tpu.core_type = #tpu.core_type<tc>, window_params = [{transform_indices = @transform_0, window_bounds = array<i64: 1, 248, 32>}, {pipeline_mode = #tpu.pipeline_mode<synchronous>, transform_indices = @transform_1, window_bounds = array<i64: 32, 32>}, {pipeline_mode = #tpu.pipeline_mode<synchronous>, transform_indices = @transform_2, window_bounds = array<i64: 1, 32>}, {pipeline_mode = #tpu.pipeline_mode<synchronous>, transform_indices = @transform_3, window_bounds = array<i64: 9, 32, 64>}, {pipeline_mode = #tpu.pipeline_mode<synchronous>, transform_indices = @transform_4, window_bounds = array<i64: 1, 64>}, {pipeline_mode = #tpu.pipeline_mode<synchronous>, transform_indices = @transform_5, window_bounds = array<i64: 9, 64, 128>}, {pipeline_mode = #tpu.pipeline_mode<synchronous>, transform_indices = @transform_6, window_bounds = array<i64: 1, 128>}, {transform_indices = @transform_7, window_bounds = array<i64: 1, 4, 128>}]} {
    %c0 = arith.constant 0 : index
    %c0_0 = arith.constant 0 : index
    %c0_1 = arith.constant 0 : index
    %0 = vector.load %arg1[%c0, %c0_0, %c0_1] : memref<1x248x32xbf16, #tpu.memory_space<vmem>>, vector<1x248x32xbf16>
    %1 = vector.shape_cast %0 : vector<1x248x32xbf16> to vector<248x32xbf16>
    %c0_2 = arith.constant 0 : index
    %c0_3 = arith.constant 0 : index
    %2 = vector.load %arg2[%c0_2, %c0_3] : memref<32x32xbf16, #tpu.memory_space<vmem>>, vector<32x32xbf16>
    %cst = arith.constant dense<0.000000e+00> : vector<248x32xf32>
    %3 = tpu.matmul %1, %2, %cst {dimension_numbers = #tpu.dot_dimension_numbers<[1], [0], [0], [1], [0, 0, 1, 1], [], []>} : vector<248x32xbf16>, vector<32x32xbf16>, vector<248x32xf32> -> vector<248x32xf32>
    %c0_4 = arith.constant 0 : index
    %c0_5 = arith.constant 0 : index
    %4 = vector.load %arg3[%c0_4, %c0_5] : memref<1x32xf32, #tpu.memory_space<vmem>>, vector<1x32xf32>
    %5 = vector.broadcast %4 : vector<1x32xf32> to vector<248x32xf32>
    %6 = arith.addf %3, %5 : vector<248x32xf32>
    %cst_6 = arith.constant 0.000000e+00 : f32
    %7 = vector.broadcast %cst_6 : f32 to vector<248x32xf32>
    %8 = arith.maximumf %6, %7 : vector<248x32xf32>
    %c0_7 = arith.constant 0 : index
    %c0_8 = arith.constant 0 : index
    %9 = vector.load %arg9[%c0_7, %c0_8] : memref<248x32xf32, #tpu.memory_space<vmem>>, vector<248x32xf32>
    tpu.vector_store %arg9[%c0_7, %c0_8], %8 {strides = array<i32>} : memref<248x32xf32, #tpu.memory_space<vmem>>, vector<248x32xf32>,
    %c0_9 = arith.constant 0 : index
    %c0_10 = arith.constant 0 : index
    %10 = vector.load %arg9[%c0_9, %c0_10] : memref<248x32xf32, #tpu.memory_space<vmem>>, vector<208x32xf32>
    %11 = arith.truncf %10 : vector<208x32xf32> to vector<208x32xbf16>
    %c0_11 = arith.constant 0 : index
    %c0_12 = arith.constant 0 : index
    %c0_13 = arith.constant 0 : index
    %12 = vector.load %arg4[%c0_11, %c0_12, %c0_13] : memref<9x32x64xbf16, #tpu.memory_space<vmem>>, vector<1x32x64xbf16>
    %13 = vector.shape_cast %12 : vector<1x32x64xbf16> to vector<32x64xbf16>
    %cst_14 = arith.constant dense<0.000000e+00> : vector<208x64xf32>
    %14 = tpu.matmul %11, %13, %cst_14 {dimension_numbers = #tpu.dot_dimension_numbers<[1], [0], [0], [1], [0, 0, 1, 1], [], []>} : vector<208x32xbf16>, vector<32x64xbf16>, vector<208x64xf32> -> vector<208x64xf32>
    %c1 = arith.constant 1 : index
    %c0_15 = arith.constant 0 : index
    %15 = vector.load %arg9[%c1, %c0_15] : memref<248x32xf32, #tpu.memory_space<vmem>>, vector<208x32xf32>
    %16 = arith.truncf %15 : vector<208x32xf32> to vector<208x32xbf16>
    %c1_16 = arith.constant 1 : index
    %c0_17 = arith.constant 0 : index
    %c0_18 = arith.constant 0 : index
    %17 = vector.load %arg4[%c1_16, %c0_17, %c0_18] : memref<9x32x64xbf16, #tpu.memory_space<vmem>>, vector<1x32x64xbf16>
    %18 = vector.shape_cast %17 : vector<1x32x64xbf16> to vector<32x64xbf16>
    %cst_19 = arith.constant dense<0.000000e+00> : vector<208x64xf32>
    %19 = tpu.matmul %16, %18, %cst_19 {dimension_numbers = #tpu.dot_dimension_numbers<[1], [0], [0], [1], [0, 0, 1, 1], [], []>} : vector<208x32xbf16>, vector<32x64xbf16>, vector<208x64xf32> -> vector<208x64xf32>
    %20 = arith.addf %14, %19 : vector<208x64xf32>
    %c2 = arith.constant 2 : index
    %c0_20 = arith.constant 0 : index
    %21 = vector.load %arg9[%c2, %c0_20] : memref<248x32xf32, #tpu.memory_space<vmem>>, vector<208x32xf32>
    %22 = arith.truncf %21 : vector<208x32xf32> to vector<208x32xbf16>
    %c2_21 = arith.constant 2 : index
    %c0_22 = arith.constant 0 : index
    %c0_23 = arith.constant 0 : index
    %23 = vector.load %arg4[%c2_21, %c0_22, %c0_23] : memref<9x32x64xbf16, #tpu.memory_space<vmem>>, vector<1x32x64xbf16>
    %24 = vector.shape_cast %23 : vector<1x32x64xbf16> to vector<32x64xbf16>
    %cst_24 = arith.constant dense<0.000000e+00> : vector<208x64xf32>
    %25 = tpu.matmul %22, %24, %cst_24 {dimension_numbers = #tpu.dot_dimension_numbers<[1], [0], [0], [1], [0, 0, 1, 1], [], []>} : vector<208x32xbf16>, vector<32x64xbf16>, vector<208x64xf32> -> vector<208x64xf32>
    %26 = arith.addf %20, %25 : vector<208x64xf32>
    %c16 = arith.constant 16 : index
    %c0_25 = arith.constant 0 : index
    %27 = vector.load %arg9[%c16, %c0_25] : memref<248x32xf32, #tpu.memory_space<vmem>>, vector<208x32xf32>
    %28 = arith.truncf %27 : vector<208x32xf32> to vector<208x32xbf16>
    %c3 = arith.constant 3 : index
    %c0_26 = arith.constant 0 : index
    %c0_27 = arith.constant 0 : index
    %29 = vector.load %arg4[%c3, %c0_26, %c0_27] : memref<9x32x64xbf16, #tpu.memory_space<vmem>>, vector<1x32x64xbf16>
    %30 = vector.shape_cast %29 : vector<1x32x64xbf16> to vector<32x64xbf16>
    %cst_28 = arith.constant dense<0.000000e+00> : vector<208x64xf32>
    %31 = tpu.matmul %28, %30, %cst_28 {dimension_numbers = #tpu.dot_dimension_numbers<[1], [0], [0], [1], [0, 0, 1, 1], [], []>} : vector<208x32xbf16>, vector<32x64xbf16>, vector<208x64xf32> -> vector<208x64xf32>
    %32 = arith.addf %26, %31 : vector<208x64xf32>
    %c17 = arith.constant 17 : index
    %c0_29 = arith.constant 0 : index
    %33 = vector.load %arg9[%c17, %c0_29] : memref<248x32xf32, #tpu.memory_space<vmem>>, vector<208x32xf32>
    %34 = arith.truncf %33 : vector<208x32xf32> to vector<208x32xbf16>
    %c4 = arith.constant 4 : index
    %c0_30 = arith.constant 0 : index
    %c0_31 = arith.constant 0 : index
    %35 = vector.load %arg4[%c4, %c0_30, %c0_31] : memref<9x32x64xbf16, #tpu.memory_space<vmem>>, vector<1x32x64xbf16>
    %36 = vector.shape_cast %35 : vector<1x32x64xbf16> to vector<32x64xbf16>
    %cst_32 = arith.constant dense<0.000000e+00> : vector<208x64xf32>
    %37 = tpu.matmul %34, %36, %cst_32 {dimension_numbers = #tpu.dot_dimension_numbers<[1], [0], [0], [1], [0, 0, 1, 1], [], []>} : vector<208x32xbf16>, vector<32x64xbf16>, vector<208x64xf32> -> vector<208x64xf32>
    %38 = arith.addf %32, %37 : vector<208x64xf32>
    %c18 = arith.constant 18 : index
    %c0_33 = arith.constant 0 : index
    %39 = vector.load %arg9[%c18, %c0_33] : memref<248x32xf32, #tpu.memory_space<vmem>>, vector<208x32xf32>
    %40 = arith.truncf %39 : vector<208x32xf32> to vector<208x32xbf16>
    %c5 = arith.constant 5 : index
    %c0_34 = arith.constant 0 : index
    %c0_35 = arith.constant 0 : index
    %41 = vector.load %arg4[%c5, %c0_34, %c0_35] : memref<9x32x64xbf16, #tpu.memory_space<vmem>>, vector<1x32x64xbf16>
    %42 = vector.shape_cast %41 : vector<1x32x64xbf16> to vector<32x64xbf16>
    %cst_36 = arith.constant dense<0.000000e+00> : vector<208x64xf32>
    %43 = tpu.matmul %40, %42, %cst_36 {dimension_numbers = #tpu.dot_dimension_numbers<[1], [0], [0], [1], [0, 0, 1, 1], [], []>} : vector<208x32xbf16>, vector<32x64xbf16>, vector<208x64xf32> -> vector<208x64xf32>
    %44 = arith.addf %38, %43 : vector<208x64xf32>
    %c32 = arith.constant 32 : index
    %c0_37 = arith.constant 0 : index
    %45 = vector.load %arg9[%c32, %c0_37] : memref<248x32xf32, #tpu.memory_space<vmem>>, vector<208x32xf32>
    %46 = arith.truncf %45 : vector<208x32xf32> to vector<208x32xbf16>
    %c6 = arith.constant 6 : index
    %c0_38 = arith.constant 0 : index
    %c0_39 = arith.constant 0 : index
    %47 = vector.load %arg4[%c6, %c0_38, %c0_39] : memref<9x32x64xbf16, #tpu.memory_space<vmem>>, vector<1x32x64xbf16>
    %48 = vector.shape_cast %47 : vector<1x32x64xbf16> to vector<32x64xbf16>
    %cst_40 = arith.constant dense<0.000000e+00> : vector<208x64xf32>
    %49 = tpu.matmul %46, %48, %cst_40 {dimension_numbers = #tpu.dot_dimension_numbers<[1], [0], [0], [1], [0, 0, 1, 1], [], []>} : vector<208x32xbf16>, vector<32x64xbf16>, vector<208x64xf32> -> vector<208x64xf32>
    %50 = arith.addf %44, %49 : vector<208x64xf32>
    %c33 = arith.constant 33 : index
    %c0_41 = arith.constant 0 : index
    %51 = vector.load %arg9[%c33, %c0_41] : memref<248x32xf32, #tpu.memory_space<vmem>>, vector<208x32xf32>
    %52 = arith.truncf %51 : vector<208x32xf32> to vector<208x32xbf16>
    %c7 = arith.constant 7 : index
    %c0_42 = arith.constant 0 : index
    %c0_43 = arith.constant 0 : index
    %53 = vector.load %arg4[%c7, %c0_42, %c0_43] : memref<9x32x64xbf16, #tpu.memory_space<vmem>>, vector<1x32x64xbf16>
    %54 = vector.shape_cast %53 : vector<1x32x64xbf16> to vector<32x64xbf16>
    %cst_44 = arith.constant dense<0.000000e+00> : vector<208x64xf32>
    %55 = tpu.matmul %52, %54, %cst_44 {dimension_numbers = #tpu.dot_dimension_numbers<[1], [0], [0], [1], [0, 0, 1, 1], [], []>} : vector<208x32xbf16>, vector<32x64xbf16>, vector<208x64xf32> -> vector<208x64xf32>
    %56 = arith.addf %50, %55 : vector<208x64xf32>
    %c34 = arith.constant 34 : index
    %c0_45 = arith.constant 0 : index
    %57 = vector.load %arg9[%c34, %c0_45] : memref<248x32xf32, #tpu.memory_space<vmem>>, vector<208x32xf32>
    %58 = arith.truncf %57 : vector<208x32xf32> to vector<208x32xbf16>
    %c8 = arith.constant 8 : index
    %c0_46 = arith.constant 0 : index
    %c0_47 = arith.constant 0 : index
    %59 = vector.load %arg4[%c8, %c0_46, %c0_47] : memref<9x32x64xbf16, #tpu.memory_space<vmem>>, vector<1x32x64xbf16>
    %60 = vector.shape_cast %59 : vector<1x32x64xbf16> to vector<32x64xbf16>
    %cst_48 = arith.constant dense<0.000000e+00> : vector<208x64xf32>
    %61 = tpu.matmul %58, %60, %cst_48 {dimension_numbers = #tpu.dot_dimension_numbers<[1], [0], [0], [1], [0, 0, 1, 1], [], []>} : vector<208x32xbf16>, vector<32x64xbf16>, vector<208x64xf32> -> vector<208x64xf32>
    %62 = arith.addf %56, %61 : vector<208x64xf32>
    %c0_49 = arith.constant 0 : index
    %c0_50 = arith.constant 0 : index
    %63 = vector.load %arg5[%c0_49, %c0_50] : memref<1x64xf32, #tpu.memory_space<vmem>>, vector<1x64xf32>
    %64 = vector.broadcast %63 : vector<1x64xf32> to vector<208x64xf32>
    %65 = arith.addf %62, %64 : vector<208x64xf32>
    %c0_51 = arith.constant 0 : index
    %c0_52 = arith.constant 0 : index
    %66 = vector.load %arg10[%c0_51, %c0_52] : memref<208x64xf32, #tpu.memory_space<vmem>>, vector<208x64xf32>
    tpu.vector_store %arg10[%c0_51, %c0_52], %65 {strides = array<i32>} : memref<208x64xf32, #tpu.memory_space<vmem>>, vector<208x64xf32>,
    %c0_53 = arith.constant 0 : index
    %c0_54 = arith.constant 0 : index
    %67 = vector.load %arg10[%c0_53, %c0_54] : memref<208x64xf32, #tpu.memory_space<vmem>>, vector<184x64xf32>
    %c1_55 = arith.constant 1 : index
    %c0_56 = arith.constant 0 : index
    %68 = vector.load %arg10[%c1_55, %c0_56] : memref<208x64xf32, #tpu.memory_space<vmem>>, vector<184x64xf32>
    %69 = arith.maximumf %67, %68 : vector<184x64xf32>
    %c16_57 = arith.constant 16 : index
    %c0_58 = arith.constant 0 : index
    %70 = vector.load %arg10[%c16_57, %c0_58] : memref<208x64xf32, #tpu.memory_space<vmem>>, vector<184x64xf32>
    %c17_59 = arith.constant 17 : index
    %c0_60 = arith.constant 0 : index
    %71 = vector.load %arg10[%c17_59, %c0_60] : memref<208x64xf32, #tpu.memory_space<vmem>>, vector<184x64xf32>
    %72 = arith.maximumf %70, %71 : vector<184x64xf32>
    %73 = arith.maximumf %69, %72 : vector<184x64xf32>
    %cst_61 = arith.constant 0.000000e+00 : f32
    %74 = vector.broadcast %cst_61 : f32 to vector<184x64xf32>
    %75 = arith.maximumf %73, %74 : vector<184x64xf32>
    %76 = arith.truncf %75 : vector<184x64xf32> to vector<184x64xbf16>
    %c0_62 = arith.constant 0 : index
    %c0_63 = arith.constant 0 : index
    %77 = vector.load %arg11[%c0_62, %c0_63] : memref<184x64xbf16, #tpu.memory_space<vmem>>, vector<184x64xbf16>
    tpu.vector_store %arg11[%c0_62, %c0_63], %76 {strides = array<i32>} : memref<184x64xbf16, #tpu.memory_space<vmem>>, vector<184x64xbf16>,
    %c0_64 = arith.constant 0 : index
    %c0_65 = arith.constant 0 : index
    %78 = vector.load %arg11[%c0_64, %c0_65] : memref<184x64xbf16, #tpu.memory_space<vmem>>, vector<112x64xbf16>
    %c0_66 = arith.constant 0 : index
    %c0_67 = arith.constant 0 : index
    %c0_68 = arith.constant 0 : index
    %79 = vector.load %arg6[%c0_66, %c0_67, %c0_68] : memref<9x64x128xbf16, #tpu.memory_space<vmem>>, vector<1x64x128xbf16>
    %80 = vector.shape_cast %79 : vector<1x64x128xbf16> to vector<64x128xbf16>
    %cst_69 = arith.constant dense<0.000000e+00> : vector<112x128xf32>
    %81 = tpu.matmul %78, %80, %cst_69 {dimension_numbers = #tpu.dot_dimension_numbers<[1], [0], [0], [1], [0, 0, 1, 1], [], []>} : vector<112x64xbf16>, vector<64x128xbf16>, vector<112x128xf32> -> vector<112x128xf32>
    %c2_70 = arith.constant 2 : index
    %c0_71 = arith.constant 0 : index
    %82 = vector.load %arg11[%c2_70, %c0_71] : memref<184x64xbf16, #tpu.memory_space<vmem>>, vector<112x64xbf16>
    %c1_72 = arith.constant 1 : index
    %c0_73 = arith.constant 0 : index
    %c0_74 = arith.constant 0 : index
    %83 = vector.load %arg6[%c1_72, %c0_73, %c0_74] : memref<9x64x128xbf16, #tpu.memory_space<vmem>>, vector<1x64x128xbf16>
    %84 = vector.shape_cast %83 : vector<1x64x128xbf16> to vector<64x128xbf16>
    %cst_75 = arith.constant dense<0.000000e+00> : vector<112x128xf32>
    %85 = tpu.matmul %82, %84, %cst_75 {dimension_numbers = #tpu.dot_dimension_numbers<[1], [0], [0], [1], [0, 0, 1, 1], [], []>} : vector<112x64xbf16>, vector<64x128xbf16>, vector<112x128xf32> -> vector<112x128xf32>
    %86 = arith.addf %81, %85 : vector<112x128xf32>
    %c4_76 = arith.constant 4 : index
    %c0_77 = arith.constant 0 : index
    %87 = vector.load %arg11[%c4_76, %c0_77] : memref<184x64xbf16, #tpu.memory_space<vmem>>, vector<112x64xbf16>
    %c2_78 = arith.constant 2 : index
    %c0_79 = arith.constant 0 : index
    %c0_80 = arith.constant 0 : index
    %88 = vector.load %arg6[%c2_78, %c0_79, %c0_80] : memref<9x64x128xbf16, #tpu.memory_space<vmem>>, vector<1x64x128xbf16>
    %89 = vector.shape_cast %88 : vector<1x64x128xbf16> to vector<64x128xbf16>
    %cst_81 = arith.constant dense<0.000000e+00> : vector<112x128xf32>
    %90 = tpu.matmul %87, %89, %cst_81 {dimension_numbers = #tpu.dot_dimension_numbers<[1], [0], [0], [1], [0, 0, 1, 1], [], []>} : vector<112x64xbf16>, vector<64x128xbf16>, vector<112x128xf32> -> vector<112x128xf32>
    %91 = arith.addf %86, %90 : vector<112x128xf32>
    %c32_82 = arith.constant 32 : index
    %c0_83 = arith.constant 0 : index
    %92 = vector.load %arg11[%c32_82, %c0_83] : memref<184x64xbf16, #tpu.memory_space<vmem>>, vector<112x64xbf16>
    %c3_84 = arith.constant 3 : index
    %c0_85 = arith.constant 0 : index
    %c0_86 = arith.constant 0 : index
    %93 = vector.load %arg6[%c3_84, %c0_85, %c0_86] : memref<9x64x128xbf16, #tpu.memory_space<vmem>>, vector<1x64x128xbf16>
    %94 = vector.shape_cast %93 : vector<1x64x128xbf16> to vector<64x128xbf16>
    %cst_87 = arith.constant dense<0.000000e+00> : vector<112x128xf32>
    %95 = tpu.matmul %92, %94, %cst_87 {dimension_numbers = #tpu.dot_dimension_numbers<[1], [0], [0], [1], [0, 0, 1, 1], [], []>} : vector<112x64xbf16>, vector<64x128xbf16>, vector<112x128xf32> -> vector<112x128xf32>
    %96 = arith.addf %91, %95 : vector<112x128xf32>
    %c34_88 = arith.constant 34 : index
    %c0_89 = arith.constant 0 : index
    %97 = vector.load %arg11[%c34_88, %c0_89] : memref<184x64xbf16, #tpu.memory_space<vmem>>, vector<112x64xbf16>
    %c4_90 = arith.constant 4 : index
    %c0_91 = arith.constant 0 : index
    %c0_92 = arith.constant 0 : index
    %98 = vector.load %arg6[%c4_90, %c0_91, %c0_92] : memref<9x64x128xbf16, #tpu.memory_space<vmem>>, vector<1x64x128xbf16>
    %99 = vector.shape_cast %98 : vector<1x64x128xbf16> to vector<64x128xbf16>
    %cst_93 = arith.constant dense<0.000000e+00> : vector<112x128xf32>
    %100 = tpu.matmul %97, %99, %cst_93 {dimension_numbers = #tpu.dot_dimension_numbers<[1], [0], [0], [1], [0, 0, 1, 1], [], []>} : vector<112x64xbf16>, vector<64x128xbf16>, vector<112x128xf32> -> vector<112x128xf32>
    %101 = arith.addf %96, %100 : vector<112x128xf32>
    %c36 = arith.constant 36 : index
    %c0_94 = arith.constant 0 : index
    %102 = vector.load %arg11[%c36, %c0_94] : memref<184x64xbf16, #tpu.memory_space<vmem>>, vector<112x64xbf16>
    %c5_95 = arith.constant 5 : index
    %c0_96 = arith.constant 0 : index
    %c0_97 = arith.constant 0 : index
    %103 = vector.load %arg6[%c5_95, %c0_96, %c0_97] : memref<9x64x128xbf16, #tpu.memory_space<vmem>>, vector<1x64x128xbf16>
    %104 = vector.shape_cast %103 : vector<1x64x128xbf16> to vector<64x128xbf16>
    %cst_98 = arith.constant dense<0.000000e+00> : vector<112x128xf32>
    %105 = tpu.matmul %102, %104, %cst_98 {dimension_numbers = #tpu.dot_dimension_numbers<[1], [0], [0], [1], [0, 0, 1, 1], [], []>} : vector<112x64xbf16>, vector<64x128xbf16>, vector<112x128xf32> -> vector<112x128xf32>
    %106 = arith.addf %101, %105 : vector<112x128xf32>
    %c64 = arith.constant 64 : index
    %c0_99 = arith.constant 0 : index
    %107 = vector.load %arg11[%c64, %c0_99] : memref<184x64xbf16, #tpu.memory_space<vmem>>, vector<112x64xbf16>
    %c6_100 = arith.constant 6 : index
    %c0_101 = arith.constant 0 : index
    %c0_102 = arith.constant 0 : index
    %108 = vector.load %arg6[%c6_100, %c0_101, %c0_102] : memref<9x64x128xbf16, #tpu.memory_space<vmem>>, vector<1x64x128xbf16>
    %109 = vector.shape_cast %108 : vector<1x64x128xbf16> to vector<64x128xbf16>
    %cst_103 = arith.constant dense<0.000000e+00> : vector<112x128xf32>
    %110 = tpu.matmul %107, %109, %cst_103 {dimension_numbers = #tpu.dot_dimension_numbers<[1], [0], [0], [1], [0, 0, 1, 1], [], []>} : vector<112x64xbf16>, vector<64x128xbf16>, vector<112x128xf32> -> vector<112x128xf32>
    %111 = arith.addf %106, %110 : vector<112x128xf32>
    %c66 = arith.constant 66 : index
    %c0_104 = arith.constant 0 : index
    %112 = vector.load %arg11[%c66, %c0_104] : memref<184x64xbf16, #tpu.memory_space<vmem>>, vector<112x64xbf16>
    %c7_105 = arith.constant 7 : index
    %c0_106 = arith.constant 0 : index
    %c0_107 = arith.constant 0 : index
    %113 = vector.load %arg6[%c7_105, %c0_106, %c0_107] : memref<9x64x128xbf16, #tpu.memory_space<vmem>>, vector<1x64x128xbf16>
    %114 = vector.shape_cast %113 : vector<1x64x128xbf16> to vector<64x128xbf16>
    %cst_108 = arith.constant dense<0.000000e+00> : vector<112x128xf32>
    %115 = tpu.matmul %112, %114, %cst_108 {dimension_numbers = #tpu.dot_dimension_numbers<[1], [0], [0], [1], [0, 0, 1, 1], [], []>} : vector<112x64xbf16>, vector<64x128xbf16>, vector<112x128xf32> -> vector<112x128xf32>
    %116 = arith.addf %111, %115 : vector<112x128xf32>
    %c68 = arith.constant 68 : index
    %c0_109 = arith.constant 0 : index
    %117 = vector.load %arg11[%c68, %c0_109] : memref<184x64xbf16, #tpu.memory_space<vmem>>, vector<112x64xbf16>
    %c8_110 = arith.constant 8 : index
    %c0_111 = arith.constant 0 : index
    %c0_112 = arith.constant 0 : index
    %118 = vector.load %arg6[%c8_110, %c0_111, %c0_112] : memref<9x64x128xbf16, #tpu.memory_space<vmem>>, vector<1x64x128xbf16>
    %119 = vector.shape_cast %118 : vector<1x64x128xbf16> to vector<64x128xbf16>
    %cst_113 = arith.constant dense<0.000000e+00> : vector<112x128xf32>
    %120 = tpu.matmul %117, %119, %cst_113 {dimension_numbers = #tpu.dot_dimension_numbers<[1], [0], [0], [1], [0, 0, 1, 1], [], []>} : vector<112x64xbf16>, vector<64x128xbf16>, vector<112x128xf32> -> vector<112x128xf32>
    %121 = arith.addf %116, %120 : vector<112x128xf32>
    %c0_114 = arith.constant 0 : index
    %c0_115 = arith.constant 0 : index
    %122 = vector.load %arg7[%c0_114, %c0_115] : memref<1x128xf32, #tpu.memory_space<vmem>>, vector<1x128xf32>
    %123 = vector.broadcast %122 : vector<1x128xf32> to vector<112x128xf32>
    %124 = arith.addf %121, %123 : vector<112x128xf32>
    %c0_116 = arith.constant 0 : index
    %c0_117 = arith.constant 0 : index
    %125 = vector.load %arg12[%c0_116, %c0_117] : memref<112x128xf32, #tpu.memory_space<vmem>>, vector<112x128xf32>
    tpu.vector_store %arg12[%c0_116, %c0_117], %124 {strides = array<i32>} : memref<112x128xf32, #tpu.memory_space<vmem>>, vector<112x128xf32>,
    %c0_118 = arith.constant 0 : index
    %c0_119 = arith.constant 0 : index
    %126 = vector.load %arg12[%c0_118, %c0_119] : memref<112x128xf32, #tpu.memory_space<vmem>>, vector<72x128xf32>
    %c2_120 = arith.constant 2 : index
    %c0_121 = arith.constant 0 : index
    %127 = vector.load %arg12[%c2_120, %c0_121] : memref<112x128xf32, #tpu.memory_space<vmem>>, vector<72x128xf32>
    %128 = arith.maximumf %126, %127 : vector<72x128xf32>
    %c32_122 = arith.constant 32 : index
    %c0_123 = arith.constant 0 : index
    %129 = vector.load %arg12[%c32_122, %c0_123] : memref<112x128xf32, #tpu.memory_space<vmem>>, vector<72x128xf32>
    %c34_124 = arith.constant 34 : index
    %c0_125 = arith.constant 0 : index
    %130 = vector.load %arg12[%c34_124, %c0_125] : memref<112x128xf32, #tpu.memory_space<vmem>>, vector<72x128xf32>
    %131 = arith.maximumf %129, %130 : vector<72x128xf32>
    %132 = arith.maximumf %128, %131 : vector<72x128xf32>
    %cst_126 = arith.constant 0.000000e+00 : f32
    %133 = vector.broadcast %cst_126 : f32 to vector<72x128xf32>
    %134 = arith.maximumf %132, %133 : vector<72x128xf32>
    %c0_127 = arith.constant 0 : index
    %c0_128 = arith.constant 0 : index
    %135 = vector.load %arg13[%c0_127, %c0_128] : memref<72x128xf32, #tpu.memory_space<vmem>>, vector<72x128xf32>
    tpu.vector_store %arg13[%c0_127, %c0_128], %134 {strides = array<i32>} : memref<72x128xf32, #tpu.memory_space<vmem>>, vector<72x128xf32>,
    %c0_129 = arith.constant 0 : index
    %c0_130 = arith.constant 0 : index
    %136 = tpu.strided_load %arg13[%c0_129, %c0_130] {strides = array<i32: 4, 1>} : memref<72x128xf32, #tpu.memory_space<vmem>>, vector<2x128xf32>
    %c0_131 = arith.constant 0 : index
    %c0_132 = arith.constant 0 : index
    %c0_133 = arith.constant 0 : index
    %137 = vector.load %arg8[%c0_131, %c0_132, %c0_133] : memref<1x4x128xf32, #tpu.memory_space<vmem>>, vector<1x2x128xf32>
    %138 = vector.shape_cast %137 : vector<1x2x128xf32> to vector<2x128xf32>
    %139 = vector.shape_cast %136 : vector<2x128xf32> to vector<1x2x128xf32>
    tpu.vector_store %arg8[%c0_131, %c0_132, %c0_133], %139 {strides = array<i32>} : memref<1x4x128xf32, #tpu.memory_space<vmem>>, vector<1x2x128xf32>,
    %c64_134 = arith.constant 64 : index
    %c0_135 = arith.constant 0 : index
    %140 = tpu.strided_load %arg13[%c64_134, %c0_135] {strides = array<i32: 4, 1>} : memref<72x128xf32, #tpu.memory_space<vmem>>, vector<2x128xf32>
    %c0_136 = arith.constant 0 : index
    %c2_137 = arith.constant 2 : index
    %c0_138 = arith.constant 0 : index
    %141 = vector.load %arg8[%c0_136, %c2_137, %c0_138] : memref<1x4x128xf32, #tpu.memory_space<vmem>>, vector<1x2x128xf32>
    %142 = vector.shape_cast %141 : vector<1x2x128xf32> to vector<2x128xf32>
    %143 = vector.shape_cast %140 : vector<2x128xf32> to vector<1x2x128xf32>
    tpu.vector_store %arg8[%c0_136, %c2_137, %c0_138], %143 {strides = array<i32>} : memref<1x4x128xf32, #tpu.memory_space<vmem>>, vector<1x2x128xf32>,
    return
  }
  func.func @transform_0(%arg0: i32) -> (i32, i32, i32) {
    %c0_i32 = arith.constant 0 : i32
    %c0_i32_0 = arith.constant 0 : i32
    %c0_i32_1 = arith.constant 0 : i32
    return %arg0, %c0_i32, %c0_i32_0 : i32, i32, i32
  }
  func.func @transform_1(%arg0: i32) -> (i32, i32) {
    %c0_i32 = arith.constant 0 : i32
    %c0_i32_0 = arith.constant 0 : i32
    %c0_i32_1 = arith.constant 0 : i32
    return %c0_i32, %c0_i32_0 : i32, i32
  }
  func.func @transform_2(%arg0: i32) -> (i32, i32) {
    %c0_i32 = arith.constant 0 : i32
    %c0_i32_0 = arith.constant 0 : i32
    %c0_i32_1 = arith.constant 0 : i32
    return %c0_i32, %c0_i32_0 : i32, i32
  }
  func.func @transform_3(%arg0: i32) -> (i32, i32, i32) {
    %c0_i32 = arith.constant 0 : i32
    %c0_i32_0 = arith.constant 0 : i32
    %c0_i32_1 = arith.constant 0 : i32
    %c0_i32_2 = arith.constant 0 : i32
    return %c0_i32, %c0_i32_0, %c0_i32_1 : i32, i32, i32
  }
  func.func @transform_4(%arg0: i32) -> (i32, i32) {
    %c0_i32 = arith.constant 0 : i32
    %c0_i32_0 = arith.constant 0 : i32
    %c0_i32_1 = arith.constant 0 : i32
    return %c0_i32, %c0_i32_0 : i32, i32
  }
  func.func @transform_5(%arg0: i32) -> (i32, i32, i32) {
    %c0_i32 = arith.constant 0 : i32
    %c0_i32_0 = arith.constant 0 : i32
    %c0_i32_1 = arith.constant 0 : i32
    %c0_i32_2 = arith.constant 0 : i32
    return %c0_i32, %c0_i32_0, %c0_i32_1 : i32, i32, i32
  }
  func.func @transform_6(%arg0: i32) -> (i32, i32) {
    %c0_i32 = arith.constant 0 : i32
    %c0_i32_0 = arith.constant 0 : i32
    %c0_i32_1 = arith.constant 0 : i32
    return %c0_i32, %c0_i32_0 : i32, i32
  }
  func.func @transform_7(%arg0: i32) -> (i32, i32, i32) {
    %c0_i32 = arith.constant 0 : i32
    %c0_i32_0 = arith.constant 0 : i32
    %c0_i32_1 = arith.constant 0 : i32
    return %arg0, %c0_i32, %c0_i32_0 : i32, i32, i32
  }
}

</mosaic_0001>

<llo_original>
// kernel: cnn_network_forward.1
$region0: #{cnn_network_forward.1}
  #allocation0 [shape = 'u32[]', space=smem, size = 0x4, offset = 0x4, fixed_abs, tag = 'smem constant byte address 0x4 - core index']
  #allocation1 [shape = 'u32[144,128]{1,0:T(1,128)}', space=vmem, size = 0x12000, scoped, tag = 'internal scratch']
  #allocation2 [shape = 'f32[248,32]{1,0:T(8,128)}', space=vmem, size = 0x1f000, scoped, tag = 'scratch operand']
  #allocation3 [shape = 'f32[208,64]{1,0:T(8,128)}', space=vmem, size = 0x1a000, scoped, tag = 'scratch operand']
  #allocation4 [shape = 'bf16[184,64]{1,0:T(8,128)(2,1)}', space=vmem, size = 0xb800, scoped, tag = 'scratch operand']
  #allocation5 [shape = 'f32[112,128]{1,0:T(8,128)}', space=vmem, size = 0xe000, scoped, tag = 'scratch operand']
  #allocation6 [shape = 'f32[72,128]{1,0:T(8,128)}', space=vmem, size = 0x9000, scoped, tag = 'scratch operand']
  %s0 = inlined_call_operand.vmem [shape: bf16[2,248,32], index: 0, kind: input, shape index: {}]
  %s1 = inlined_call_operand.vmem [shape: bf16[32,32], index: 1, kind: input, shape index: {}]
  %s2 = inlined_call_operand.vmem [shape: f32[1,32], index: 2, kind: input, shape index: {}]
  %s3 = inlined_call_operand.vmem [shape: bf16[9,32,64], index: 3, kind: input, shape index: {}]
  %s4 = inlined_call_operand.vmem [shape: f32[1,64], index: 4, kind: input, shape index: {}]
  %s5 = inlined_call_operand.vmem [shape: bf16[9,64,128], index: 5, kind: input, shape index: {}]
  %s6 = inlined_call_operand.vmem [shape: f32[1,128], index: 6, kind: input, shape index: {}]
  %s7 = inlined_call_operand.hbm [shape: f32[2,4,128], index: 7, kind: output, shape index: {}]
  %s8 = sld [smem:[#allocation0]]
  $region61: #{cnn_network_forward.1} parent=0
    _
  %s10 = ssub.s32 1, %s8
  %s11 = scalar_select 0, %s10, %s8
  $region1: #{cnn_network_forward.1} parent=0
    #allocation7 [shape = 'u8[4096]{0}', space=vmem, size = 0x1000, scoped, tag = 'output window, operand 0']
    #allocation8 [shape = 's32[2]{0}', space=sflag, size = 0x8, scoped, tag = 'scoped memory for cnn_network_forward.1']
    %12 = vsyncpa [#allocation8], 0
    %s13 = scalar_lea.sflag [#allocation8], 1
    %14 = vsyncpa %s13, 0
    loop: start=0, step=1, limit=4
    $region2: #{cnn_network_forward.1} parent=1 // loop_pre_header
      _
    $region3: #{cnn_network_forward.1} parent=1 // loop_header
      %s16 = sphi 0, %s20
      %p17 = scmp.ge.s32.totalorder %s16, 4
      %s26 = sphi 0, %s28
      %s29 = sphi 0, %s26
      %s30 = sphi 0, %s29
      %s46 = sphi 0, %s30
      %s50 = sphi 0, %s50
      %s52 = sphi 0, %s50
      %s53 = sphi 0, %s52
      %s67 = sphi 0, %s53
      %s71 = sphi 0, %s71
      %s73 = sphi 0, %s71
      %s74 = sphi 0, %s73
      %s88 = sphi 0, %s74
      %s92 = sphi 0, %s92
      %s94 = sphi 0, %s92
      %s95 = sphi 0, %s94
      %s109 = sphi 0, %s95
      %s113 = sphi 0, %s113
      %s115 = sphi 0, %s113
      %s116 = sphi 0, %s115
      %s130 = sphi 0, %s116
      %s134 = sphi 0, %s134
      %s136 = sphi 0, %s134
      %s137 = sphi 0, %s136
      %s151 = sphi 0, %s137
      %s155 = sphi 0, %s155
      %s157 = sphi 0, %s155
      %s158 = sphi 0, %s157
      %s172 = sphi 0, %s158
      %s178 = sphi 0, %s180
      %s181 = sphi 0, %s178
      %s182 = sphi 0, %s181
      %s198 = sphi 0, %s182
    $region4: #{cnn_network_forward.1} parent=1 // loop_header_branch
      %19 = sbr.rel (%p17) target = $region8
    $region5: #{cnn_network_forward.1} parent=1 // loop_body
      %s21 = ssub.s32 %s16, 1
      %s22 = ssub.s32 %s16, 2
      %s23 = sadd.s32 %s16, 1
      %s24 = ssub.s32 %s16, %s23
      %p25 = scmp.eq.s32.totalorder %s24, 0
      %s27 = sadd.s32 %s26, 1
      %s28 = scalar_select %p25, %s26, %s27
      %p31 = pneg %p25
      %p32 = scmp.eq.s32.totalorder %s16, 1
      %p33 = por %p31, %p32
      %p34 = scmp.ne.s32.totalorder %s26, %s29
      %p35 = scmp.eq.s32.totalorder %s16, 0
      %p36 = por %p34, %p35
      %p37 = scmp.ne.s32.totalorder %s26, %s29
      %p38 = scmp.eq.s32.totalorder %s21, 1
      %p39 = por %p37, %p38
      %p40 = scmp.ne.s32.totalorder %s29, %s30
      %p41 = scmp.eq.s32.totalorder %s21, 0
      %p42 = por %p40, %p41
      %p43 = scmp.ne.s32.totalorder %s29, %s30
      %p44 = scmp.eq.s32.totalorder %s22, 1
      %p45 = por %p43, %p44
      %p47 = scmp.ne.s32.totalorder %s30, %s46
      %p48 = scmp.eq.s32.totalorder %s22, 0
      %p49 = por %p47, %p48
      %s51 = sadd.s32 %s50, 1
      %p54 = scmp.eq.s32.totalorder %s16, 1
      %p55 = scmp.ne.s32.totalorder %s50, %s52
      %p56 = scmp.eq.s32.totalorder %s16, 0
      %p57 = por %p55, %p56
      %p58 = scmp.ne.s32.totalorder %s50, %s52
      %p59 = scmp.eq.s32.totalorder %s21, 1
      %p60 = por %p58, %p59
      %p61 = scmp.ne.s32.totalorder %s52, %s53
      %p62 = scmp.eq.s32.totalorder %s21, 0
      %p63 = por %p61, %p62
      %p64 = scmp.ne.s32.totalorder %s52, %s53
      %p65 = scmp.eq.s32.totalorder %s22, 1
      %p66 = por %p64, %p65
      %p68 = scmp.ne.s32.totalorder %s53, %s67
      %p69 = scmp.eq.s32.totalorder %s22, 0
      %p70 = por %p68, %p69
      %s72 = sadd.s32 %s71, 1
      %p75 = scmp.eq.s32.totalorder %s16, 1
      %p76 = scmp.ne.s32.totalorder %s71, %s73
      %p77 = scmp.eq.s32.totalorder %s16, 0
      %p78 = por %p76, %p77
      %p79 = scmp.ne.s32.totalorder %s71, %s73
      %p80 = scmp.eq.s32.totalorder %s21, 1
      %p81 = por %p79, %p80
      %p82 = scmp.ne.s32.totalorder %s73, %s74
      %p83 = scmp.eq.s32.totalorder %s21, 0
      %p84 = por %p82, %p83
      %p85 = scmp.ne.s32.totalorder %s73, %s74
      %p86 = scmp.eq.s32.totalorder %s22, 1
      %p87 = por %p85, %p86
      %p89 = scmp.ne.s32.totalorder %s74, %s88
      %p90 = scmp.eq.s32.totalorder %s22, 0
      %p91 = por %p89, %p90
      %s93 = sadd.s32 %s92, 1
      %p96 = scmp.eq.s32.totalorder %s16, 1
      %p97 = scmp.ne.s32.totalorder %s92, %s94
      %p98 = scmp.eq.s32.totalorder %s16, 0
      %p99 = por %p97, %p98
      %p100 = scmp.ne.s32.totalorder %s92, %s94
      %p101 = scmp.eq.s32.totalorder %s21, 1
      %p102 = por %p100, %p101
      %p103 = scmp.ne.s32.totalorder %s94, %s95
      %p104 = scmp.eq.s32.totalorder %s21, 0
      %p105 = por %p103, %p104
      %p106 = scmp.ne.s32.totalorder %s94, %s95
      %p107 = scmp.eq.s32.totalorder %s22, 1
      %p108 = por %p106, %p107
      %p110 = scmp.ne.s32.totalorder %s95, %s109
      %p111 = scmp.eq.s32.totalorder %s22, 0
      %p112 = por %p110, %p111
      %s114 = sadd.s32 %s113, 1
      %p117 = scmp.eq.s32.totalorder %s16, 1
      %p118 = scmp.ne.s32.totalorder %s113, %s115
      %p119 = scmp.eq.s32.totalorder %s16, 0
      %p120 = por %p118, %p119
      %p121 = scmp.ne.s32.totalorder %s113, %s115
      %p122 = scmp.eq.s32.totalorder %s21, 1
      %p123 = por %p121, %p122
      %p124 = scmp.ne.s32.totalorder %s115, %s116
      %p125 = scmp.eq.s32.totalorder %s21, 0
      %p126 = por %p124, %p125
      %p127 = scmp.ne.s32.totalorder %s115, %s116
      %p128 = scmp.eq.s32.totalorder %s22, 1
      %p129 = por %p127, %p128
      %p131 = scmp.ne.s32.totalorder %s116, %s130
      %p132 = scmp.eq.s32.totalorder %s22, 0
      %p133 = por %p131, %p132
      %s135 = sadd.s32 %s134, 1
      %p138 = scmp.eq.s32.totalorder %s16, 1
      %p139 = scmp.ne.s32.totalorder %s134, %s136
      %p140 = scmp.eq.s32.totalorder %s16, 0
      %p141 = por %p139, %p140
      %p142 = scmp.ne.s32.totalorder %s134, %s136
      %p143 = scmp.eq.s32.totalorder %s21, 1
      %p144 = por %p142, %p143
      %p145 = scmp.ne.s32.totalorder %s136, %s137
      %p146 = scmp.eq.s32.totalorder %s21, 0
      %p147 = por %p145, %p146
      %p148 = scmp.ne.s32.totalorder %s136, %s137
      %p149 = scmp.eq.s32.totalorder %s22, 1
      %p150 = por %p148, %p149
      %p152 = scmp.ne.s32.totalorder %s137, %s151
      %p153 = scmp.eq.s32.totalorder %s22, 0
      %p154 = por %p152, %p153
      %s156 = sadd.s32 %s155, 1
      %p159 = scmp.eq.s32.totalorder %s16, 1
      %p160 = scmp.ne.s32.totalorder %s155, %s157
      %p161 = scmp.eq.s32.totalorder %s16, 0
      %p162 = por %p160, %p161
      %p163 = scmp.ne.s32.totalorder %s155, %s157
      %p164 = scmp.eq.s32.totalorder %s21, 1
      %p165 = por %p163, %p164
      %p166 = scmp.ne.s32.totalorder %s157, %s158
      %p167 = scmp.eq.s32.totalorder %s21, 0
      %p168 = por %p166, %p167
      %p169 = scmp.ne.s32.totalorder %s157, %s158
      %p170 = scmp.eq.s32.totalorder %s22, 1
      %p171 = por %p169, %p170
      %p173 = scmp.ne.s32.totalorder %s158, %s172
      %p174 = scmp.eq.s32.totalorder %s22, 0
      %p175 = por %p173, %p174
      %s176 = ssub.s32 %s16, %s23
      %p177 = scmp.eq.s32.totalorder %s176, 0
      %s179 = sadd.s32 %s178, 1
      %s180 = scalar_select %p177, %s178, %s179
      %p183 = pneg %p177
      %p184 = scmp.eq.s32.totalorder %s16, 1
      %p185 = por %p183, %p184
      %p186 = scmp.ne.s32.totalorder %s178, %s181
      %p187 = scmp.eq.s32.totalorder %s16, 0
      %p188 = por %p186, %p187
      %p189 = scmp.ne.s32.totalorder %s178, %s181
      %p190 = scmp.eq.s32.totalorder %s21, 1
      %p191 = por %p189, %p190
      %p192 = scmp.ne.s32.totalorder %s181, %s182
      %p193 = scmp.eq.s32.totalorder %s21, 0
      %p194 = por %p192, %p193
      %p195 = scmp.ne.s32.totalorder %s181, %s182
      %p196 = scmp.eq.s32.totalorder %s22, 1
      %p197 = por %p195, %p196
      %p199 = scmp.ne.s32.totalorder %s182, %s198
      %p200 = scmp.eq.s32.totalorder %s22, 0
      %p201 = por %p199, %p200
      %p202 = scmp.le.s32.totalorder 1, %s16
      %p203 = scmp.lt.s32.totalorder %s16, 3
      %p204 = pnand %p202, %p203
      %p205 = pneg %p204
      // Predicated region
      $region9: #{cnn_network_forward.1} parent=5 // pred_check
        _
      $region10: #{cnn_network_forward.1} parent=5 // pred_check_branch
        %207 = sbr.rel (%p204) target = $region12
      $region11: #{cnn_network_forward.1} parent=5 // pred_region
        %s208 = ssub.s32 %s16, 1
        // Predicated region
        $region13: #{cnn_network_forward.1} parent=11 // pred_check
          %p209 = pneg %p63
        $region14: #{cnn_network_forward.1} parent=11 // pred_check_branch
          %211 = sbr.rel (%p209) target = $region16
        $region15: #{cnn_network_forward.1} parent=11 // pred_region
          _
        $region16: #{cnn_network_forward.1} parent=11 // pred_fallthru
          _
        // Predicated region
        $region17: #{cnn_network_forward.1} parent=11 // pred_check
          %p212 = pneg %p84
        $region18: #{cnn_network_forward.1} parent=11 // pred_check_branch
          %214 = sbr.rel (%p212) target = $region20
        $region19: #{cnn_network_forward.1} parent=11 // pred_region
          _
        $region20: #{cnn_network_forward.1} parent=11 // pred_fallthru
          _
        // Predicated region
        $region21: #{cnn_network_forward.1} parent=11 // pred_check
          %p215 = pneg %p105
        $region22: #{cnn_network_forward.1} parent=11 // pred_check_branch
          %217 = sbr.rel (%p215) target = $region24
        $region23: #{cnn_network_forward.1} parent=11 // pred_region
          _
        $region24: #{cnn_network_forward.1} parent=11 // pred_fallthru
          _
        // Predicated region
        $region25: #{cnn_network_forward.1} parent=11 // pred_check
          %p218 = pneg %p126
        $region26: #{cnn_network_forward.1} parent=11 // pred_check_branch
          %220 = sbr.rel (%p218) target = $region28
        $region27: #{cnn_network_forward.1} parent=11 // pred_region
          _
        $region28: #{cnn_network_forward.1} parent=11 // pred_fallthru
          _
        // Predicated region
        $region29: #{cnn_network_forward.1} parent=11 // pred_check
          %p221 = pneg %p147
        $region30: #{cnn_network_forward.1} parent=11 // pred_check_branch
          %223 = sbr.rel (%p221) target = $region32
        $region31: #{cnn_network_forward.1} parent=11 // pred_region
          _
        $region32: #{cnn_network_forward.1} parent=11 // pred_fallthru
          _
        // Predicated region
        $region33: #{cnn_network_forward.1} parent=11 // pred_check
          %p224 = pneg %p168
        $region34: #{cnn_network_forward.1} parent=11 // pred_check_branch
          %226 = sbr.rel (%p224) target = $region36
        $region35: #{cnn_network_forward.1} parent=11 // pred_region
          _
        $region36: #{cnn_network_forward.1} parent=11 // pred_fallthru
          _
      $region12: #{cnn_network_forward.1} parent=5 // pred_fallthru
        _
      %p227 = scmp.lt.s32.totalorder %s16, 2
      // Predicated region
      $region37: #{cnn_network_forward.1} parent=5 // pred_check
        %p228 = pneg %p227
      $region38: #{cnn_network_forward.1} parent=5 // pred_check_branch
        %230 = sbr.rel (%p228) target = $region40
      $region39: #{cnn_network_forward.1} parent=5 // pred_region
        // Predicated region
        $region41: #{cnn_network_forward.1} parent=39 // pred_check
          %p231 = pneg %p36
        $region42: #{cnn_network_forward.1} parent=39 // pred_check_branch
          %233 = sbr.rel (%p231) target = $region44
        $region43: #{cnn_network_forward.1} parent=39 // pred_region
          %p234 = scmp.lt.s32.totalorder %s16, 1
          %s235 = scalar_select %p234, %s16, 1
          %s236 = smul.addr %s235, 31
          %s237 = smul.addr %s236, 4
          %s238 = scalar_lea.vmem %s0, %s237
        $region44: #{cnn_network_forward.1} parent=39 // pred_fallthru
          _
      $region40: #{cnn_network_forward.1} parent=5 // pred_fallthru
        _
      %p239 = scmp.le.s32.totalorder 1, %s16
      %p240 = scmp.lt.s32.totalorder %s16, 3
      %p241 = pnand %p239, %p240
      %p242 = pneg %p241
      // Predicated region
      $region45: #{cnn_network_forward.1} parent=5 // pred_check
        _
      $region46: #{cnn_network_forward.1} parent=5 // pred_check_branch
        %244 = sbr.rel (%p241) target = $region48
      $region47: #{cnn_network_forward.1} parent=5 // pred_region
        %s245 = ssub.s32 %s16, 1
        %p246 = scmp.lt.s32.totalorder %s21, 1
        %s247 = scalar_select %p246, %s21, 1
        %s248 = smul.addr %s247, 31
        %s249 = smul.addr %s248, 4
        %s250 = scalar_lea.vmem %s0, %s249
        %p251 = pneg %p42
        %p252 = pneg %p39
        %p253 = pneg %p63
        %p254 = pneg %p60
        %p255 = pneg %p84
        %p256 = pneg %p81
        %p257 = pneg %p105
        %p258 = pneg %p102
        %p259 = pneg %p126
        %p260 = pneg %p123
        %p261 = pneg %p147
        %p262 = pneg %p144
        %p263 = pneg %p168
        %p264 = pneg %p165
        %p265 = pneg %p194
        %p266 = pneg %p191
        %s267 = sand.u32 %s181, 1
        %s268 = scalar_lea.sflag [#allocation8], %s267
        %s269 = sand.u32 %s181, 1
        %s270 = smul.addr %s269, 4
        %s271 = scalar_lea.vmem [#allocation7], %s270
        %p272 = scmp.lt.s32.totalorder %s21, 1
        %s273 = scalar_select %p272, %s21, 1
        %s274 = smul.addr %s273, 31
        %s275 = smul.addr %s274, 4
        %s276 = scalar_lea.vmem %s0, %s275
        %v278 = vld [vmem:[%s276] sm:$0xf]
        %v279 = vld [vmem:[%s276 + $0x4] sm:$0xf]
        %v280 = vld [vmem:[%s276 + $0x8] sm:$0xf]
        %v281 = vld [vmem:[%s276 + $0xc] sm:$0xf]
        %v282 = vld [vmem:[%s276 + $0x10] sm:$0xf]
        %v283 = vld [vmem:[%s276 + $0x14] sm:$0xf]
        %v284 = vld [vmem:[%s276 + $0x18] sm:$0xf]
        %v285 = vld [vmem:[%s276 + $0x1c] sm:$0xf]
        %v286 = vld [vmem:[%s276 + $0x20] sm:$0xf]
        %v287 = vld [vmem:[%s276 + $0x24] sm:$0xf]
        %v288 = vld [vmem:[%s276 + $0x28] sm:$0xf]
        %v289 = vld [vmem:[%s276 + $0x2c] sm:$0xf]
        %v290 = vld [vmem:[%s276 + $0x30] sm:$0xf]
        %v291 = vld [vmem:[%s276 + $0x34] sm:$0xf]
        %v292 = vld [vmem:[%s276 + $0x38] sm:$0xf]
        %v293 = vld [vmem:[%s276 + $0x3c] sm:$0xf]
        %v294 = vld [vmem:[%s276 + $0x40] sm:$0xf]
        %v295 = vld [vmem:[%s276 + $0x44] sm:$0xf]
        %v296 = vld [vmem:[%s276 + $0x48] sm:$0xf]
        %v297 = vld [vmem:[%s276 + $0x4c] sm:$0xf]
        %v298 = vld [vmem:[%s276 + $0x50] sm:$0xf]
        %v299 = vld [vmem:[%s276 + $0x54] sm:$0xf]
        %v300 = vld [vmem:[%s276 + $0x58] sm:$0xf]
        %v301 = vld [vmem:[%s276 + $0x5c] sm:$0xf]
        %v302 = vld [vmem:[%s276 + $0x60] sm:$0xf]
        %v303 = vld [vmem:[%s276 + $0x64] sm:$0xf]
        %v304 = vld [vmem:[%s276 + $0x68] sm:$0xf]
        %v305 = vld [vmem:[%s276 + $0x6c] sm:$0xf]
        %v306 = vld [vmem:[%s276 + $0x70] sm:$0xf]
        %v307 = vld [vmem:[%s276 + $0x74] sm:$0xf]
        %v308 = vld [vmem:[%s276 + $0x78] sm:$0xf]
        %v309 = vld [vmem:[%s1] sm:$0xf]
        %v310 = vld [vmem:[%s1 + $0x4] sm:$0xf]
        %v311 = vld [vmem:[%s1 + $0x8] sm:$0xf]
        %v312 = vld [vmem:[%s1 + $0xc] sm:$0xf]
        %v313 = vld [vmem:[%s2] sm:$0x1]
        %v315 = vlaneseq
        %v316 = vshrl.u32 %v315, 7
        %v317 = vsub.s32 0, %v316
        %v318 = vrot.slane %v313, %v317
        %v351 = vunpack.c.l.b16 %v278
        %v352 = vunpack.c.l.b16 %v279
        %v353 = vunpack.c.l.b16 %v280
        %v354 = vunpack.c.l.b16 %v281
        %v355 = vunpack.c.l.b16 %v282
        %v356 = vunpack.c.l.b16 %v283
        %v357 = vunpack.c.l.b16 %v284
        %v358 = vunpack.c.l.b16 %v285
        %v359 = vunpack.c.l.b16 %v286
        %v360 = vunpack.c.l.b16 %v287
        %v361 = vunpack.c.l.b16 %v288
        %v362 = vunpack.c.l.b16 %v289
        %v363 = vunpack.c.l.b16 %v290
        %v364 = vunpack.c.l.b16 %v291
        %v365 = vunpack.c.l.b16 %v292
        %v366 = vunpack.c.l.b16 %v293
        %v367 = vunpack.c.l.b16 %v294
        %v368 = vunpack.c.l.b16 %v295
        %v369 = vunpack.c.l.b16 %v296
        %v370 = vunpack.c.l.b16 %v297
        %v371 = vunpack.c.l.b16 %v298
        %v372 = vunpack.c.l.b16 %v299
        %v373 = vunpack.c.l.b16 %v300
        %v374 = vunpack.c.l.b16 %v301
        %v375 = vunpack.c.l.b16 %v302
        %v376 = vunpack.c.l.b16 %v303
        %v377 = vunpack.c.l.b16 %v304
        %v378 = vunpack.c.l.b16 %v305
        %v379 = vunpack.c.l.b16 %v306
        %v380 = vunpack.c.l.b16 %v307
        %v381 = vunpack.c.l.b16 %v308
        %v382 = vpack.c.b16 %v352, %v351
        %v383 = vpack.c.b16 %v354, %v353
        %v384 = vpack.c.b16 %v356, %v355
        %v385 = vpack.c.b16 %v358, %v357
        %v386 = vpack.c.b16 %v360, %v359
        %v387 = vpack.c.b16 %v362, %v361
        %v388 = vpack.c.b16 %v364, %v363
        %v389 = vpack.c.b16 %v366, %v365
        %v390 = vpack.c.b16 %v368, %v367
        %v391 = vpack.c.b16 %v370, %v369
        %v392 = vpack.c.b16 %v372, %v371
        %v393 = vpack.c.b16 %v374, %v373
        %v394 = vpack.c.b16 %v376, %v375
        %v395 = vpack.c.b16 %v378, %v377
        %v396 = vpack.c.b16 %v380, %v379
        %v397 = vpack.c.b16 %v381, %v381
        %v402 = vunpack.c.l.b16 %v309
        %v403 = vunpack.c.l.b16 %v310
        %v404 = vunpack.c.l.b16 %v311
        %v405 = vunpack.c.l.b16 %v312
        %v406 = vpack.c.b16 %v403, %v402
        %v407 = vpack.c.b16 %v405, %v404
        %vm410 = vcmask 261120
        %v412 = vsel %vm410, %v382, 0
        %v415 = vsel %vm410, %v383, 0
        %v418 = vsel %vm410, %v384, 0
        %v421 = vsel %vm410, %v385, 0
        %v424 = vsel %vm410, %v386, 0
        %v427 = vsel %vm410, %v387, 0
        %v430 = vsel %vm410, %v388, 0
        %v433 = vsel %vm410, %v389, 0
        %v436 = vsel %vm410, %v390, 0
        %v439 = vsel %vm410, %v391, 0
        %v442 = vsel %vm410, %v392, 0
        %v445 = vsel %vm410, %v393, 0
        %v448 = vsel %vm410, %v394, 0
        %v451 = vsel %vm410, %v395, 0
        %v454 = vsel %vm410, %v396, 0
        %v457 = vsel %vm410, %v397, 0
        %459 = vmatprep.subr.bf16.mxu0 0
        %460 = vmatpush1.bf16.msra.mxu0 %v406
        %461 = vmatprep.subr.bf16.mxu0 0
        %462 = vmatpush1.bf16.msra.mxu0 %v407
        %463 = vmatprep.subr.bf16.mxu0 0
        %464 = vmatpush1.bf16.msra.mxu0 0
        %465 = vmatprep.subr.bf16.mxu0 0
        %466 = vmatpush1.bf16.msra.mxu0 0
        %467 = vmatprep.subr.bf16.mxu0 0
        %468 = vmatpush1.bf16.msra.mxu0 0
        %469 = vmatprep.subr.bf16.mxu0 0
        %470 = vmatpush1.bf16.msra.mxu0 0
        %471 = vmatprep.subr.bf16.mxu0 0
        %472 = vmatpush1.bf16.msra.mxu0 0
        %473 = vmatprep.subr.bf16.mxu0 0
        %474 = vmatpush1.bf16.msra.mxu0 0
        %475 = vmatprep.subr.bf16.mxu0 0
        %476 = vmatpush1.bf16.msra.mxu0 0
        %477 = vmatprep.subr.bf16.mxu0 0
        %478 = vmatpush1.bf16.msra.mxu0 0
        %479 = vmatprep.subr.bf16.mxu0 0
        %480 = vmatpush1.bf16.msra.mxu0 0
        %481 = vmatprep.subr.bf16.mxu0 0
        %482 = vmatpush1.bf16.msra.mxu0 0
        %483 = vmatprep.subr.bf16.mxu0 0
        %484 = vmatpush1.bf16.msra.mxu0 0
        %485 = vmatprep.subr.bf16.mxu0 0
        %486 = vmatpush1.bf16.msra.mxu0 0
        %487 = vmatprep.subr.bf16.mxu0 0
        %488 = vmatpush1.bf16.msra.mxu0 0
        %489 = vmatprep.subr.bf16.mxu0 0
        %490 = vmatpush1.bf16.msra.mxu0 0
        %491 = vmatprep.mubr.bf16.mxu0 0
        %492 = vmatmul.mubr.bf16.gmra.mrb[0].mxu0 %v412
        %v493 = vpop.f32.mrb[0].mxu0
        %v494 = vadd.f32 %v318, %v493
        %v495 = vpop.f32.mrb[0].mxu0
        %v496 = vpop.f32.mrb[0].mxu0
        %v497 = vadd.f32 %v318, %v496
        %v498 = vpop.f32.mrb[0].mxu0
        %499 = vmatprep.mubr.bf16.mxu0 0
        %500 = vmatmul.mubr.bf16.gmra.mrb[0].mxu0 %v415
        %v501 = vpop.f32.mrb[0].mxu0
        %v502 = vadd.f32 %v318, %v501
        %v503 = vpop.f32.mrb[0].mxu0
        %v504 = vpop.f32.mrb[0].mxu0
        %v505 = vadd.f32 %v318, %v504
        %v506 = vpop.f32.mrb[0].mxu0
        %507 = vmatprep.mubr.bf16.mxu0 0
        %508 = vmatmul.mubr.bf16.gmra.mrb[0].mxu0 %v418
        %v509 = vpop.f32.mrb[0].mxu0
        %v510 = vadd.f32 %v318, %v509
        %v511 = vpop.f32.mrb[0].mxu0
        %v512 = vpop.f32.mrb[0].mxu0
        %v513 = vadd.f32 %v318, %v512
        %v514 = vpop.f32.mrb[0].mxu0
        %515 = vmatprep.mubr.bf16.mxu0 0
        %516 = vmatmul.mubr.bf16.gmra.mrb[0].mxu0 %v421
        %v517 = vpop.f32.mrb[0].mxu0
        %v518 = vadd.f32 %v318, %v517
        %v519 = vpop.f32.mrb[0].mxu0
        %v520 = vpop.f32.mrb[0].mxu0
        %v521 = vadd.f32 %v318, %v520
        %v522 = vpop.f32.mrb[0].mxu0
        %523 = vmatprep.mubr.bf16.mxu0 0
        %524 = vmatmul.mubr.bf16.gmra.mrb[0].mxu0 %v424
        %v525 = vpop.f32.mrb[0].mxu0
        %v526 = vadd.f32 %v318, %v525
        %v527 = vpop.f32.mrb[0].mxu0
        %v528 = vpop.f32.mrb[0].mxu0
        %v529 = vadd.f32 %v318, %v528
        %v530 = vpop.f32.mrb[0].mxu0
        %531 = vmatprep.mubr.bf16.mxu0 0
        %532 = vmatmul.mubr.bf16.gmra.mrb[0].mxu0 %v427
        %v533 = vpop.f32.mrb[0].mxu0
        %v534 = vadd.f32 %v318, %v533
        %v535 = vpop.f32.mrb[0].mxu0
        %v536 = vpop.f32.mrb[0].mxu0
        %v537 = vadd.f32 %v318, %v536
        %v538 = vpop.f32.mrb[0].mxu0
        %539 = vmatprep.mubr.bf16.mxu0 0
        %540 = vmatmul.mubr.bf16.gmra.mrb[0].mxu0 %v430
        %v541 = vpop.f32.mrb[0].mxu0
        %v542 = vadd.f32 %v318, %v541
        %v543 = vpop.f32.mrb[0].mxu0
        %v544 = vpop.f32.mrb[0].mxu0
        %v545 = vadd.f32 %v318, %v544
        %v546 = vpop.f32.mrb[0].mxu0
        %547 = vmatprep.mubr.bf16.mxu0 0
        %548 = vmatmul.mubr.bf16.gmra.mrb[0].mxu0 %v433
        %v549 = vpop.f32.mrb[0].mxu0
        %v550 = vadd.f32 %v318, %v549
        %v551 = vpop.f32.mrb[0].mxu0
        %v552 = vpop.f32.mrb[0].mxu0
        %v553 = vadd.f32 %v318, %v552
        %v554 = vpop.f32.mrb[0].mxu0
        %555 = vmatprep.mubr.bf16.mxu0 0
        %556 = vmatmul.mubr.bf16.gmra.mrb[0].mxu0 %v436
        %v557 = vpop.f32.mrb[0].mxu0
        %v558 = vadd.f32 %v318, %v557
        %v559 = vpop.f32.mrb[0].mxu0
        %v560 = vpop.f32.mrb[0].mxu0
        %v561 = vadd.f32 %v318, %v560
        %v562 = vpop.f32.mrb[0].mxu0
        %563 = vmatprep.mubr.bf16.mxu0 0
        %564 = vmatmul.mubr.bf16.gmra.mrb[0].mxu0 %v439
        %v565 = vpop.f32.mrb[0].mxu0
        %v566 = vadd.f32 %v318, %v565
        %v567 = vpop.f32.mrb[0].mxu0
        %v568 = vpop.f32.mrb[0].mxu0
        %v569 = vadd.f32 %v318, %v568
        %v570 = vpop.f32.mrb[0].mxu0
        %571 = vmatprep.mubr.bf16.mxu0 0
        %572 = vmatmul.mubr.bf16.gmra.mrb[0].mxu0 %v442
        %v573 = vpop.f32.mrb[0].mxu0
        %v574 = vadd.f32 %v318, %v573
        %v575 = vpop.f32.mrb[0].mxu0
        %v576 = vpop.f32.mrb[0].mxu0
        %v577 = vadd.f32 %v318, %v576
        %v578 = vpop.f32.mrb[0].mxu0
        %579 = vmatprep.mubr.bf16.mxu0 0
        %580 = vmatmul.mubr.bf16.gmra.mrb[0].mxu0 %v445
        %v581 = vpop.f32.mrb[0].mxu0
        %v582 = vadd.f32 %v318, %v581
        %v583 = vpop.f32.mrb[0].mxu0
        %v584 = vpop.f32.mrb[0].mxu0
        %v585 = vadd.f32 %v318, %v584
        %v586 = vpop.f32.mrb[0].mxu0
        %587 = vmatprep.mubr.bf16.mxu0 0
        %588 = vmatmul.mubr.bf16.gmra.mrb[0].mxu0 %v448
        %v589 = vpop.f32.mrb[0].mxu0
        %v590 = vadd.f32 %v318, %v589
        %v591 = vpop.f32.mrb[0].mxu0
        %v592 = vpop.f32.mrb[0].mxu0
        %v593 = vadd.f32 %v318, %v592
        %v594 = vpop.f32.mrb[0].mxu0
        %595 = vmatprep.mubr.bf16.mxu0 0
        %596 = vmatmul.mubr.bf16.gmra.mrb[0].mxu0 %v451
        %v597 = vpop.f32.mrb[0].mxu0
        %v598 = vadd.f32 %v318, %v597
        %v599 = vpop.f32.mrb[0].mxu0
        %v600 = vpop.f32.mrb[0].mxu0
        %v601 = vadd.f32 %v318, %v600
        %v602 = vpop.f32.mrb[0].mxu0
        %603 = vmatprep.mubr.bf16.mxu0 0
        %604 = vmatmul.mubr.bf16.gmra.mrb[0].mxu0 %v454
        %v605 = vpop.f32.mrb[0].mxu0
        %v606 = vadd.f32 %v318, %v605
        %v607 = vpop.f32.mrb[0].mxu0
        %v608 = vpop.f32.mrb[0].mxu0
        %v609 = vadd.f32 %v318, %v608
        %v610 = vpop.f32.mrb[0].mxu0
        %611 = vmatprep.mubr.bf16.mxu0 0
        %612 = vmatmul.mubr.bf16.gmra.mrb[0].mxu0 %v457
        %v613 = vpop.f32.mrb[0].mxu0
        %v614 = vadd.f32 %v318, %v613
        %v615 = vpop.f32.mrb[0].mxu0
        %v616 = vpop.f32.mrb[0].mxu0
        %v617 = vpop.f32.mrb[0].mxu0
        %618 = vdwg.mxu0
        %v619 = vmax.f32 %v494, 0.0
        %v620 = vmax.f32 %v497, 0.0
        %v621 = vmax.f32 %v502, 0.0
        %v622 = vmax.f32 %v505, 0.0
        %v623 = vmax.f32 %v510, 0.0
        %v624 = vmax.f32 %v513, 0.0
        %v625 = vmax.f32 %v518, 0.0
        %v626 = vmax.f32 %v521, 0.0
        %v627 = vmax.f32 %v526, 0.0
        %v628 = vmax.f32 %v529, 0.0
        %v629 = vmax.f32 %v534, 0.0
        %v630 = vmax.f32 %v537, 0.0
        %v631 = vmax.f32 %v542, 0.0
        %v632 = vmax.f32 %v545, 0.0
        %v633 = vmax.f32 %v550, 0.0
        %v634 = vmax.f32 %v553, 0.0
        %v635 = vmax.f32 %v558, 0.0
        %v636 = vmax.f32 %v561, 0.0
        %v637 = vmax.f32 %v566, 0.0
        %v638 = vmax.f32 %v569, 0.0
        %v639 = vmax.f32 %v574, 0.0
        %v640 = vmax.f32 %v577, 0.0
        %v641 = vmax.f32 %v582, 0.0
        %v642 = vmax.f32 %v585, 0.0
        %v643 = vmax.f32 %v590, 0.0
        %v644 = vmax.f32 %v593, 0.0
        %v645 = vmax.f32 %v598, 0.0
        %v646 = vmax.f32 %v601, 0.0
        %v647 = vmax.f32 %v606, 0.0
        %v648 = vmax.f32 %v609, 0.0
        %v649 = vmax.f32 %v614, 0.0
        %650 = vst.msk [vmem:[#allocation2] sm:$0xff] %vm410, %v619
        %651 = vst.msk [vmem:[#allocation2 + $0x8] sm:$0xff] %vm410, %v620
        %652 = vst.msk [vmem:[#allocation2 + $0x10] sm:$0xff] %vm410, %v621
        %653 = vst.msk [vmem:[#allocation2 + $0x18] sm:$0xff] %vm410, %v622
        %654 = vst.msk [vmem:[#allocation2 + $0x20] sm:$0xff] %vm410, %v623
        %655 = vst.msk [vmem:[#allocation2 + $0x28] sm:$0xff] %vm410, %v624
        %656 = vst.msk [vmem:[#allocation2 + $0x30] sm:$0xff] %vm410, %v625
        %657 = vst.msk [vmem:[#allocation2 + $0x38] sm:$0xff] %vm410, %v626
        %658 = vst.msk [vmem:[#allocation2 + $0x40] sm:$0xff] %vm410, %v627
        %659 = vst.msk [vmem:[#allocation2 + $0x48] sm:$0xff] %vm410, %v628
        %660 = vst.msk [vmem:[#allocation2 + $0x50] sm:$0xff] %vm410, %v629
        %661 = vst.msk [vmem:[#allocation2 + $0x58] sm:$0xff] %vm410, %v630
        %662 = vst.msk [vmem:[#allocation2 + $0x60] sm:$0xff] %vm410, %v631
        %663 = vst.msk [vmem:[#allocation2 + $0x68] sm:$0xff] %vm410, %v632
        %664 = vst.msk [vmem:[#allocation2 + $0x70] sm:$0xff] %vm410, %v633
        %665 = vst.msk [vmem:[#allocation2 + $0x78] sm:$0xff] %vm410, %v634
        %666 = vst.msk [vmem:[#allocation2 + $0x80] sm:$0xff] %vm410, %v635
        %667 = vst.msk [vmem:[#allocation2 + $0x88] sm:$0xff] %vm410, %v636
        %668 = vst.msk [vmem:[#allocation2 + $0x90] sm:$0xff] %vm410, %v637
        %669 = vst.msk [vmem:[#allocation2 + $0x98] sm:$0xff] %vm410, %v638
        %670 = vst.msk [vmem:[#allocation2 + $0xa0] sm:$0xff] %vm410, %v639
        %671 = vst.msk [vmem:[#allocation2 + $0xa8] sm:$0xff] %vm410, %v640
        %672 = vst.msk [vmem:[#allocation2 + $0xb0] sm:$0xff] %vm410, %v641
        %673 = vst.msk [vmem:[#allocation2 + $0xb8] sm:$0xff] %vm410, %v642
        %674 = vst.msk [vmem:[#allocation2 + $0xc0] sm:$0xff] %vm410, %v643
        %675 = vst.msk [vmem:[#allocation2 + $0xc8] sm:$0xff] %vm410, %v644
        %676 = vst.msk [vmem:[#allocation2 + $0xd0] sm:$0xff] %vm410, %v645
        %677 = vst.msk [vmem:[#allocation2 + $0xd8] sm:$0xff] %vm410, %v646
        %678 = vst.msk [vmem:[#allocation2 + $0xe0] sm:$0xff] %vm410, %v647
        %679 = vst.msk [vmem:[#allocation2 + $0xe8] sm:$0xff] %vm410, %v648
        %680 = vst.msk [vmem:[#allocation2 + $0xf0] sm:$0xff] %vm410, %v649
        %v681 = vld [vmem:[#allocation2] sm:$0xff]
        %v682 = vld [vmem:[#allocation2 + $0x8] sm:$0xff]
        %v683 = vld [vmem:[#allocation2 + $0x10] sm:$0xff]
        %v684 = vld [vmem:[#allocation2 + $0x18] sm:$0xff]
        %v685 = vld [vmem:[#allocation2 + $0x20] sm:$0xff]
        %v686 = vld [vmem:[#allocation2 + $0x28] sm:$0xff]
        %v687 = vld [vmem:[#allocation2 + $0x30] sm:$0xff]
        %v688 = vld [vmem:[#allocation2 + $0x38] sm:$0xff]
        %v689 = vld [vmem:[#allocation2 + $0x40] sm:$0xff]
        %v690 = vld [vmem:[#allocation2 + $0x48] sm:$0xff]
        %v691 = vld [vmem:[#allocation2 + $0x50] sm:$0xff]
        %v692 = vld [vmem:[#allocation2 + $0x58] sm:$0xff]
        %v693 = vld [vmem:[#allocation2 + $0x60] sm:$0xff]
        %v694 = vld [vmem:[#allocation2 + $0x68] sm:$0xff]
        %v695 = vld [vmem:[#allocation2 + $0x70] sm:$0xff]
        %v696 = vld [vmem:[#allocation2 + $0x78] sm:$0xff]
        %v697 = vld [vmem:[#allocation2 + $0x80] sm:$0xff]
        %v698 = vld [vmem:[#allocation2 + $0x88] sm:$0xff]
        %v699 = vld [vmem:[#allocation2 + $0x90] sm:$0xff]
        %v700 = vld [vmem:[#allocation2 + $0x98] sm:$0xff]
        %v701 = vld [vmem:[#allocation2 + $0xa0] sm:$0xff]
        %v702 = vld [vmem:[#allocation2 + $0xa8] sm:$0xff]
        %v703 = vld [vmem:[#allocation2 + $0xb0] sm:$0xff]
        %v704 = vld [vmem:[#allocation2 + $0xb8] sm:$0xff]
        %v705 = vld [vmem:[#allocation2 + $0xc0] sm:$0xff]
        %v706 = vld [vmem:[#allocation2 + $0xc8] sm:$0xff]
        %v707 = vpack.c.bf16 %v682, %v681
        %v708 = vpack.c.bf16 %v684, %v683
        %v709 = vpack.c.bf16 %v686, %v685
        %v710 = vpack.c.bf16 %v688, %v687
        %v711 = vpack.c.bf16 %v690, %v689
        %v712 = vpack.c.bf16 %v692, %v691
        %v713 = vpack.c.bf16 %v694, %v693
        %v714 = vpack.c.bf16 %v696, %v695
        %v715 = vpack.c.bf16 %v698, %v697
        %v716 = vpack.c.bf16 %v700, %v699
        %v717 = vpack.c.bf16 %v702, %v701
        %v718 = vpack.c.bf16 %v704, %v703
        %v719 = vpack.c.bf16 %v706, %v705
        %v720 = vld [vmem:[%s3] sm:$0xf]
        %v721 = vld [vmem:[%s3 + $0x4] sm:$0xf]
        %v722 = vld [vmem:[%s3 + $0x8] sm:$0xf]
        %v723 = vld [vmem:[%s3 + $0xc] sm:$0xf]
        %v724 = vld [vmem:[#allocation2 + $0x1] sm:$0xff]
        %v725 = vld [vmem:[#allocation2 + $0x9] sm:$0xff]
        %v726 = vld [vmem:[#allocation2 + $0x11] sm:$0xff]
        %v727 = vld [vmem:[#allocation2 + $0x19] sm:$0xff]
        %v728 = vld [vmem:[#allocation2 + $0x21] sm:$0xff]
        %v729 = vld [vmem:[#allocation2 + $0x29] sm:$0xff]
        %v730 = vld [vmem:[#allocation2 + $0x31] sm:$0xff]
        %v731 = vld [vmem:[#allocation2 + $0x39] sm:$0xff]
        %v732 = vld [vmem:[#allocation2 + $0x41] sm:$0xff]
        %v733 = vld [vmem:[#allocation2 + $0x49] sm:$0xff]
        %v734 = vld [vmem:[#allocation2 + $0x51] sm:$0xff]
        %v735 = vld [vmem:[#allocation2 + $0x59] sm:$0xff]
        %v736 = vld [vmem:[#allocation2 + $0x61] sm:$0xff]
        %v737 = vld [vmem:[#allocation2 + $0x69] sm:$0xff]
        %v738 = vld [vmem:[#allocation2 + $0x71] sm:$0xff]
        %v739 = vld [vmem:[#allocation2 + $0x79] sm:$0xff]
        %v740 = vld [vmem:[#allocation2 + $0x81] sm:$0xff]
        %v741 = vld [vmem:[#allocation2 + $0x89] sm:$0xff]
        %v742 = vld [vmem:[#allocation2 + $0x91] sm:$0xff]
        %v743 = vld [vmem:[#allocation2 + $0x99] sm:$0xff]
        %v744 = vld [vmem:[#allocation2 + $0xa1] sm:$0xff]
        %v745 = vld [vmem:[#allocation2 + $0xa9] sm:$0xff]
        %v746 = vld [vmem:[#allocation2 + $0xb1] sm:$0xff]
        %v747 = vld [vmem:[#allocation2 + $0xb9] sm:$0xff]
        %v748 = vld [vmem:[#allocation2 + $0xc1] sm:$0xff]
        %v749 = vld [vmem:[#allocation2 + $0xc9] sm:$0xff]
        %v750 = vpack.c.bf16 %v725, %v724
        %v751 = vpack.c.bf16 %v727, %v726
        %v752 = vpack.c.bf16 %v729, %v728
        %v753 = vpack.c.bf16 %v731, %v730
        %v754 = vpack.c.bf16 %v733, %v732
        %v755 = vpack.c.bf16 %v735, %v734
        %v756 = vpack.c.bf16 %v737, %v736
        %v757 = vpack.c.bf16 %v739, %v738
        %v758 = vpack.c.bf16 %v741, %v740
        %v759 = vpack.c.bf16 %v743, %v742
        %v760 = vpack.c.bf16 %v745, %v744
        %v761 = vpack.c.bf16 %v747, %v746
        %v762 = vpack.c.bf16 %v749, %v748
        %s763 = scalar_lea.vmem %s3, 16
        %v764 = vld [vmem:[%s763] sm:$0xf]
        %v765 = vld [vmem:[%s763 + $0x4] sm:$0xf]
        %v766 = vld [vmem:[%s763 + $0x8] sm:$0xf]
        %v767 = vld [vmem:[%s763 + $0xc] sm:$0xf]
        %v772 = vunpack.c.l.b16 %v764
        %v773 = vunpack.c.l.b16 %v765
        %v774 = vunpack.c.l.b16 %v766
        %v775 = vunpack.c.l.b16 %v767
        %v776 = vpack.c.b16 %v773, %v772
        %v777 = vpack.c.b16 %v775, %v774
        %v781 = vsel %vm410, %v750, 0
        %v784 = vsel %vm410, %v751, 0
        %v787 = vsel %vm410, %v752, 0
        %v790 = vsel %vm410, %v753, 0
        %v793 = vsel %vm410, %v754, 0
        %v796 = vsel %vm410, %v755, 0
        %v799 = vsel %vm410, %v756, 0
        %v802 = vsel %vm410, %v757, 0
        %v805 = vsel %vm410, %v758, 0
        %v808 = vsel %vm410, %v759, 0
        %v811 = vsel %vm410, %v760, 0
        %v814 = vsel %vm410, %v761, 0
        %v817 = vsel %vm410, %v762, 0
        %819 = vmatprep.subr.bf16.mxu0 0
        %820 = vmatpush1.bf16.msra.mxu0 %v776
        %821 = vmatprep.subr.bf16.mxu0 0
        %822 = vmatpush1.bf16.msra.mxu0 %v777
        %823 = vmatprep.subr.bf16.mxu0 0
        %824 = vmatpush1.bf16.msra.mxu0 0
        %825 = vmatprep.subr.bf16.mxu0 0
        %826 = vmatpush1.bf16.msra.mxu0 0
        %827 = vmatprep.subr.bf16.mxu0 0
        %828 = vmatpush1.bf16.msra.mxu0 0
        %829 = vmatprep.subr.bf16.mxu0 0
        %830 = vmatpush1.bf16.msra.mxu0 0
        %831 = vmatprep.subr.bf16.mxu0 0
        %832 = vmatpush1.bf16.msra.mxu0 0
        %833 = vmatprep.subr.bf16.mxu0 0
        %834 = vmatpush1.bf16.msra.mxu0 0
        %835 = vmatprep.subr.bf16.mxu0 0
        %836 = vmatpush1.bf16.msra.mxu0 0
        %837 = vmatprep.subr.bf16.mxu0 0
        %838 = vmatpush1.bf16.msra.mxu0 0
        %839 = vmatprep.subr.bf16.mxu0 0
        %840 = vmatpush1.bf16.msra.mxu0 0
        %841 = vmatprep.subr.bf16.mxu0 0
        %842 = vmatpush1.bf16.msra.mxu0 0
        %843 = vmatprep.subr.bf16.mxu0 0
        %844 = vmatpush1.bf16.msra.mxu0 0
        %845 = vmatprep.subr.bf16.mxu0 0
        %846 = vmatpush1.bf16.msra.mxu0 0
        %847 = vmatprep.subr.bf16.mxu0 0
        %848 = vmatpush1.bf16.msra.mxu0 0
        %849 = vmatprep.subr.bf16.mxu0 0
        %850 = vmatpush1.bf16.msra.mxu0 0
        %851 = vmatprep.mubr.bf16.mxu0 0
        %852 = vmatmul.mubr.bf16.gmra.mrb[0].mxu0 %v781
        %v853 = vpop.f32.mrb[0].mxu0
        %v854 = vadd.f32 0.0, %v853
        %v855 = vpop.f32.mrb[0].mxu0
        %v856 = vpop.f32.mrb[0].mxu0
        %v857 = vadd.f32 0.0, %v856
        %v858 = vpop.f32.mrb[0].mxu0
        %859 = vmatprep.mubr.bf16.mxu0 0
        %860 = vmatmul.mubr.bf16.gmra.mrb[0].mxu0 %v784
        %v861 = vpop.f32.mrb[0].mxu0
        %v862 = vadd.f32 0.0, %v861
        %v863 = vpop.f32.mrb[0].mxu0
        %v864 = vpop.f32.mrb[0].mxu0
        %v865 = vadd.f32 0.0, %v864
        %v866 = vpop.f32.mrb[0].mxu0
        %867 = vmatprep.mubr.bf16.mxu0 0
        %868 = vmatmul.mubr.bf16.gmra.mrb[0].mxu0 %v787
        %v869 = vpop.f32.mrb[0].mxu0
        %v870 = vadd.f32 0.0, %v869
        %v871 = vpop.f32.mrb[0].mxu0
        %v872 = vpop.f32.mrb[0].mxu0
        %v873 = vadd.f32 0.0, %v872
        %v874 = vpop.f32.mrb[0].mxu0
        %875 = vmatprep.mubr.bf16.mxu0 0
        %876 = vmatmul.mubr.bf16.gmra.mrb[0].mxu0 %v790
        %v877 = vpop.f32.mrb[0].mxu0
        %v878 = vadd.f32 0.0, %v877
        %v879 = vpop.f32.mrb[0].mxu0
        %v880 = vpop.f32.mrb[0].mxu0
        %v881 = vadd.f32 0.0, %v880
        %v882 = vpop.f32.mrb[0].mxu0
        %883 = vmatprep.mubr.bf16.mxu0 0
        %884 = vmatmul.mubr.bf16.gmra.mrb[0].mxu0 %v793
        %v885 = vpop.f32.mrb[0].mxu0
        %v886 = vadd.f32 0.0, %v885
        %v887 = vpop.f32.mrb[0].mxu0
        %v888 = vpop.f32.mrb[0].mxu0
        %v889 = vadd.f32 0.0, %v888
        %v890 = vpop.f32.mrb[0].mxu0
        %891 = vmatprep.mubr.bf16.mxu0 0
        %892 = vmatmul.mubr.bf16.gmra.mrb[0].mxu0 %v796
        %v893 = vpop.f32.mrb[0].mxu0
        %v894 = vadd.f32 0.0, %v893
        %v895 = vpop.f32.mrb[0].mxu0
        %v896 = vpop.f32.mrb[0].mxu0
        %v897 = vadd.f32 0.0, %v896
        %v898 = vpop.f32.mrb[0].mxu0
        %899 = vmatprep.mubr.bf16.mxu0 0
        %900 = vmatmul.mubr.bf16.gmra.mrb[0].mxu0 %v799
        %v901 = vpop.f32.mrb[0].mxu0
        %v902 = vadd.f32 0.0, %v901
        %v903 = vpop.f32.mrb[0].mxu0
        %v904 = vpop.f32.mrb[0].mxu0
        %v905 = vadd.f32 0.0, %v904
        %v906 = vpop.f32.mrb[0].mxu0
        %907 = vmatprep.mubr.bf16.mxu0 0
        %908 = vmatmul.mubr.bf16.gmra.mrb[0].mxu0 %v802
        %v909 = vpop.f32.mrb[0].mxu0
        %v910 = vadd.f32 0.0, %v909
        %v911 = vpop.f32.mrb[0].mxu0
        %v912 = vpop.f32.mrb[0].mxu0
        %v913 = vadd.f32 0.0, %v912
        %v914 = vpop.f32.mrb[0].mxu0
        %915 = vmatprep.mubr.bf16.mxu0 0
        %916 = vmatmul.mubr.bf16.gmra.mrb[0].mxu0 %v805
        %v917 = vpop.f32.mrb[0].mxu0
        %v918 = vadd.f32 0.0, %v917
        %v919 = vpop.f32.mrb[0].mxu0
        %v920 = vpop.f32.mrb[0].mxu0
        %v921 = vadd.f32 0.0, %v920
        %v922 = vpop.f32.mrb[0].mxu0
        %923 = vmatprep.mubr.bf16.mxu0 0
        %924 = vmatmul.mubr.bf16.gmra.mrb[0].mxu0 %v808
        %v925 = vpop.f32.mrb[0].mxu0
        %v926 = vadd.f32 0.0, %v925
        %v927 = vpop.f32.mrb[0].mxu0
        %v928 = vpop.f32.mrb[0].mxu0
        %v929 = vadd.f32 0.0, %v928
        %v930 = vpop.f32.mrb[0].mxu0
        %931 = vmatprep.mubr.bf16.mxu0 0
        %932 = vmatmul.mubr.bf16.gmra.mrb[0].mxu0 %v811
        %v933 = vpop.f32.mrb[0].mxu0
        %v934 = vadd.f32 0.0, %v933
        %v935 = vpop.f32.mrb[0].mxu0
        %v936 = vpop.f32.mrb[0].mxu0
        %v937 = vadd.f32 0.0, %v936
        %v938 = vpop.f32.mrb[0].mxu0
        %939 = vmatprep.mubr.bf16.mxu0 0
        %940 = vmatmul.mubr.bf16.gmra.mrb[0].mxu0 %v814
        %v941 = vpop.f32.mrb[0].mxu0
        %v942 = vadd.f32 0.0, %v941
        %v943 = vpop.f32.mrb[0].mxu0
        %v944 = vpop.f32.mrb[0].mxu0
        %v945 = vadd.f32 0.0, %v944
        %v946 = vpop.f32.mrb[0].mxu0
        %947 = vmatprep.mubr.bf16.mxu0 0
        %948 = vmatmul.mubr.bf16.gmra.mrb[0].mxu0 %v817
        %v949 = vpop.f32.mrb[0].mxu0
        %v950 = vadd.f32 0.0, %v949
        %v951 = vpop.f32.mrb[0].mxu0
        %v952 = vpop.f32.mrb[0].mxu0
        %v953 = vadd.f32 0.0, %v952
        %v954 = vpop.f32.mrb[0].mxu0
        %955 = vdwg.mxu0
        %v960 = vunpack.c.l.b16 %v720
        %v961 = vunpack.c.l.b16 %v721
        %v962 = vunpack.c.l.b16 %v722
        %v963 = vunpack.c.l.b16 %v723
        %v964 = vpack.c.b16 %v961, %v960
        %v965 = vpack.c.b16 %v963, %v962
        %v969 = vsel %vm410, %v707, 0
        %v972 = vsel %vm410, %v708, 0
        %v975 = vsel %vm410, %v709, 0
        %v978 = vsel %vm410, %v710, 0
        %v981 = vsel %vm410, %v711, 0
        %v984 = vsel %vm410, %v712, 0
        %v987 = vsel %vm410, %v713, 0
        %v990 = vsel %vm410, %v714, 0
        %v993 = vsel %vm410, %v715, 0
        %v996 = vsel %vm410, %v716, 0
        %v999 = vsel %vm410, %v717, 0
        %v1002 = vsel %vm410, %v718, 0
        %v1005 = vsel %vm410, %v719, 0
        %1007 = vmatprep.subr.bf16.mxu0 0
        %1008 = vmatpush1.bf16.msra.mxu0 %v964
        %1009 = vmatprep.subr.bf16.mxu0 0
        %1010 = vmatpush1.bf16.msra.mxu0 %v965
        %1011 = vmatprep.subr.bf16.mxu0 0
        %1012 = vmatpush1.bf16.msra.mxu0 0
        %1013 = vmatprep.subr.bf16.mxu0 0
        %1014 = vmatpush1.bf16.msra.mxu0 0
        %1015 = vmatprep.subr.bf16.mxu0 0
        %1016 = vmatpush1.bf16.msra.mxu0 0
        %1017 = vmatprep.subr.bf16.mxu0 0
        %1018 = vmatpush1.bf16.msra.mxu0 0
        %1019 = vmatprep.subr.bf16.mxu0 0
        %1020 = vmatpush1.bf16.msra.mxu0 0
        %1021 = vmatprep.subr.bf16.mxu0 0
        %1022 = vmatpush1.bf16.msra.mxu0 0
        %1023 = vmatprep.subr.bf16.mxu0 0
        %1024 = vmatpush1.bf16.msra.mxu0 0
        %1025 = vmatprep.subr.bf16.mxu0 0
        %1026 = vmatpush1.bf16.msra.mxu0 0
        %1027 = vmatprep.subr.bf16.mxu0 0
        %1028 = vmatpush1.bf16.msra.mxu0 0
        %1029 = vmatprep.subr.bf16.mxu0 0
        %1030 = vmatpush1.bf16.msra.mxu0 0
        %1031 = vmatprep.subr.bf16.mxu0 0
        %1032 = vmatpush1.bf16.msra.mxu0 0
        %1033 = vmatprep.subr.bf16.mxu0 0
        %1034 = vmatpush1.bf16.msra.mxu0 0
        %1035 = vmatprep.subr.bf16.mxu0 0
        %1036 = vmatpush1.bf16.msra.mxu0 0
        %1037 = vmatprep.subr.bf16.mxu0 0
        %1038 = vmatpush1.bf16.msra.mxu0 0
        %1039 = vmatprep.mubr.bf16.mxu0 0
        %1040 = vmatmul.mubr.bf16.gmra.mrb[0].mxu0 %v969
        %v1041 = vpop.f32.mrb[0].mxu0
        %v1042 = vadd.f32 %v854, %v1041
        %v1043 = vpop.f32.mrb[0].mxu0
        %v1044 = vpop.f32.mrb[0].mxu0
        %v1045 = vadd.f32 %v857, %v1044
        %v1046 = vpop.f32.mrb[0].mxu0
        %1047 = vmatprep.mubr.bf16.mxu0 0
        %1048 = vmatmul.mubr.bf16.gmra.mrb[0].mxu0 %v972
        %v1049 = vpop.f32.mrb[0].mxu0
        %v1050 = vadd.f32 %v862, %v1049
        %v1051 = vpop.f32.mrb[0].mxu0
        %v1052 = vpop.f32.mrb[0].mxu0
        %v1053 = vadd.f32 %v865, %v1052
        %v1054 = vpop.f32.mrb[0].mxu0
        %1055 = vmatprep.mubr.bf16.mxu0 0
        %1056 = vmatmul.mubr.bf16.gmra.mrb[0].mxu0 %v975
        %v1057 = vpop.f32.mrb[0].mxu0
        %v1058 = vadd.f32 %v870, %v1057
        %v1059 = vpop.f32.mrb[0].mxu0
        %v1060 = vpop.f32.mrb[0].mxu0
        %v1061 = vadd.f32 %v873, %v1060
        %v1062 = vpop.f32.mrb[0].mxu0
        %1063 = vmatprep.mubr.bf16.mxu0 0
        %1064 = vmatmul.mubr.bf16.gmra.mrb[0].mxu0 %v978
        %v1065 = vpop.f32.mrb[0].mxu0
        %v1066 = vadd.f32 %v878, %v1065
        %v1067 = vpop.f32.mrb[0].mxu0
        %v1068 = vpop.f32.mrb[0].mxu0
        %v1069 = vadd.f32 %v881, %v1068
        %v1070 = vpop.f32.mrb[0].mxu0
        %1071 = vmatprep.mubr.bf16.mxu0 0
        %1072 = vmatmul.mubr.bf16.gmra.mrb[0].mxu0 %v981
        %v1073 = vpop.f32.mrb[0].mxu0
        %v1074 = vadd.f32 %v886, %v1073
        %v1075 = vpop.f32.mrb[0].mxu0
        %v1076 = vpop.f32.mrb[0].mxu0
        %v1077 = vadd.f32 %v889, %v1076
        %v1078 = vpop.f32.mrb[0].mxu0
        %1079 = vmatprep.mubr.bf16.mxu0 0
        %1080 = vmatmul.mubr.bf16.gmra.mrb[0].mxu0 %v984
        %v1081 = vpop.f32.mrb[0].mxu0
        %v1082 = vadd.f32 %v894, %v1081
        %v1083 = vpop.f32.mrb[0].mxu0
        %v1084 = vpop.f32.mrb[0].mxu0
        %v1085 = vadd.f32 %v897, %v1084
        %v1086 = vpop.f32.mrb[0].mxu0
        %1087 = vmatprep.mubr.bf16.mxu0 0
        %1088 = vmatmul.mubr.bf16.gmra.mrb[0].mxu0 %v987
        %v1089 = vpop.f32.mrb[0].mxu0
        %v1090 = vadd.f32 %v902, %v1089
        %v1091 = vpop.f32.mrb[0].mxu0
        %v1092 = vpop.f32.mrb[0].mxu0
        %v1093 = vadd.f32 %v905, %v1092
        %v1094 = vpop.f32.mrb[0].mxu0
        %1095 = vmatprep.mubr.bf16.mxu0 0
        %1096 = vmatmul.mubr.bf16.gmra.mrb[0].mxu0 %v990
        %v1097 = vpop.f32.mrb[0].mxu0
        %v1098 = vadd.f32 %v910, %v1097
        %v1099 = vpop.f32.mrb[0].mxu0
        %v1100 = vpop.f32.mrb[0].mxu0
        %v1101 = vadd.f32 %v913, %v1100
        %v1102 = vpop.f32.mrb[0].mxu0
        %1103 = vmatprep.mubr.bf16.mxu0 0
        %1104 = vmatmul.mubr.bf16.gmra.mrb[0].mxu0 %v993
        %v1105 = vpop.f32.mrb[0].mxu0
        %v1106 = vadd.f32 %v918, %v1105
        %v1107 = vpop.f32.mrb[0].mxu0
        %v1108 = vpop.f32.mrb[0].mxu0
        %v1109 = vadd.f32 %v921, %v1108
        %v1110 = vpop.f32.mrb[0].mxu0
        %1111 = vmatprep.mubr.bf16.mxu0 0
        %1112 = vmatmul.mubr.bf16.gmra.mrb[0].mxu0 %v996
        %v1113 = vpop.f32.mrb[0].mxu0
        %v1114 = vadd.f32 %v926, %v1113
        %v1115 = vpop.f32.mrb[0].mxu0
        %v1116 = vpop.f32.mrb[0].mxu0
        %v1117 = vadd.f32 %v929, %v1116
        %v1118 = vpop.f32.mrb[0].mxu0
        %1119 = vmatprep.mubr.bf16.mxu0 0
        %1120 = vmatmul.mubr.bf16.gmra.mrb[0].mxu0 %v999
        %v1121 = vpop.f32.mrb[0].mxu0
        %v1122 = vadd.f32 %v934, %v1121
        %v1123 = vpop.f32.mrb[0].mxu0
        %v1124 = vpop.f32.mrb[0].mxu0
        %v1125 = vadd.f32 %v937, %v1124
        %v1126 = vpop.f32.mrb[0].mxu0
        %1127 = vmatprep.mubr.bf16.mxu0 0
        %1128 = vmatmul.mubr.bf16.gmra.mrb[0].mxu0 %v1002
        %v1129 = vpop.f32.mrb[0].mxu0
        %v1130 = vadd.f32 %v942, %v1129
        %v1131 = vpop.f32.mrb[0].mxu0
        %v1132 = vpop.f32.mrb[0].mxu0
        %v1133 = vadd.f32 %v945, %v1132
        %v1134 = vpop.f32.mrb[0].mxu0
        %1135 = vmatprep.mubr.bf16.mxu0 0
        %1136 = vmatmul.mubr.bf16.gmra.mrb[0].mxu0 %v1005
        %v1137 = vpop.f32.mrb[0].mxu0
        %v1138 = vadd.f32 %v950, %v1137
        %v1139 = vpop.f32.mrb[0].mxu0
        %v1140 = vpop.f32.mrb[0].mxu0
        %v1141 = vadd.f32 %v953, %v1140
        %v1142 = vpop.f32.mrb[0].mxu0
        %1143 = vdwg.mxu0
        %v1144 = vld [vmem:[#allocation2 + $0x2] sm:$0xff]
        %v1145 = vld [vmem:[#allocation2 + $0xa] sm:$0xff]
        %v1146 = vld [vmem:[#allocation2 + $0x12] sm:$0xff]
        %v1147 = vld [vmem:[#allocation2 + $0x1a] sm:$0xff]
        %v1148 = vld [vmem:[#allocation2 + $0x22] sm:$0xff]
        %v1149 = vld [vmem:[#allocation2 + $0x2a] sm:$0xff]
        %v1150 = vld [vmem:[#allocation2 + $0x32] sm:$0xff]
        %v1151 = vld [vmem:[#allocation2 + $0x3a] sm:$0xff]
        %v1152 = vld [vmem:[#allocation2 + $0x42] sm:$0xff]
        %v1153 = vld [vmem:[#allocation2 + $0x4a] sm:$0xff]
        %v1154 = vld [vmem:[#allocation2 + $0x52] sm:$0xff]
        %v1155 = vld [vmem:[#allocation2 + $0x5a] sm:$0xff]
        %v1156 = vld [vmem:[#allocation2 + $0x62] sm:$0xff]
        %v1157 = vld [vmem:[#allocation2 + $0x6a] sm:$0xff]
        %v1158 = vld [vmem:[#allocation2 + $0x72] sm:$0xff]
        %v1159 = vld [vmem:[#allocation2 + $0x7a] sm:$0xff]
        %v1160 = vld [vmem:[#allocation2 + $0x82] sm:$0xff]
        %v1161 = vld [vmem:[#allocation2 + $0x8a] sm:$0xff]
        %v1162 = vld [vmem:[#allocation2 + $0x92] sm:$0xff]
        %v1163 = vld [vmem:[#allocation2 + $0x9a] sm:$0xff]
        %v1164 = vld [vmem:[#allocation2 + $0xa2] sm:$0xff]
        %v1165 = vld [vmem:[#allocation2 + $0xaa] sm:$0xff]
        %v1166 = vld [vmem:[#allocation2 + $0xb2] sm:$0xff]
        %v1167 = vld [vmem:[#allocation2 + $0xba] sm:$0xff]
        %v1168 = vld [vmem:[#allocation2 + $0xc2] sm:$0xff]
        %v1169 = vld [vmem:[#allocation2 + $0xca] sm:$0xff]
        %v1170 = vpack.c.bf16 %v1145, %v1144
        %v1171 = vpack.c.bf16 %v1147, %v1146
        %v1172 = vpack.c.bf16 %v1149, %v1148
        %v1173 = vpack.c.bf16 %v1151, %v1150
        %v1174 = vpack.c.bf16 %v1153, %v1152
        %v1175 = vpack.c.bf16 %v1155, %v1154
        %v1176 = vpack.c.bf16 %v1157, %v1156
        %v1177 = vpack.c.bf16 %v1159, %v1158
        %v1178 = vpack.c.bf16 %v1161, %v1160
        %v1179 = vpack.c.bf16 %v1163, %v1162
        %v1180 = vpack.c.bf16 %v1165, %v1164
        %v1181 = vpack.c.bf16 %v1167, %v1166
        %v1182 = vpack.c.bf16 %v1169, %v1168
        %s1183 = scalar_lea.vmem %s3, 32
        %v1184 = vld [vmem:[%s1183] sm:$0xf]
        %v1185 = vld [vmem:[%s1183 + $0x4] sm:$0xf]
        %v1186 = vld [vmem:[%s1183 + $0x8] sm:$0xf]
        %v1187 = vld [vmem:[%s1183 + $0xc] sm:$0xf]
        %v1192 = vunpack.c.l.b16 %v1184
        %v1193 = vunpack.c.l.b16 %v1185
        %v1194 = vunpack.c.l.b16 %v1186
        %v1195 = vunpack.c.l.b16 %v1187
        %v1196 = vpack.c.b16 %v1193, %v1192
        %v1197 = vpack.c.b16 %v1195, %v1194
        %v1201 = vsel %vm410, %v1170, 0
        %v1204 = vsel %vm410, %v1171, 0
        %v1207 = vsel %vm410, %v1172, 0
        %v1210 = vsel %vm410, %v1173, 0
        %v1213 = vsel %vm410, %v1174, 0
        %v1216 = vsel %vm410, %v1175, 0
        %v1219 = vsel %vm410, %v1176, 0
        %v1222 = vsel %vm410, %v1177, 0
        %v1225 = vsel %vm410, %v1178, 0
        %v1228 = vsel %vm410, %v1179, 0
        %v1231 = vsel %vm410, %v1180, 0
        %v1234 = vsel %vm410, %v1181, 0
        %v1237 = vsel %vm410, %v1182, 0
        %1239 = vmatprep.subr.bf16.mxu0 0
        %1240 = vmatpush1.bf16.msra.mxu0 %v1196
        %1241 = vmatprep.subr.bf16.mxu0 0
        %1242 = vmatpush1.bf16.msra.mxu0 %v1197
        %1243 = vmatprep.subr.bf16.mxu0 0
        %1244 = vmatpush1.bf16.msra.mxu0 0
        %1245 = vmatprep.subr.bf16.mxu0 0
        %1246 = vmatpush1.bf16.msra.mxu0 0
        %1247 = vmatprep.subr.bf16.mxu0 0
        %1248 = vmatpush1.bf16.msra.mxu0 0
        %1249 = vmatprep.subr.bf16.mxu0 0
        %1250 = vmatpush1.bf16.msra.mxu0 0
        %1251 = vmatprep.subr.bf16.mxu0 0
        %1252 = vmatpush1.bf16.msra.mxu0 0
        %1253 = vmatprep.subr.bf16.mxu0 0
        %1254 = vmatpush1.bf16.msra.mxu0 0
        %1255 = vmatprep.subr.bf16.mxu0 0
        %1256 = vmatpush1.bf16.msra.mxu0 0
        %1257 = vmatprep.subr.bf16.mxu0 0
        %1258 = vmatpush1.bf16.msra.mxu0 0
        %1259 = vmatprep.subr.bf16.mxu0 0
        %1260 = vmatpush1.bf16.msra.mxu0 0
        %1261 = vmatprep.subr.bf16.mxu0 0
        %1262 = vmatpush1.bf16.msra.mxu0 0
        %1263 = vmatprep.subr.bf16.mxu0 0
        %1264 = vmatpush1.bf16.msra.mxu0 0
        %1265 = vmatprep.subr.bf16.mxu0 0
        %1266 = vmatpush1.bf16.msra.mxu0 0
        %1267 = vmatprep.subr.bf16.mxu0 0
        %1268 = vmatpush1.bf16.msra.mxu0 0
        %1269 = vmatprep.subr.bf16.mxu0 0
        %1270 = vmatpush1.bf16.msra.mxu0 0
        %1271 = vmatprep.mubr.bf16.mxu0 0
        %1272 = vmatmul.mubr.bf16.gmra.mrb[0].mxu0 %v1201
        %v1273 = vpop.f32.mrb[0].mxu0
        %v1274 = vadd.f32 0.0, %v1273
        %v1275 = vpop.f32.mrb[0].mxu0
        %v1276 = vpop.f32.mrb[0].mxu0
        %v1277 = vadd.f32 0.0, %v1276
        %v1278 = vpop.f32.mrb[0].mxu0
        %1279 = vmatprep.mubr.bf16.mxu0 0
        %1280 = vmatmul.mubr.bf16.gmra.mrb[0].mxu0 %v1204
        %v1281 = vpop.f32.mrb[0].mxu0
        %v1282 = vadd.f32 0.0, %v1281
        %v1283 = vpop.f32.mrb[0].mxu0
        %v1284 = vpop.f32.mrb[0].mxu0
        %v1285 = vadd.f32 0.0, %v1284
        %v1286 = vpop.f32.mrb[0].mxu0
        %1287 = vmatprep.mubr.bf16.mxu0 0
        %1288 = vmatmul.mubr.bf16.gmra.mrb[0].mxu0 %v1207
        %v1289 = vpop.f32.mrb[0].mxu0
        %v1290 = vadd.f32 0.0, %v1289
        %v1291 = vpop.f32.mrb[0].mxu0
        %v1292 = vpop.f32.mrb[0].mxu0
        %v1293 = vadd.f32 0.0, %v1292
        %v1294 = vpop.f32.mrb[0].mxu0
        %1295 = vmatprep.mubr.bf16.mxu0 0
        %1296 = vmatmul.mubr.bf16.gmra.mrb[0].mxu0 %v1210
        %v1297 = vpop.f32.mrb[0].mxu0
        %v1298 = vadd.f32 0.0, %v1297
        %v1299 = vpop.f32.mrb[0].mxu0
        %v1300 = vpop.f32.mrb[0].mxu0
        %v1301 = vadd.f32 0.0, %v1300
        %v1302 = vpop.f32.mrb[0].mxu0
        %1303 = vmatprep.mubr.bf16.mxu0 0
        %1304 = vmatmul.mubr.bf16.gmra.mrb[0].mxu0 %v1213
        %v1305 = vpop.f32.mrb[0].mxu0
        %v1306 = vadd.f32 0.0, %v1305
        %v1307 = vpop.f32.mrb[0].mxu0
        %v1308 = vpop.f32.mrb[0].mxu0
        %v1309 = vadd.f32 0.0, %v1308
        %v1310 = vpop.f32.mrb[0].mxu0
        %1311 = vmatprep.mubr.bf16.mxu0 0
        %1312 = vmatmul.mubr.bf16.gmra.mrb[0].mxu0 %v1216
        %v1313 = vpop.f32.mrb[0].mxu0
        %v1314 = vadd.f32 0.0, %v1313
        %v1315 = vpop.f32.mrb[0].mxu0
        %v1316 = vpop.f32.mrb[0].mxu0
        %v1317 = vadd.f32 0.0, %v1316
        %v1318 = vpop.f32.mrb[0].mxu0
        %1319 = vmatprep.mubr.bf16.mxu0 0
        %1320 = vmatmul.mubr.bf16.gmra.mrb[0].mxu0 %v1219
        %v1321 = vpop.f32.mrb[0].mxu0
        %v1322 = vadd.f32 0.0, %v1321
        %v1323 = vpop.f32.mrb[0].mxu0
        %v1324 = vpop.f32.mrb[0].mxu0
        %v1325 = vadd.f32 0.0, %v1324
        %v1326 = vpop.f32.mrb[0].mxu0
        %1327 = vmatprep.mubr.bf16.mxu0 0
        %1328 = vmatmul.mubr.bf16.gmra.mrb[0].mxu0 %v1222
        %v1329 = vpop.f32.mrb[0].mxu0
        %v1330 = vadd.f32 0.0, %v1329
        %v1331 = vpop.f32.mrb[0].mxu0
        %v1332 = vpop.f32.mrb[0].mxu0
        %v1333 = vadd.f32 0.0, %v1332
        %v1334 = vpop.f32.mrb[0].mxu0
        %1335 = vmatprep.mubr.bf16.mxu0 0
        %1336 = vmatmul.mubr.bf16.gmra.mrb[0].mxu0 %v1225
        %v1337 = vpop.f32.mrb[0].mxu0
        %v1338 = vadd.f32 0.0, %v1337
        %v1339 = vpop.f32.mrb[0].mxu0
        %v1340 = vpop.f32.mrb[0].mxu0
        %v1341 = vadd.f32 0.0, %v1340
        %v1342 = vpop.f32.mrb[0].mxu0
        %1343 = vmatprep.mubr.bf16.mxu0 0
        %1344 = vmatmul.mubr.bf16.gmra.mrb[0].mxu0 %v1228
        %v1345 = vpop.f32.mrb[0].mxu0
        %v1346 = vadd.f32 0.0, %v1345
        %v1347 = vpop.f32.mrb[0].mxu0
        %v1348 = vpop.f32.mrb[0].mxu0
        %v1349 = vadd.f32 0.0, %v1348
        %v1350 = vpop.f32.mrb[0].mxu0
        %1351 = vmatprep.mubr.bf16.mxu0 0
        %1352 = vmatmul.mubr.bf16.gmra.mrb[0].mxu0 %v1231
        %v1353 = vpop.f32.mrb[0].mxu0
        %v1354 = vadd.f32 0.0, %v1353
        %v1355 = vpop.f32.mrb[0].mxu0
        %v1356 = vpop.f32.mrb[0].mxu0
        %v1357 = vadd.f32 0.0, %v1356
        %v1358 = vpop.f32.mrb[0].mxu0
        %1359 = vmatprep.mubr.bf16.mxu0 0
        %1360 = vmatmul.mubr.bf16.gmra.mrb[0].mxu0 %v1234
        %v1361 = vpop.f32.mrb[0].mxu0
        %v1362 = vadd.f32 0.0, %v1361
        %v1363 = vpop.f32.mrb[0].mxu0
        %v1364 = vpop.f32.mrb[0].mxu0
        %v1365 = vadd.f32 0.0, %v1364
        %v1366 = vpop.f32.mrb[0].mxu0
        %1367 = vmatprep.mubr.bf16.mxu0 0
        %1368 = vmatmul.mubr.bf16.gmra.mrb[0].mxu0 %v1237
        %v1369 = vpop.f32.mrb[0].mxu0
        %v1370 = vadd.f32 0.0, %v1369
        %v1371 = vpop.f32.mrb[0].mxu0
        %v1372 = vpop.f32.mrb[0].mxu0
        %v1373 = vadd.f32 0.0, %v1372
        %v1374 = vpop.f32.mrb[0].mxu0
        %1375 = vdwg.mxu0
        %v1376 = vadd.f32 %v1042, %v1274
        %v1377 = vadd.f32 %v1045, %v1277
        %v1378 = vadd.f32 %v1050, %v1282
        %v1379 = vadd.f32 %v1053, %v1285
        %v1380 = vadd.f32 %v1058, %v1290
        %v1381 = vadd.f32 %v1061, %v1293
        %v1382 = vadd.f32 %v1066, %v1298
        %v1383 = vadd.f32 %v1069, %v1301
        %v1384 = vadd.f32 %v1074, %v1306
        %v1385 = vadd.f32 %v1077, %v1309
        %v1386 = vadd.f32 %v1082, %v1314
        %v1387 = vadd.f32 %v1085, %v1317
        %v1388 = vadd.f32 %v1090, %v1322
        %v1389 = vadd.f32 %v1093, %v1325
        %v1390 = vadd.f32 %v1098, %v1330
        %v1391 = vadd.f32 %v1101, %v1333
        %v1392 = vadd.f32 %v1106, %v1338
        %v1393 = vadd.f32 %v1109, %v1341
        %v1394 = vadd.f32 %v1114, %v1346
        %v1395 = vadd.f32 %v1117, %v1349
        %v1396 = vadd.f32 %v1122, %v1354
        %v1397 = vadd.f32 %v1125, %v1357
        %v1398 = vadd.f32 %v1130, %v1362
        %v1399 = vadd.f32 %v1133, %v1365
        %v1400 = vadd.f32 %v1138, %v1370
        %v1401 = vadd.f32 %v1141, %v1373
        %v1402 = vld [vmem:[#allocation2 + $0x10] sm:$0xff]
        %v1403 = vld [vmem:[#allocation2 + $0x18] sm:$0xff]
        %v1404 = vld [vmem:[#allocation2 + $0x20] sm:$0xff]
        %v1405 = vld [vmem:[#allocation2 + $0x28] sm:$0xff]
        %v1406 = vld [vmem:[#allocation2 + $0x30] sm:$0xff]
        %v1407 = vld [vmem:[#allocation2 + $0x38] sm:$0xff]
        %v1408 = vld [vmem:[#allocation2 + $0x40] sm:$0xff]
        %v1409 = vld [vmem:[#allocation2 + $0x48] sm:$0xff]
        %v1410 = vld [vmem:[#allocation2 + $0x50] sm:$0xff]
        %v1411 = vld [vmem:[#allocation2 + $0x58] sm:$0xff]
        %v1412 = vld [vmem:[#allocation2 + $0x60] sm:$0xff]
        %v1413 = vld [vmem:[#allocation2 + $0x68] sm:$0xff]
        %v1414 = vld [vmem:[#allocation2 + $0x70] sm:$0xff]
        %v1415 = vld [vmem:[#allocation2 + $0x78] sm:$0xff]
        %v1416 = vld [vmem:[#allocation2 + $0x80] sm:$0xff]
        %v1417 = vld [vmem:[#allocation2 + $0x88] sm:$0xff]
        %v1418 = vld [vmem:[#allocation2 + $0x90] sm:$0xff]
        %v1419 = vld [vmem:[#allocation2 + $0x98] sm:$0xff]
        %v1420 = vld [vmem:[#allocation2 + $0xa0] sm:$0xff]
        %v1421 = vld [vmem:[#allocation2 + $0xa8] sm:$0xff]
        %v1422 = vld [vmem:[#allocation2 + $0xb0] sm:$0xff]
        %v1423 = vld [vmem:[#allocation2 + $0xb8] sm:$0xff]
        %v1424 = vld [vmem:[#allocation2 + $0xc0] sm:$0xff]
        %v1425 = vld [vmem:[#allocation2 + $0xc8] sm:$0xff]
        %v1426 = vld [vmem:[#allocation2 + $0xd0] sm:$0xff]
        %v1427 = vld [vmem:[#allocation2 + $0xd8] sm:$0xff]
        %v1428 = vpack.c.bf16 %v1403, %v1402
        %v1429 = vpack.c.bf16 %v1405, %v1404
        %v1430 = vpack.c.bf16 %v1407, %v1406
        %v1431 = vpack.c.bf16 %v1409, %v1408
        %v1432 = vpack.c.bf16 %v1411, %v1410
        %v1433 = vpack.c.bf16 %v1413, %v1412
        %v1434 = vpack.c.bf16 %v1415, %v1414
        %v1435 = vpack.c.bf16 %v1417, %v1416
        %v1436 = vpack.c.bf16 %v1419, %v1418
        %v1437 = vpack.c.bf16 %v1421, %v1420
        %v1438 = vpack.c.bf16 %v1423, %v1422
        %v1439 = vpack.c.bf16 %v1425, %v1424
        %v1440 = vpack.c.bf16 %v1427, %v1426
        %s1441 = scalar_lea.vmem %s3, 48
        %v1442 = vld [vmem:[%s1441] sm:$0xf]
        %v1443 = vld [vmem:[%s1441 + $0x4] sm:$0xf]
        %v1444 = vld [vmem:[%s1441 + $0x8] sm:$0xf]
        %v1445 = vld [vmem:[%s1441 + $0xc] sm:$0xf]
        %v1450 = vunpack.c.l.b16 %v1442
        %v1451 = vunpack.c.l.b16 %v1443
        %v1452 = vunpack.c.l.b16 %v1444
        %v1453 = vunpack.c.l.b16 %v1445
        %v1454 = vpack.c.b16 %v1451, %v1450
        %v1455 = vpack.c.b16 %v1453, %v1452
        %v1459 = vsel %vm410, %v1428, 0
        %v1462 = vsel %vm410, %v1429, 0
        %v1465 = vsel %vm410, %v1430, 0
        %v1468 = vsel %vm410, %v1431, 0
        %v1471 = vsel %vm410, %v1432, 0
        %v1474 = vsel %vm410, %v1433, 0
        %v1477 = vsel %vm410, %v1434, 0
        %v1480 = vsel %vm410, %v1435, 0
        %v1483 = vsel %vm410, %v1436, 0
        %v1486 = vsel %vm410, %v1437, 0
        %v1489 = vsel %vm410, %v1438, 0
        %v1492 = vsel %vm410, %v1439, 0
        %v1495 = vsel %vm410, %v1440, 0
        %1497 = vmatprep.subr.bf16.mxu0 0
        %1498 = vmatpush1.bf16.msra.mxu0 %v1454
        %1499 = vmatprep.subr.bf16.mxu0 0
        %1500 = vmatpush1.bf16.msra.mxu0 %v1455
        %1501 = vmatprep.subr.bf16.mxu0 0
        %1502 = vmatpush1.bf16.msra.mxu0 0
        %1503 = vmatprep.subr.bf16.mxu0 0
        %1504 = vmatpush1.bf16.msra.mxu0 0
        %1505 = vmatprep.subr.bf16.mxu0 0
        %1506 = vmatpush1.bf16.msra.mxu0 0
        %1507 = vmatprep.subr.bf16.mxu0 0
        %1508 = vmatpush1.bf16.msra.mxu0 0
        %1509 = vmatprep.subr.bf16.mxu0 0
        %1510 = vmatpush1.bf16.msra.mxu0 0
        %1511 = vmatprep.subr.bf16.mxu0 0
        %1512 = vmatpush1.bf16.msra.mxu0 0
        %1513 = vmatprep.subr.bf16.mxu0 0
        %1514 = vmatpush1.bf16.msra.mxu0 0
        %1515 = vmatprep.subr.bf16.mxu0 0
        %1516 = vmatpush1.bf16.msra.mxu0 0
        %1517 = vmatprep.subr.bf16.mxu0 0
        %1518 = vmatpush1.bf16.msra.mxu0 0
        %1519 = vmatprep.subr.bf16.mxu0 0
        %1520 = vmatpush1.bf16.msra.mxu0 0
        %1521 = vmatprep.subr.bf16.mxu0 0
        %1522 = vmatpush1.bf16.msra.mxu0 0
        %1523 = vmatprep.subr.bf16.mxu0 0
        %1524 = vmatpush1.bf16.msra.mxu0 0
        %1525 = vmatprep.subr.bf16.mxu0 0
        %1526 = vmatpush1.bf16.msra.mxu0 0
        %1527 = vmatprep.subr.bf16.mxu0 0
        %1528 = vmatpush1.bf16.msra.mxu0 0
        %1529 = vmatprep.mubr.bf16.mxu0 0
        %1530 = vmatmul.mubr.bf16.gmra.mrb[0].mxu0 %v1459
        %v1531 = vpop.f32.mrb[0].mxu0
        %v1532 = vadd.f32 0.0, %v1531
        %v1533 = vpop.f32.mrb[0].mxu0
        %v1534 = vpop.f32.mrb[0].mxu0
        %v1535 = vadd.f32 0.0, %v1534
        %v1536 = vpop.f32.mrb[0].mxu0
        %1537 = vmatprep.mubr.bf16.mxu0 0
        %1538 = vmatmul.mubr.bf16.gmra.mrb[0].mxu0 %v1462
        %v1539 = vpop.f32.mrb[0].mxu0
        %v1540 = vadd.f32 0.0, %v1539
        %v1541 = vpop.f32.mrb[0].mxu0
        %v1542 = vpop.f32.mrb[0].mxu0
        %v1543 = vadd.f32 0.0, %v1542
        %v1544 = vpop.f32.mrb[0].mxu0
        %1545 = vmatprep.mubr.bf16.mxu0 0
        %1546 = vmatmul.mubr.bf16.gmra.mrb[0].mxu0 %v1465
        %v1547 = vpop.f32.mrb[0].mxu0
        %v1548 = vadd.f32 0.0, %v1547
        %v1549 = vpop.f32.mrb[0].mxu0
        %v1550 = vpop.f32.mrb[0].mxu0
        %v1551 = vadd.f32 0.0, %v1550
        %v1552 = vpop.f32.mrb[0].mxu0
        %1553 = vmatprep.mubr.bf16.mxu0 0
        %1554 = vmatmul.mubr.bf16.gmra.mrb[0].mxu0 %v1468
        %v1555 = vpop.f32.mrb[0].mxu0
        %v1556 = vadd.f32 0.0, %v1555
        %v1557 = vpop.f32.mrb[0].mxu0
        %v1558 = vpop.f32.mrb[0].mxu0
        %v1559 = vadd.f32 0.0, %v1558
        %v1560 = vpop.f32.mrb[0].mxu0
        %1561 = vmatprep.mubr.bf16.mxu0 0
        %1562 = vmatmul.mubr.bf16.gmra.mrb[0].mxu0 %v1471
        %v1563 = vpop.f32.mrb[0].mxu0
        %v1564 = vadd.f32 0.0, %v1563
        %v1565 = vpop.f32.mrb[0].mxu0
        %v1566 = vpop.f32.mrb[0].mxu0
        %v1567 = vadd.f32 0.0, %v1566
        %v1568 = vpop.f32.mrb[0].mxu0
        %1569 = vmatprep.mubr.bf16.mxu0 0
        %1570 = vmatmul.mubr.bf16.gmra.mrb[0].mxu0 %v1474
        %v1571 = vpop.f32.mrb[0].mxu0
        %v1572 = vadd.f32 0.0, %v1571
        %v1573 = vpop.f32.mrb[0].mxu0
        %v1574 = vpop.f32.mrb[0].mxu0
        %v1575 = vadd.f32 0.0, %v1574
        %v1576 = vpop.f32.mrb[0].mxu0
        %1577 = vmatprep.mubr.bf16.mxu0 0
        %1578 = vmatmul.mubr.bf16.gmra.mrb[0].mxu0 %v1477
        %v1579 = vpop.f32.mrb[0].mxu0
        %v1580 = vadd.f32 0.0, %v1579
        %v1581 = vpop.f32.mrb[0].mxu0
        %v1582 = vpop.f32.mrb[0].mxu0
        %v1583 = vadd.f32 0.0, %v1582
        %v1584 = vpop.f32.mrb[0].mxu0
        %1585 = vmatprep.mubr.bf16.mxu0 0
        %1586 = vmatmul.mubr.bf16.gmra.mrb[0].mxu0 %v1480
        %v1587 = vpop.f32.mrb[0].mxu0
        %v1588 = vadd.f32 0.0, %v1587
        %v1589 = vpop.f32.mrb[0].mxu0
        %v1590 = vpop.f32.mrb[0].mxu0
        %v1591 = vadd.f32 0.0, %v1590
        %v1592 = vpop.f32.mrb[0].mxu0
        %1593 = vmatprep.mubr.bf16.mxu0 0
        %1594 = vmatmul.mubr.bf16.gmra.mrb[0].mxu0 %v1483
        %v1595 = vpop.f32.mrb[0].mxu0
        %v1596 = vadd.f32 0.0, %v1595
        %v1597 = vpop.f32.mrb[0].mxu0
        %v1598 = vpop.f32.mrb[0].mxu0
        %v1599 = vadd.f32 0.0, %v1598
        %v1600 = vpop.f32.mrb[0].mxu0
        %1601 = vmatprep.mubr.bf16.mxu0 0
        %1602 = vmatmul.mubr.bf16.gmra.mrb[0].mxu0 %v1486
        %v1603 = vpop.f32.mrb[0].mxu0
        %v1604 = vadd.f32 0.0, %v1603
        %v1605 = vpop.f32.mrb[0].mxu0
        %v1606 = vpop.f32.mrb[0].mxu0
        %v1607 = vadd.f32 0.0, %v1606
        %v1608 = vpop.f32.mrb[0].mxu0
        %1609 = vmatprep.mubr.bf16.mxu0 0
        %1610 = vmatmul.mubr.bf16.gmra.mrb[0].mxu0 %v1489
        %v1611 = vpop.f32.mrb[0].mxu0
        %v1612 = vadd.f32 0.0, %v1611
        %v1613 = vpop.f32.mrb[0].mxu0
        %v1614 = vpop.f32.mrb[0].mxu0
        %v1615 = vadd.f32 0.0, %v1614
        %v1616 = vpop.f32.mrb[0].mxu0
        %1617 = vmatprep.mubr.bf16.mxu0 0
        %1618 = vmatmul.mubr.bf16.gmra.mrb[0].mxu0 %v1492
        %v1619 = vpop.f32.mrb[0].mxu0
        %v1620 = vadd.f32 0.0, %v1619
        %v1621 = vpop.f32.mrb[0].mxu0
        %v1622 = vpop.f32.mrb[0].mxu0
        %v1623 = vadd.f32 0.0, %v1622
        %v1624 = vpop.f32.mrb[0].mxu0
        %1625 = vmatprep.mubr.bf16.mxu0 0
        %1626 = vmatmul.mubr.bf16.gmra.mrb[0].mxu0 %v1495
        %v1627 = vpop.f32.mrb[0].mxu0
        %v1628 = vadd.f32 0.0, %v1627
        %v1629 = vpop.f32.mrb[0].mxu0
        %v1630 = vpop.f32.mrb[0].mxu0
        %v1631 = vadd.f32 0.0, %v1630
        %v1632 = vpop.f32.mrb[0].mxu0
        %1633 = vdwg.mxu0
        %v1634 = vadd.f32 %v1376, %v1532
        %v1635 = vadd.f32 %v1377, %v1535
        %v1636 = vadd.f32 %v1378, %v1540
        %v1637 = vadd.f32 %v1379, %v1543
        %v1638 = vadd.f32 %v1380, %v1548
        %v1639 = vadd.f32 %v1381, %v1551
        %v1640 = vadd.f32 %v1382, %v1556
        %v1641 = vadd.f32 %v1383, %v1559
        %v1642 = vadd.f32 %v1384, %v1564
        %v1643 = vadd.f32 %v1385, %v1567
        %v1644 = vadd.f32 %v1386, %v1572
        %v1645 = vadd.f32 %v1387, %v1575
        %v1646 = vadd.f32 %v1388, %v1580
        %v1647 = vadd.f32 %v1389, %v1583
        %v1648 = vadd.f32 %v1390, %v1588
        %v1649 = vadd.f32 %v1391, %v1591
        %v1650 = vadd.f32 %v1392, %v1596
        %v1651 = vadd.f32 %v1393, %v1599
        %v1652 = vadd.f32 %v1394, %v1604
        %v1653 = vadd.f32 %v1395, %v1607
        %v1654 = vadd.f32 %v1396, %v1612
        %v1655 = vadd.f32 %v1397, %v1615
        %v1656 = vadd.f32 %v1398, %v1620
        %v1657 = vadd.f32 %v1399, %v1623
        %v1658 = vadd.f32 %v1400, %v1628
        %v1659 = vadd.f32 %v1401, %v1631
        %v1660 = vld [vmem:[#allocation2 + $0x11] sm:$0xff]
        %v1661 = vld [vmem:[#allocation2 + $0x19] sm:$0xff]
        %v1662 = vld [vmem:[#allocation2 + $0x21] sm:$0xff]
        %v1663 = vld [vmem:[#allocation2 + $0x29] sm:$0xff]
        %v1664 = vld [vmem:[#allocation2 + $0x31] sm:$0xff]
        %v1665 = vld [vmem:[#allocation2 + $0x39] sm:$0xff]
        %v1666 = vld [vmem:[#allocation2 + $0x41] sm:$0xff]
        %v1667 = vld [vmem:[#allocation2 + $0x49] sm:$0xff]
        %v1668 = vld [vmem:[#allocation2 + $0x51] sm:$0xff]
        %v1669 = vld [vmem:[#allocation2 + $0x59] sm:$0xff]
        %v1670 = vld [vmem:[#allocation2 + $0x61] sm:$0xff]
        %v1671 = vld [vmem:[#allocation2 + $0x69] sm:$0xff]
        %v1672 = vld [vmem:[#allocation2 + $0x71] sm:$0xff]
        %v1673 = vld [vmem:[#allocation2 + $0x79] sm:$0xff]
        %v1674 = vld [vmem:[#allocation2 + $0x81] sm:$0xff]
        %v1675 = vld [vmem:[#allocation2 + $0x89] sm:$0xff]
        %v1676 = vld [vmem:[#allocation2 + $0x91] sm:$0xff]
        %v1677 = vld [vmem:[#allocation2 + $0x99] sm:$0xff]
        %v1678 = vld [vmem:[#allocation2 + $0xa1] sm:$0xff]
        %v1679 = vld [vmem:[#allocation2 + $0xa9] sm:$0xff]
        %v1680 = vld [vmem:[#allocation2 + $0xb1] sm:$0xff]
        %v1681 = vld [vmem:[#allocation2 + $0xb9] sm:$0xff]
        %v1682 = vld [vmem:[#allocation2 + $0xc1] sm:$0xff]
        %v1683 = vld [vmem:[#allocation2 + $0xc9] sm:$0xff]
        %v1684 = vld [vmem:[#allocation2 + $0xd1] sm:$0xff]
        %v1685 = vld [vmem:[#allocation2 + $0xd9] sm:$0xff]
        %v1686 = vpack.c.bf16 %v1661, %v1660
        %v1687 = vpack.c.bf16 %v1663, %v1662
        %v1688 = vpack.c.bf16 %v1665, %v1664
        %v1689 = vpack.c.bf16 %v1667, %v1666
        %v1690 = vpack.c.bf16 %v1669, %v1668
        %v1691 = vpack.c.bf16 %v1671, %v1670
        %v1692 = vpack.c.bf16 %v1673, %v1672
        %v1693 = vpack.c.bf16 %v1675, %v1674
        %v1694 = vpack.c.bf16 %v1677, %v1676
        %v1695 = vpack.c.bf16 %v1679, %v1678
        %v1696 = vpack.c.bf16 %v1681, %v1680
        %v1697 = vpack.c.bf16 %v1683, %v1682
        %v1698 = vpack.c.bf16 %v1685, %v1684
        %s1699 = scalar_lea.vmem %s3, 64
        %v1700 = vld [vmem:[%s1699] sm:$0xf]
        %v1701 = vld [vmem:[%s1699 + $0x4] sm:$0xf]
        %v1702 = vld [vmem:[%s1699 + $0x8] sm:$0xf]
        %v1703 = vld [vmem:[%s1699 + $0xc] sm:$0xf]
        %v1708 = vunpack.c.l.b16 %v1700
        %v1709 = vunpack.c.l.b16 %v1701
        %v1710 = vunpack.c.l.b16 %v1702
        %v1711 = vunpack.c.l.b16 %v1703
        %v1712 = vpack.c.b16 %v1709, %v1708
        %v1713 = vpack.c.b16 %v1711, %v1710
        %v1717 = vsel %vm410, %v1686, 0
        %v1720 = vsel %vm410, %v1687, 0
        %v1723 = vsel %vm410, %v1688, 0
        %v1726 = vsel %vm410, %v1689, 0
        %v1729 = vsel %vm410, %v1690, 0
        %v1732 = vsel %vm410, %v1691, 0
        %v1735 = vsel %vm410, %v1692, 0
        %v1738 = vsel %vm410, %v1693, 0
        %v1741 = vsel %vm410, %v1694, 0
        %v1744 = vsel %vm410, %v1695, 0
        %v1747 = vsel %vm410, %v1696, 0
        %v1750 = vsel %vm410, %v1697, 0
        %v1753 = vsel %vm410, %v1698, 0
        %1755 = vmatprep.subr.bf16.mxu0 0
        %1756 = vmatpush1.bf16.msra.mxu0 %v1712
        %1757 = vmatprep.subr.bf16.mxu0 0
        %1758 = vmatpush1.bf16.msra.mxu0 %v1713
        %1759 = vmatprep.subr.bf16.mxu0 0
        %1760 = vmatpush1.bf16.msra.mxu0 0
        %1761 = vmatprep.subr.bf16.mxu0 0
        %1762 = vmatpush1.bf16.msra.mxu0 0
        %1763 = vmatprep.subr.bf16.mxu0 0
        %1764 = vmatpush1.bf16.msra.mxu0 0
        %1765 = vmatprep.subr.bf16.mxu0 0
        %1766 = vmatpush1.bf16.msra.mxu0 0
        %1767 = vmatprep.subr.bf16.mxu0 0
        %1768 = vmatpush1.bf16.msra.mxu0 0
        %1769 = vmatprep.subr.bf16.mxu0 0
        %1770 = vmatpush1.bf16.msra.mxu0 0
        %1771 = vmatprep.subr.bf16.mxu0 0
        %1772 = vmatpush1.bf16.msra.mxu0 0
        %1773 = vmatprep.subr.bf16.mxu0 0
        %1774 = vmatpush1.bf16.msra.mxu0 0
        %1775 = vmatprep.subr.bf16.mxu0 0
        %1776 = vmatpush1.bf16.msra.mxu0 0
        %1777 = vmatprep.subr.bf16.mxu0 0
        %1778 = vmatpush1.bf16.msra.mxu0 0
        %1779 = vmatprep.subr.bf16.mxu0 0
        %1780 = vmatpush1.bf16.msra.mxu0 0
        %1781 = vmatprep.subr.bf16.mxu0 0
        %1782 = vmatpush1.bf16.msra.mxu0 0
        %1783 = vmatprep.subr.bf16.mxu0 0
        %1784 = vmatpush1.bf16.msra.mxu0 0
        %1785 = vmatprep.subr.bf16.mxu0 0
        %1786 = vmatpush1.bf16.msra.mxu0 0
        %1787 = vmatprep.mubr.bf16.mxu0 0
        %1788 = vmatmul.mubr.bf16.gmra.mrb[0].mxu0 %v1717
        %v1789 = vpop.f32.mrb[0].mxu0
        %v1790 = vadd.f32 0.0, %v1789
        %v1791 = vpop.f32.mrb[0].mxu0
        %v1792 = vpop.f32.mrb[0].mxu0
        %v1793 = vadd.f32 0.0, %v1792
        %v1794 = vpop.f32.mrb[0].mxu0
        %1795 = vmatprep.mubr.bf16.mxu0 0
        %1796 = vmatmul.mubr.bf16.gmra.mrb[0].mxu0 %v1720
        %v1797 = vpop.f32.mrb[0].mxu0
        %v1798 = vadd.f32 0.0, %v1797
        %v1799 = vpop.f32.mrb[0].mxu0
        %v1800 = vpop.f32.mrb[0].mxu0
        %v1801 = vadd.f32 0.0, %v1800
        %v1802 = vpop.f32.mrb[0].mxu0
        %1803 = vmatprep.mubr.bf16.mxu0 0
        %1804 = vmatmul.mubr.bf16.gmra.mrb[0].mxu0 %v1723
        %v1805 = vpop.f32.mrb[0].mxu0
        %v1806 = vadd.f32 0.0, %v1805
        %v1807 = vpop.f32.mrb[0].mxu0
        %v1808 = vpop.f32.mrb[0].mxu0
        %v1809 = vadd.f32 0.0, %v1808
        %v1810 = vpop.f32.mrb[0].mxu0
        %1811 = vmatprep.mubr.bf16.mxu0 0
        %1812 = vmatmul.mubr.bf16.gmra.mrb[0].mxu0 %v1726
        %v1813 = vpop.f32.mrb[0].mxu0
        %v1814 = vadd.f32 0.0, %v1813
        %v1815 = vpop.f32.mrb[0].mxu0
        %v1816 = vpop.f32.mrb[0].mxu0
        %v1817 = vadd.f32 0.0, %v1816
        %v1818 = vpop.f32.mrb[0].mxu0
        %1819 = vmatprep.mubr.bf16.mxu0 0
        %1820 = vmatmul.mubr.bf16.gmra.mrb[0].mxu0 %v1729
        %v1821 = vpop.f32.mrb[0].mxu0
        %v1822 = vadd.f32 0.0, %v1821
        %v1823 = vpop.f32.mrb[0].mxu0
        %v1824 = vpop.f32.mrb[0].mxu0
        %v1825 = vadd.f32 0.0, %v1824
        %v1826 = vpop.f32.mrb[0].mxu0
        %1827 = vmatprep.mubr.bf16.mxu0 0
        %1828 = vmatmul.mubr.bf16.gmra.mrb[0].mxu0 %v1732
        %v1829 = vpop.f32.mrb[0].mxu0
        %v1830 = vadd.f32 0.0, %v1829
        %v1831 = vpop.f32.mrb[0].mxu0
        %v1832 = vpop.f32.mrb[0].mxu0
        %v1833 = vadd.f32 0.0, %v1832
        %v1834 = vpop.f32.mrb[0].mxu0
        %1835 = vmatprep.mubr.bf16.mxu0 0
        %1836 = vmatmul.mubr.bf16.gmra.mrb[0].mxu0 %v1735
        %v1837 = vpop.f32.mrb[0].mxu0
        %v1838 = vadd.f32 0.0, %v1837
        %v1839 = vpop.f32.mrb[0].mxu0
        %v1840 = vpop.f32.mrb[0].mxu0
        %v1841 = vadd.f32 0.0, %v1840
        %v1842 = vpop.f32.mrb[0].mxu0
        %1843 = vmatprep.mubr.bf16.mxu0 0
        %1844 = vmatmul.mubr.bf16.gmra.mrb[0].mxu0 %v1738
        %v1845 = vpop.f32.mrb[0].mxu0
        %v1846 = vadd.f32 0.0, %v1845
        %v1847 = vpop.f32.mrb[0].mxu0
        %v1848 = vpop.f32.mrb[0].mxu0
        %v1849 = vadd.f32 0.0, %v1848
        %v1850 = vpop.f32.mrb[0].mxu0
        %1851 = vmatprep.mubr.bf16.mxu0 0
        %1852 = vmatmul.mubr.bf16.gmra.mrb[0].mxu0 %v1741
        %v1853 = vpop.f32.mrb[0].mxu0
        %v1854 = vadd.f32 0.0, %v1853
        %v1855 = vpop.f32.mrb[0].mxu0
        %v1856 = vpop.f32.mrb[0].mxu0
        %v1857 = vadd.f32 0.0, %v1856
        %v1858 = vpop.f32.mrb[0].mxu0
        %1859 = vmatprep.mubr.bf16.mxu0 0
        %1860 = vmatmul.mubr.bf16.gmra.mrb[0].mxu0 %v1744
        %v1861 = vpop.f32.mrb[0].mxu0
        %v1862 = vadd.f32 0.0, %v1861
        %v1863 = vpop.f32.mrb[0].mxu0
        %v1864 = vpop.f32.mrb[0].mxu0
        %v1865 = vadd.f32 0.0, %v1864
        %v1866 = vpop.f32.mrb[0].mxu0
        %1867 = vmatprep.mubr.bf16.mxu0 0
        %1868 = vmatmul.mubr.bf16.gmra.mrb[0].mxu0 %v1747
        %v1869 = vpop.f32.mrb[0].mxu0
        %v1870 = vadd.f32 0.0, %v1869
        %v1871 = vpop.f32.mrb[0].mxu0
        %v1872 = vpop.f32.mrb[0].mxu0
        %v1873 = vadd.f32 0.0, %v1872
        %v1874 = vpop.f32.mrb[0].mxu0
        %1875 = vmatprep.mubr.bf16.mxu0 0
        %1876 = vmatmul.mubr.bf16.gmra.mrb[0].mxu0 %v1750
        %v1877 = vpop.f32.mrb[0].mxu0
        %v1878 = vadd.f32 0.0, %v1877
        %v1879 = vpop.f32.mrb[0].mxu0
        %v1880 = vpop.f32.mrb[0].mxu0
        %v1881 = vadd.f32 0.0, %v1880
        %v1882 = vpop.f32.mrb[0].mxu0
        %1883 = vmatprep.mubr.bf16.mxu0 0
        %1884 = vmatmul.mubr.bf16.gmra.mrb[0].mxu0 %v1753
        %v1885 = vpop.f32.mrb[0].mxu0
        %v1886 = vadd.f32 0.0, %v1885
        %v1887 = vpop.f32.mrb[0].mxu0
        %v1888 = vpop.f32.mrb[0].mxu0
        %v1889 = vadd.f32 0.0, %v1888
        %v1890 = vpop.f32.mrb[0].mxu0
        %1891 = vdwg.mxu0
        %v1892 = vadd.f32 %v1634, %v1790
        %v1893 = vadd.f32 %v1635, %v1793
        %v1894 = vadd.f32 %v1636, %v1798
        %v1895 = vadd.f32 %v1637, %v1801
        %v1896 = vadd.f32 %v1638, %v1806
        %v1897 = vadd.f32 %v1639, %v1809
        %v1898 = vadd.f32 %v1640, %v1814
        %v1899 = vadd.f32 %v1641, %v1817
        %v1900 = vadd.f32 %v1642, %v1822
        %v1901 = vadd.f32 %v1643, %v1825
        %v1902 = vadd.f32 %v1644, %v1830
        %v1903 = vadd.f32 %v1645, %v1833
        %v1904 = vadd.f32 %v1646, %v1838
        %v1905 = vadd.f32 %v1647, %v1841
        %v1906 = vadd.f32 %v1648, %v1846
        %v1907 = vadd.f32 %v1649, %v1849
        %v1908 = vadd.f32 %v1650, %v1854
        %v1909 = vadd.f32 %v1651, %v1857
        %v1910 = vadd.f32 %v1652, %v1862
        %v1911 = vadd.f32 %v1653, %v1865
        %v1912 = vadd.f32 %v1654, %v1870
        %v1913 = vadd.f32 %v1655, %v1873
        %v1914 = vadd.f32 %v1656, %v1878
        %v1915 = vadd.f32 %v1657, %v1881
        %v1916 = vadd.f32 %v1658, %v1886
        %v1917 = vadd.f32 %v1659, %v1889
        %v1918 = vld [vmem:[#allocation2 + $0x12] sm:$0xff]
        %v1919 = vld [vmem:[#allocation2 + $0x1a] sm:$0xff]
        %v1920 = vld [vmem:[#allocation2 + $0x22] sm:$0xff]
        %v1921 = vld [vmem:[#allocation2 + $0x2a] sm:$0xff]
        %v1922 = vld [vmem:[#allocation2 + $0x32] sm:$0xff]
        %v1923 = vld [vmem:[#allocation2 + $0x3a] sm:$0xff]
        %v1924 = vld [vmem:[#allocation2 + $0x42] sm:$0xff]
        %v1925 = vld [vmem:[#allocation2 + $0x4a] sm:$0xff]
        %v1926 = vld [vmem:[#allocation2 + $0x52] sm:$0xff]
        %v1927 = vld [vmem:[#allocation2 + $0x5a] sm:$0xff]
        %v1928 = vld [vmem:[#allocation2 + $0x62] sm:$0xff]
        %v1929 = vld [vmem:[#allocation2 + $0x6a] sm:$0xff]
        %v1930 = vld [vmem:[#allocation2 + $0x72] sm:$0xff]
        %v1931 = vld [vmem:[#allocation2 + $0x7a] sm:$0xff]
        %v1932 = vld [vmem:[#allocation2 + $0x82] sm:$0xff]
        %v1933 = vld [vmem:[#allocation2 + $0x8a] sm:$0xff]
        %v1934 = vld [vmem:[#allocation2 + $0x92] sm:$0xff]
        %v1935 = vld [vmem:[#allocation2 + $0x9a] sm:$0xff]
        %v1936 = vld [vmem:[#allocation2 + $0xa2] sm:$0xff]
        %v1937 = vld [vmem:[#allocation2 + $0xaa] sm:$0xff]
        %v1938 = vld [vmem:[#allocation2 + $0xb2] sm:$0xff]
        %v1939 = vld [vmem:[#allocation2 + $0xba] sm:$0xff]
        %v1940 = vld [vmem:[#allocation2 + $0xc2] sm:$0xff]
        %v1941 = vld [vmem:[#allocation2 + $0xca] sm:$0xff]
        %v1942 = vld [vmem:[#allocation2 + $0xd2] sm:$0xff]
        %v1943 = vld [vmem:[#allocation2 + $0xda] sm:$0xff]
        %v1944 = vpack.c.bf16 %v1919, %v1918
        %v1945 = vpack.c.bf16 %v1921, %v1920
        %v1946 = vpack.c.bf16 %v1923, %v1922
        %v1947 = vpack.c.bf16 %v1925, %v1924
        %v1948 = vpack.c.bf16 %v1927, %v1926
        %v1949 = vpack.c.bf16 %v1929, %v1928
        %v1950 = vpack.c.bf16 %v1931, %v1930
        %v1951 = vpack.c.bf16 %v1933, %v1932
        %v1952 = vpack.c.bf16 %v1935, %v1934
        %v1953 = vpack.c.bf16 %v1937, %v1936
        %v1954 = vpack.c.bf16 %v1939, %v1938
        %v1955 = vpack.c.bf16 %v1941, %v1940
        %v1956 = vpack.c.bf16 %v1943, %v1942
        %s1957 = scalar_lea.vmem %s3, 80
        %v1958 = vld [vmem:[%s1957] sm:$0xf]
        %v1959 = vld [vmem:[%s1957 + $0x4] sm:$0xf]
        %v1960 = vld [vmem:[%s1957 + $0x8] sm:$0xf]
        %v1961 = vld [vmem:[%s1957 + $0xc] sm:$0xf]
        %v1966 = vunpack.c.l.b16 %v1958
        %v1967 = vunpack.c.l.b16 %v1959
        %v1968 = vunpack.c.l.b16 %v1960
        %v1969 = vunpack.c.l.b16 %v1961
        %v1970 = vpack.c.b16 %v1967, %v1966
        %v1971 = vpack.c.b16 %v1969, %v1968
        %v1975 = vsel %vm410, %v1944, 0
        %v1978 = vsel %vm410, %v1945, 0
        %v1981 = vsel %vm410, %v1946, 0
        %v1984 = vsel %vm410, %v1947, 0
        %v1987 = vsel %vm410, %v1948, 0
        %v1990 = vsel %vm410, %v1949, 0
        %v1993 = vsel %vm410, %v1950, 0
        %v1996 = vsel %vm410, %v1951, 0
        %v1999 = vsel %vm410, %v1952, 0
        %v2002 = vsel %vm410, %v1953, 0
        %v2005 = vsel %vm410, %v1954, 0
        %v2008 = vsel %vm410, %v1955, 0
        %v2011 = vsel %vm410, %v1956, 0
        %2013 = vmatprep.subr.bf16.mxu0 0
        %2014 = vmatpush1.bf16.msra.mxu0 %v1970
        %2015 = vmatprep.subr.bf16.mxu0 0
        %2016 = vmatpush1.bf16.msra.mxu0 %v1971
        %2017 = vmatprep.subr.bf16.mxu0 0
        %2018 = vmatpush1.bf16.msra.mxu0 0
        %2019 = vmatprep.subr.bf16.mxu0 0
        %2020 = vmatpush1.bf16.msra.mxu0 0
        %2021 = vmatprep.subr.bf16.mxu0 0
        %2022 = vmatpush1.bf16.msra.mxu0 0
        %2023 = vmatprep.subr.bf16.mxu0 0
        %2024 = vmatpush1.bf16.msra.mxu0 0
        %2025 = vmatprep.subr.bf16.mxu0 0
        %2026 = vmatpush1.bf16.msra.mxu0 0
        %2027 = vmatprep.subr.bf16.mxu0 0
        %2028 = vmatpush1.bf16.msra.mxu0 0
        %2029 = vmatprep.subr.bf16.mxu0 0
        %2030 = vmatpush1.bf16.msra.mxu0 0
        %2031 = vmatprep.subr.bf16.mxu0 0
        %2032 = vmatpush1.bf16.msra.mxu0 0
        %2033 = vmatprep.subr.bf16.mxu0 0
        %2034 = vmatpush1.bf16.msra.mxu0 0
        %2035 = vmatprep.subr.bf16.mxu0 0
        %2036 = vmatpush1.bf16.msra.mxu0 0
        %2037 = vmatprep.subr.bf16.mxu0 0
        %2038 = vmatpush1.bf16.msra.mxu0 0
        %2039 = vmatprep.subr.bf16.mxu0 0
        %2040 = vmatpush1.bf16.msra.mxu0 0
        %2041 = vmatprep.subr.bf16.mxu0 0
        %2042 = vmatpush1.bf16.msra.mxu0 0
        %2043 = vmatprep.subr.bf16.mxu0 0
        %2044 = vmatpush1.bf16.msra.mxu0 0
        %2045 = vmatprep.mubr.bf16.mxu0 0
        %2046 = vmatmul.mubr.bf16.gmra.mrb[0].mxu0 %v1975
        %v2047 = vpop.f32.mrb[0].mxu0
        %v2048 = vadd.f32 0.0, %v2047
        %v2049 = vpop.f32.mrb[0].mxu0
        %v2050 = vpop.f32.mrb[0].mxu0
        %v2051 = vadd.f32 0.0, %v2050
        %v2052 = vpop.f32.mrb[0].mxu0
        %2053 = vmatprep.mubr.bf16.mxu0 0
        %2054 = vmatmul.mubr.bf16.gmra.mrb[0].mxu0 %v1978
        %v2055 = vpop.f32.mrb[0].mxu0
        %v2056 = vadd.f32 0.0, %v2055
        %v2057 = vpop.f32.mrb[0].mxu0
        %v2058 = vpop.f32.mrb[0].mxu0
        %v2059 = vadd.f32 0.0, %v2058
        %v2060 = vpop.f32.mrb[0].mxu0
        %2061 = vmatprep.mubr.bf16.mxu0 0
        %2062 = vmatmul.mubr.bf16.gmra.mrb[0].mxu0 %v1981
        %v2063 = vpop.f32.mrb[0].mxu0
        %v2064 = vadd.f32 0.0, %v2063
        %v2065 = vpop.f32.mrb[0].mxu0
        %v2066 = vpop.f32.mrb[0].mxu0
        %v2067 = vadd.f32 0.0, %v2066
        %v2068 = vpop.f32.mrb[0].mxu0
        %2069 = vmatprep.mubr.bf16.mxu0 0
        %2070 = vmatmul.mubr.bf16.gmra.mrb[0].mxu0 %v1984
        %v2071 = vpop.f32.mrb[0].mxu0
        %v2072 = vadd.f32 0.0, %v2071
        %v2073 = vpop.f32.mrb[0].mxu0
        %v2074 = vpop.f32.mrb[0].mxu0
        %v2075 = vadd.f32 0.0, %v2074
        %v2076 = vpop.f32.mrb[0].mxu0
        %2077 = vmatprep.mubr.bf16.mxu0 0
        %2078 = vmatmul.mubr.bf16.gmra.mrb[0].mxu0 %v1987
        %v2079 = vpop.f32.mrb[0].mxu0
        %v2080 = vadd.f32 0.0, %v2079
        %v2081 = vpop.f32.mrb[0].mxu0
        %v2082 = vpop.f32.mrb[0].mxu0
        %v2083 = vadd.f32 0.0, %v2082
        %v2084 = vpop.f32.mrb[0].mxu0
        %2085 = vmatprep.mubr.bf16.mxu0 0
        %2086 = vmatmul.mubr.bf16.gmra.mrb[0].mxu0 %v1990
        %v2087 = vpop.f32.mrb[0].mxu0
        %v2088 = vadd.f32 0.0, %v2087
        %v2089 = vpop.f32.mrb[0].mxu0
        %v2090 = vpop.f32.mrb[0].mxu0
        %v2091 = vadd.f32 0.0, %v2090
        %v2092 = vpop.f32.mrb[0].mxu0
        %2093 = vmatprep.mubr.bf16.mxu0 0
        %2094 = vmatmul.mubr.bf16.gmra.mrb[0].mxu0 %v1993
        %v2095 = vpop.f32.mrb[0].mxu0
        %v2096 = vadd.f32 0.0, %v2095
        %v2097 = vpop.f32.mrb[0].mxu0
        %v2098 = vpop.f32.mrb[0].mxu0
        %v2099 = vadd.f32 0.0, %v2098
        %v2100 = vpop.f32.mrb[0].mxu0
        %2101 = vmatprep.mubr.bf16.mxu0 0
        %2102 = vmatmul.mubr.bf16.gmra.mrb[0].mxu0 %v1996
        %v2103 = vpop.f32.mrb[0].mxu0
        %v2104 = vadd.f32 0.0, %v2103
        %v2105 = vpop.f32.mrb[0].mxu0
        %v2106 = vpop.f32.mrb[0].mxu0
        %v2107 = vadd.f32 0.0, %v2106
        %v2108 = vpop.f32.mrb[0].mxu0
        %2109 = vmatprep.mubr.bf16.mxu0 0
        %2110 = vmatmul.mubr.bf16.gmra.mrb[0].mxu0 %v1999
        %v2111 = vpop.f32.mrb[0].mxu0
        %v2112 = vadd.f32 0.0, %v2111
        %v2113 = vpop.f32.mrb[0].mxu0
        %v2114 = vpop.f32.mrb[0].mxu0
        %v2115 = vadd.f32 0.0, %v2114
        %v2116 = vpop.f32.mrb[0].mxu0
        %2117 = vmatprep.mubr.bf16.mxu0 0
        %2118 = vmatmul.mubr.bf16.gmra.mrb[0].mxu0 %v2002
        %v2119 = vpop.f32.mrb[0].mxu0
        %v2120 = vadd.f32 0.0, %v2119
        %v2121 = vpop.f32.mrb[0].mxu0
        %v2122 = vpop.f32.mrb[0].mxu0
        %v2123 = vadd.f32 0.0, %v2122
        %v2124 = vpop.f32.mrb[0].mxu0
        %2125 = vmatprep.mubr.bf16.mxu0 0
        %2126 = vmatmul.mubr.bf16.gmra.mrb[0].mxu0 %v2005
        %v2127 = vpop.f32.mrb[0].mxu0
        %v2128 = vadd.f32 0.0, %v2127
        %v2129 = vpop.f32.mrb[0].mxu0
        %v2130 = vpop.f32.mrb[0].mxu0
        %v2131 = vadd.f32 0.0, %v2130
        %v2132 = vpop.f32.mrb[0].mxu0
        %2133 = vmatprep.mubr.bf16.mxu0 0
        %2134 = vmatmul.mubr.bf16.gmra.mrb[0].mxu0 %v2008
        %v2135 = vpop.f32.mrb[0].mxu0
        %v2136 = vadd.f32 0.0, %v2135
        %v2137 = vpop.f32.mrb[0].mxu0
        %v2138 = vpop.f32.mrb[0].mxu0
        %v2139 = vadd.f32 0.0, %v2138
        %v2140 = vpop.f32.mrb[0].mxu0
        %2141 = vmatprep.mubr.bf16.mxu0 0
        %2142 = vmatmul.mubr.bf16.gmra.mrb[0].mxu0 %v2011
        %v2143 = vpop.f32.mrb[0].mxu0
        %v2144 = vadd.f32 0.0, %v2143
        %v2145 = vpop.f32.mrb[0].mxu0
        %v2146 = vpop.f32.mrb[0].mxu0
        %v2147 = vadd.f32 0.0, %v2146
        %v2148 = vpop.f32.mrb[0].mxu0
        %2149 = vdwg.mxu0
        %v2150 = vadd.f32 %v1892, %v2048
        %v2151 = vadd.f32 %v1893, %v2051
        %v2152 = vadd.f32 %v1894, %v2056
        %v2153 = vadd.f32 %v1895, %v2059
        %v2154 = vadd.f32 %v1896, %v2064
        %v2155 = vadd.f32 %v1897, %v2067
        %v2156 = vadd.f32 %v1898, %v2072
        %v2157 = vadd.f32 %v1899, %v2075
        %v2158 = vadd.f32 %v1900, %v2080
        %v2159 = vadd.f32 %v1901, %v2083
        %v2160 = vadd.f32 %v1902, %v2088
        %v2161 = vadd.f32 %v1903, %v2091
        %v2162 = vadd.f32 %v1904, %v2096
        %v2163 = vadd.f32 %v1905, %v2099
        %v2164 = vadd.f32 %v1906, %v2104
        %v2165 = vadd.f32 %v1907, %v2107
        %v2166 = vadd.f32 %v1908, %v2112
        %v2167 = vadd.f32 %v1909, %v2115
        %v2168 = vadd.f32 %v1910, %v2120
        %v2169 = vadd.f32 %v1911, %v2123
        %v2170 = vadd.f32 %v1912, %v2128
        %v2171 = vadd.f32 %v1913, %v2131
        %v2172 = vadd.f32 %v1914, %v2136
        %v2173 = vadd.f32 %v1915, %v2139
        %v2174 = vadd.f32 %v1916, %v2144
        %v2175 = vadd.f32 %v1917, %v2147
        %v2176 = vld [vmem:[#allocation2 + $0x20] sm:$0xff]
        %v2177 = vld [vmem:[#allocation2 + $0x28] sm:$0xff]
        %v2178 = vld [vmem:[#allocation2 + $0x30] sm:$0xff]
        %v2179 = vld [vmem:[#allocation2 + $0x38] sm:$0xff]
        %v2180 = vld [vmem:[#allocation2 + $0x40] sm:$0xff]
        %v2181 = vld [vmem:[#allocation2 + $0x48] sm:$0xff]
        %v2182 = vld [vmem:[#allocation2 + $0x50] sm:$0xff]
        %v2183 = vld [vmem:[#allocation2 + $0x58] sm:$0xff]
        %v2184 = vld [vmem:[#allocation2 + $0x60] sm:$0xff]
        %v2185 = vld [vmem:[#allocation2 + $0x68] sm:$0xff]
        %v2186 = vld [vmem:[#allocation2 + $0x70] sm:$0xff]
        %v2187 = vld [vmem:[#allocation2 + $0x78] sm:$0xff]
        %v2188 = vld [vmem:[#allocation2 + $0x80] sm:$0xff]
        %v2189 = vld [vmem:[#allocation2 + $0x88] sm:$0xff]
        %v2190 = vld [vmem:[#allocation2 + $0x90] sm:$0xff]
        %v2191 = vld [vmem:[#allocation2 + $0x98] sm:$0xff]
        %v2192 = vld [vmem:[#allocation2 + $0xa0] sm:$0xff]
        %v2193 = vld [vmem:[#allocation2 + $0xa8] sm:$0xff]
        %v2194 = vld [vmem:[#allocation2 + $0xb0] sm:$0xff]
        %v2195 = vld [vmem:[#allocation2 + $0xb8] sm:$0xff]
        %v2196 = vld [vmem:[#allocation2 + $0xc0] sm:$0xff]
        %v2197 = vld [vmem:[#allocation2 + $0xc8] sm:$0xff]
        %v2198 = vld [vmem:[#allocation2 + $0xd0] sm:$0xff]
        %v2199 = vld [vmem:[#allocation2 + $0xd8] sm:$0xff]
        %v2200 = vld [vmem:[#allocation2 + $0xe0] sm:$0xff]
        %v2201 = vld [vmem:[#allocation2 + $0xe8] sm:$0xff]
        %v2202 = vpack.c.bf16 %v2177, %v2176
        %v2203 = vpack.c.bf16 %v2179, %v2178
        %v2204 = vpack.c.bf16 %v2181, %v2180
        %v2205 = vpack.c.bf16 %v2183, %v2182
        %v2206 = vpack.c.bf16 %v2185, %v2184
        %v2207 = vpack.c.bf16 %v2187, %v2186
        %v2208 = vpack.c.bf16 %v2189, %v2188
        %v2209 = vpack.c.bf16 %v2191, %v2190
        %v2210 = vpack.c.bf16 %v2193, %v2192
        %v2211 = vpack.c.bf16 %v2195, %v2194
        %v2212 = vpack.c.bf16 %v2197, %v2196
        %v2213 = vpack.c.bf16 %v2199, %v2198
        %v2214 = vpack.c.bf16 %v2201, %v2200
        %s2215 = scalar_lea.vmem %s3, 96
        %v2216 = vld [vmem:[%s2215] sm:$0xf]
        %v2217 = vld [vmem:[%s2215 + $0x4] sm:$0xf]
        %v2218 = vld [vmem:[%s2215 + $0x8] sm:$0xf]
        %v2219 = vld [vmem:[%s2215 + $0xc] sm:$0xf]
        %v2224 = vunpack.c.l.b16 %v2216
        %v2225 = vunpack.c.l.b16 %v2217
        %v2226 = vunpack.c.l.b16 %v2218
        %v2227 = vunpack.c.l.b16 %v2219
        %v2228 = vpack.c.b16 %v2225, %v2224
        %v2229 = vpack.c.b16 %v2227, %v2226
        %v2233 = vsel %vm410, %v2202, 0
        %v2236 = vsel %vm410, %v2203, 0
        %v2239 = vsel %vm410, %v2204, 0
        %v2242 = vsel %vm410, %v2205, 0
        %v2245 = vsel %vm410, %v2206, 0
        %v2248 = vsel %vm410, %v2207, 0
        %v2251 = vsel %vm410, %v2208, 0
        %v2254 = vsel %vm410, %v2209, 0
        %v2257 = vsel %vm410, %v2210, 0
        %v2260 = vsel %vm410, %v2211, 0
        %v2263 = vsel %vm410, %v2212, 0
        %v2266 = vsel %vm410, %v2213, 0
        %v2269 = vsel %vm410, %v2214, 0
        %2271 = vmatprep.subr.bf16.mxu0 0
        %2272 = vmatpush1.bf16.msra.mxu0 %v2228
        %2273 = vmatprep.subr.bf16.mxu0 0
        %2274 = vmatpush1.bf16.msra.mxu0 %v2229
        %2275 = vmatprep.subr.bf16.mxu0 0
        %2276 = vmatpush1.bf16.msra.mxu0 0
        %2277 = vmatprep.subr.bf16.mxu0 0
        %2278 = vmatpush1.bf16.msra.mxu0 0
        %2279 = vmatprep.subr.bf16.mxu0 0
        %2280 = vmatpush1.bf16.msra.mxu0 0
        %2281 = vmatprep.subr.bf16.mxu0 0
        %2282 = vmatpush1.bf16.msra.mxu0 0
        %2283 = vmatprep.subr.bf16.mxu0 0
        %2284 = vmatpush1.bf16.msra.mxu0 0
        %2285 = vmatprep.subr.bf16.mxu0 0
        %2286 = vmatpush1.bf16.msra.mxu0 0
        %2287 = vmatprep.subr.bf16.mxu0 0
        %2288 = vmatpush1.bf16.msra.mxu0 0
        %2289 = vmatprep.subr.bf16.mxu0 0
        %2290 = vmatpush1.bf16.msra.mxu0 0
        %2291 = vmatprep.subr.bf16.mxu0 0
        %2292 = vmatpush1.bf16.msra.mxu0 0
        %2293 = vmatprep.subr.bf16.mxu0 0
        %2294 = vmatpush1.bf16.msra.mxu0 0
        %2295 = vmatprep.subr.bf16.mxu0 0
        %2296 = vmatpush1.bf16.msra.mxu0 0
        %2297 = vmatprep.subr.bf16.mxu0 0
        %2298 = vmatpush1.bf16.msra.mxu0 0
        %2299 = vmatprep.subr.bf16.mxu0 0
        %2300 = vmatpush1.bf16.msra.mxu0 0
        %2301 = vmatprep.subr.bf16.mxu0 0
        %2302 = vmatpush1.bf16.msra.mxu0 0
        %2303 = vmatprep.mubr.bf16.mxu0 0
        %2304 = vmatmul.mubr.bf16.gmra.mrb[0].mxu0 %v2233
        %v2305 = vpop.f32.mrb[0].mxu0
        %v2306 = vadd.f32 0.0, %v2305
        %v2307 = vpop.f32.mrb[0].mxu0
        %v2308 = vpop.f32.mrb[0].mxu0
        %v2309 = vadd.f32 0.0, %v2308
        %v2310 = vpop.f32.mrb[0].mxu0
        %2311 = vmatprep.mubr.bf16.mxu0 0
        %2312 = vmatmul.mubr.bf16.gmra.mrb[0].mxu0 %v2236
        %v2313 = vpop.f32.mrb[0].mxu0
        %v2314 = vadd.f32 0.0, %v2313
        %v2315 = vpop.f32.mrb[0].mxu0
        %v2316 = vpop.f32.mrb[0].mxu0
        %v2317 = vadd.f32 0.0, %v2316
        %v2318 = vpop.f32.mrb[0].mxu0
        %2319 = vmatprep.mubr.bf16.mxu0 0
        %2320 = vmatmul.mubr.bf16.gmra.mrb[0].mxu0 %v2239
        %v2321 = vpop.f32.mrb[0].mxu0
        %v2322 = vadd.f32 0.0, %v2321
        %v2323 = vpop.f32.mrb[0].mxu0
        %v2324 = vpop.f32.mrb[0].mxu0
        %v2325 = vadd.f32 0.0, %v2324
        %v2326 = vpop.f32.mrb[0].mxu0
        %2327 = vmatprep.mubr.bf16.mxu0 0
        %2328 = vmatmul.mubr.bf16.gmra.mrb[0].mxu0 %v2242
        %v2329 = vpop.f32.mrb[0].mxu0
        %v2330 = vadd.f32 0.0, %v2329
        %v2331 = vpop.f32.mrb[0].mxu0
        %v2332 = vpop.f32.mrb[0].mxu0
        %v2333 = vadd.f32 0.0, %v2332
        %v2334 = vpop.f32.mrb[0].mxu0
        %2335 = vmatprep.mubr.bf16.mxu0 0
        %2336 = vmatmul.mubr.bf16.gmra.mrb[0].mxu0 %v2245
        %v2337 = vpop.f32.mrb[0].mxu0
        %v2338 = vadd.f32 0.0, %v2337
        %v2339 = vpop.f32.mrb[0].mxu0
        %v2340 = vpop.f32.mrb[0].mxu0
        %v2341 = vadd.f32 0.0, %v2340
        %v2342 = vpop.f32.mrb[0].mxu0
        %2343 = vmatprep.mubr.bf16.mxu0 0
        %2344 = vmatmul.mubr.bf16.gmra.mrb[0].mxu0 %v2248
        %v2345 = vpop.f32.mrb[0].mxu0
        %v2346 = vadd.f32 0.0, %v2345
        %v2347 = vpop.f32.mrb[0].mxu0
        %v2348 = vpop.f32.mrb[0].mxu0
        %v2349 = vadd.f32 0.0, %v2348
        %v2350 = vpop.f32.mrb[0].mxu0
        %2351 = vmatprep.mubr.bf16.mxu0 0
        %2352 = vmatmul.mubr.bf16.gmra.mrb[0].mxu0 %v2251
        %v2353 = vpop.f32.mrb[0].mxu0
        %v2354 = vadd.f32 0.0, %v2353
        %v2355 = vpop.f32.mrb[0].mxu0
        %v2356 = vpop.f32.mrb[0].mxu0
        %v2357 = vadd.f32 0.0, %v2356
        %v2358 = vpop.f32.mrb[0].mxu0
        %2359 = vmatprep.mubr.bf16.mxu0 0
        %2360 = vmatmul.mubr.bf16.gmra.mrb[0].mxu0 %v2254
        %v2361 = vpop.f32.mrb[0].mxu0
        %v2362 = vadd.f32 0.0, %v2361
        %v2363 = vpop.f32.mrb[0].mxu0
        %v2364 = vpop.f32.mrb[0].mxu0
        %v2365 = vadd.f32 0.0, %v2364
        %v2366 = vpop.f32.mrb[0].mxu0
        %2367 = vmatprep.mubr.bf16.mxu0 0
        %2368 = vmatmul.mubr.bf16.gmra.mrb[0].mxu0 %v2257
        %v2369 = vpop.f32.mrb[0].mxu0
        %v2370 = vadd.f32 0.0, %v2369
        %v2371 = vpop.f32.mrb[0].mxu0
        %v2372 = vpop.f32.mrb[0].mxu0
        %v2373 = vadd.f32 0.0, %v2372
        %v2374 = vpop.f32.mrb[0].mxu0
        %2375 = vmatprep.mubr.bf16.mxu0 0
        %2376 = vmatmul.mubr.bf16.gmra.mrb[0].mxu0 %v2260
        %v2377 = vpop.f32.mrb[0].mxu0
        %v2378 = vadd.f32 0.0, %v2377
        %v2379 = vpop.f32.mrb[0].mxu0
        %v2380 = vpop.f32.mrb[0].mxu0
        %v2381 = vadd.f32 0.0, %v2380
        %v2382 = vpop.f32.mrb[0].mxu0
        %2383 = vmatprep.mubr.bf16.mxu0 0
        %2384 = vmatmul.mubr.bf16.gmra.mrb[0].mxu0 %v2263
        %v2385 = vpop.f32.mrb[0].mxu0
        %v2386 = vadd.f32 0.0, %v2385
        %v2387 = vpop.f32.mrb[0].mxu0
        %v2388 = vpop.f32.mrb[0].mxu0
        %v2389 = vadd.f32 0.0, %v2388
        %v2390 = vpop.f32.mrb[0].mxu0
        %2391 = vmatprep.mubr.bf16.mxu0 0
        %2392 = vmatmul.mubr.bf16.gmra.mrb[0].mxu0 %v2266
        %v2393 = vpop.f32.mrb[0].mxu0
        %v2394 = vadd.f32 0.0, %v2393
        %v2395 = vpop.f32.mrb[0].mxu0
        %v2396 = vpop.f32.mrb[0].mxu0
        %v2397 = vadd.f32 0.0, %v2396
        %v2398 = vpop.f32.mrb[0].mxu0
        %2399 = vmatprep.mubr.bf16.mxu0 0
        %2400 = vmatmul.mubr.bf16.gmra.mrb[0].mxu0 %v2269
        %v2401 = vpop.f32.mrb[0].mxu0
        %v2402 = vadd.f32 0.0, %v2401
        %v2403 = vpop.f32.mrb[0].mxu0
        %v2404 = vpop.f32.mrb[0].mxu0
        %v2405 = vadd.f32 0.0, %v2404
        %v2406 = vpop.f32.mrb[0].mxu0
        %2407 = vdwg.mxu0
        %v2408 = vadd.f32 %v2150, %v2306
        %v2409 = vadd.f32 %v2151, %v2309
        %v2410 = vadd.f32 %v2152, %v2314
        %v2411 = vadd.f32 %v2153, %v2317
        %v2412 = vadd.f32 %v2154, %v2322
        %v2413 = vadd.f32 %v2155, %v2325
        %v2414 = vadd.f32 %v2156, %v2330
        %v2415 = vadd.f32 %v2157, %v2333
        %v2416 = vadd.f32 %v2158, %v2338
        %v2417 = vadd.f32 %v2159, %v2341
        %v2418 = vadd.f32 %v2160, %v2346
        %v2419 = vadd.f32 %v2161, %v2349
        %v2420 = vadd.f32 %v2162, %v2354
        %v2421 = vadd.f32 %v2163, %v2357
        %v2422 = vadd.f32 %v2164, %v2362
        %v2423 = vadd.f32 %v2165, %v2365
        %v2424 = vadd.f32 %v2166, %v2370
        %v2425 = vadd.f32 %v2167, %v2373
        %v2426 = vadd.f32 %v2168, %v2378
        %v2427 = vadd.f32 %v2169, %v2381
        %v2428 = vadd.f32 %v2170, %v2386
        %v2429 = vadd.f32 %v2171, %v2389
        %v2430 = vadd.f32 %v2172, %v2394
        %v2431 = vadd.f32 %v2173, %v2397
        %v2432 = vadd.f32 %v2174, %v2402
        %v2433 = vadd.f32 %v2175, %v2405
        %v2434 = vld [vmem:[#allocation2 + $0x21] sm:$0xff]
        %v2435 = vld [vmem:[#allocation2 + $0x29] sm:$0xff]
        %v2436 = vld [vmem:[#allocation2 + $0x31] sm:$0xff]
        %v2437 = vld [vmem:[#allocation2 + $0x39] sm:$0xff]
        %v2438 = vld [vmem:[#allocation2 + $0x41] sm:$0xff]
        %v2439 = vld [vmem:[#allocation2 + $0x49] sm:$0xff]
        %v2440 = vld [vmem:[#allocation2 + $0x51] sm:$0xff]
        %v2441 = vld [vmem:[#allocation2 + $0x59] sm:$0xff]
        %v2442 = vld [vmem:[#allocation2 + $0x61] sm:$0xff]
        %v2443 = vld [vmem:[#allocation2 + $0x69] sm:$0xff]
        %v2444 = vld [vmem:[#allocation2 + $0x71] sm:$0xff]
        %v2445 = vld [vmem:[#allocation2 + $0x79] sm:$0xff]
        %v2446 = vld [vmem:[#allocation2 + $0x81] sm:$0xff]
        %v2447 = vld [vmem:[#allocation2 + $0x89] sm:$0xff]
        %v2448 = vld [vmem:[#allocation2 + $0x91] sm:$0xff]
        %v2449 = vld [vmem:[#allocation2 + $0x99] sm:$0xff]
        %v2450 = vld [vmem:[#allocation2 + $0xa1] sm:$0xff]
        %v2451 = vld [vmem:[#allocation2 + $0xa9] sm:$0xff]
        %v2452 = vld [vmem:[#allocation2 + $0xb1] sm:$0xff]
        %v2453 = vld [vmem:[#allocation2 + $0xb9] sm:$0xff]
        %v2454 = vld [vmem:[#allocation2 + $0xc1] sm:$0xff]
        %v2455 = vld [vmem:[#allocation2 + $0xc9] sm:$0xff]
        %v2456 = vld [vmem:[#allocation2 + $0xd1] sm:$0xff]
        %v2457 = vld [vmem:[#allocation2 + $0xd9] sm:$0xff]
        %v2458 = vld [vmem:[#allocation2 + $0xe1] sm:$0xff]
        %v2459 = vld [vmem:[#allocation2 + $0xe9] sm:$0xff]
        %v2460 = vpack.c.bf16 %v2435, %v2434
        %v2461 = vpack.c.bf16 %v2437, %v2436
        %v2462 = vpack.c.bf16 %v2439, %v2438
        %v2463 = vpack.c.bf16 %v2441, %v2440
        %v2464 = vpack.c.bf16 %v2443, %v2442
        %v2465 = vpack.c.bf16 %v2445, %v2444
        %v2466 = vpack.c.bf16 %v2447, %v2446
        %v2467 = vpack.c.bf16 %v2449, %v2448
        %v2468 = vpack.c.bf16 %v2451, %v2450
        %v2469 = vpack.c.bf16 %v2453, %v2452
        %v2470 = vpack.c.bf16 %v2455, %v2454
        %v2471 = vpack.c.bf16 %v2457, %v2456
        %v2472 = vpack.c.bf16 %v2459, %v2458
        %s2473 = scalar_lea.vmem %s3, 112
        %v2474 = vld [vmem:[%s2473] sm:$0xf]
        %v2475 = vld [vmem:[%s2473 + $0x4] sm:$0xf]
        %v2476 = vld [vmem:[%s2473 + $0x8] sm:$0xf]
        %v2477 = vld [vmem:[%s2473 + $0xc] sm:$0xf]
        %v2482 = vunpack.c.l.b16 %v2474
        %v2483 = vunpack.c.l.b16 %v2475
        %v2484 = vunpack.c.l.b16 %v2476
        %v2485 = vunpack.c.l.b16 %v2477
        %v2486 = vpack.c.b16 %v2483, %v2482
        %v2487 = vpack.c.b16 %v2485, %v2484
        %v2491 = vsel %vm410, %v2460, 0
        %v2494 = vsel %vm410, %v2461, 0
        %v2497 = vsel %vm410, %v2462, 0
        %v2500 = vsel %vm410, %v2463, 0
        %v2503 = vsel %vm410, %v2464, 0
        %v2506 = vsel %vm410, %v2465, 0
        %v2509 = vsel %vm410, %v2466, 0
        %v2512 = vsel %vm410, %v2467, 0
        %v2515 = vsel %vm410, %v2468, 0
        %v2518 = vsel %vm410, %v2469, 0
        %v2521 = vsel %vm410, %v2470, 0
        %v2524 = vsel %vm410, %v2471, 0
        %v2527 = vsel %vm410, %v2472, 0
        %2529 = vmatprep.subr.bf16.mxu0 0
        %2530 = vmatpush1.bf16.msra.mxu0 %v2486
        %2531 = vmatprep.subr.bf16.mxu0 0
        %2532 = vmatpush1.bf16.msra.mxu0 %v2487
        %2533 = vmatprep.subr.bf16.mxu0 0
        %2534 = vmatpush1.bf16.msra.mxu0 0
        %2535 = vmatprep.subr.bf16.mxu0 0
        %2536 = vmatpush1.bf16.msra.mxu0 0
        %2537 = vmatprep.subr.bf16.mxu0 0
        %2538 = vmatpush1.bf16.msra.mxu0 0
        %2539 = vmatprep.subr.bf16.mxu0 0
        %2540 = vmatpush1.bf16.msra.mxu0 0
        %2541 = vmatprep.subr.bf16.mxu0 0
        %2542 = vmatpush1.bf16.msra.mxu0 0
        %2543 = vmatprep.subr.bf16.mxu0 0
        %2544 = vmatpush1.bf16.msra.mxu0 0
        %2545 = vmatprep.subr.bf16.mxu0 0
        %2546 = vmatpush1.bf16.msra.mxu0 0
        %2547 = vmatprep.subr.bf16.mxu0 0
        %2548 = vmatpush1.bf16.msra.mxu0 0
        %2549 = vmatprep.subr.bf16.mxu0 0
        %2550 = vmatpush1.bf16.msra.mxu0 0
        %2551 = vmatprep.subr.bf16.mxu0 0
        %2552 = vmatpush1.bf16.msra.mxu0 0
        %2553 = vmatprep.subr.bf16.mxu0 0
        %2554 = vmatpush1.bf16.msra.mxu0 0
        %2555 = vmatprep.subr.bf16.mxu0 0
        %2556 = vmatpush1.bf16.msra.mxu0 0
        %2557 = vmatprep.subr.bf16.mxu0 0
        %2558 = vmatpush1.bf16.msra.mxu0 0
        %2559 = vmatprep.subr.bf16.mxu0 0
        %2560 = vmatpush1.bf16.msra.mxu0 0
        %2561 = vmatprep.mubr.bf16.mxu0 0
        %2562 = vmatmul.mubr.bf16.gmra.mrb[0].mxu0 %v2491
        %v2563 = vpop.f32.mrb[0].mxu0
        %v2564 = vadd.f32 0.0, %v2563
        %v2565 = vpop.f32.mrb[0].mxu0
        %v2566 = vpop.f32.mrb[0].mxu0
        %v2567 = vadd.f32 0.0, %v2566
        %v2568 = vpop.f32.mrb[0].mxu0
        %2569 = vmatprep.mubr.bf16.mxu0 0
        %2570 = vmatmul.mubr.bf16.gmra.mrb[0].mxu0 %v2494
        %v2571 = vpop.f32.mrb[0].mxu0
        %v2572 = vadd.f32 0.0, %v2571
        %v2573 = vpop.f32.mrb[0].mxu0
        %v2574 = vpop.f32.mrb[0].mxu0
        %v2575 = vadd.f32 0.0, %v2574
        %v2576 = vpop.f32.mrb[0].mxu0
        %2577 = vmatprep.mubr.bf16.mxu0 0
        %2578 = vmatmul.mubr.bf16.gmra.mrb[0].mxu0 %v2497
        %v2579 = vpop.f32.mrb[0].mxu0
        %v2580 = vadd.f32 0.0, %v2579
        %v2581 = vpop.f32.mrb[0].mxu0
        %v2582 = vpop.f32.mrb[0].mxu0
        %v2583 = vadd.f32 0.0, %v2582
        %v2584 = vpop.f32.mrb[0].mxu0
        %2585 = vmatprep.mubr.bf16.mxu0 0
        %2586 = vmatmul.mubr.bf16.gmra.mrb[0].mxu0 %v2500
        %v2587 = vpop.f32.mrb[0].mxu0
        %v2588 = vadd.f32 0.0, %v2587
        %v2589 = vpop.f32.mrb[0].mxu0
        %v2590 = vpop.f32.mrb[0].mxu0
        %v2591 = vadd.f32 0.0, %v2590
        %v2592 = vpop.f32.mrb[0].mxu0
        %2593 = vmatprep.mubr.bf16.mxu0 0
        %2594 = vmatmul.mubr.bf16.gmra.mrb[0].mxu0 %v2503
        %v2595 = vpop.f32.mrb[0].mxu0
        %v2596 = vadd.f32 0.0, %v2595
        %v2597 = vpop.f32.mrb[0].mxu0
        %v2598 = vpop.f32.mrb[0].mxu0
        %v2599 = vadd.f32 0.0, %v2598
        %v2600 = vpop.f32.mrb[0].mxu0
        %2601 = vmatprep.mubr.bf16.mxu0 0
        %2602 = vmatmul.mubr.bf16.gmra.mrb[0].mxu0 %v2506
        %v2603 = vpop.f32.mrb[0].mxu0
        %v2604 = vadd.f32 0.0, %v2603
        %v2605 = vpop.f32.mrb[0].mxu0
        %v2606 = vpop.f32.mrb[0].mxu0
        %v2607 = vadd.f32 0.0, %v2606
        %v2608 = vpop.f32.mrb[0].mxu0
        %2609 = vmatprep.mubr.bf16.mxu0 0
        %2610 = vmatmul.mubr.bf16.gmra.mrb[0].mxu0 %v2509
        %v2611 = vpop.f32.mrb[0].mxu0
        %v2612 = vadd.f32 0.0, %v2611
        %v2613 = vpop.f32.mrb[0].mxu0
        %v2614 = vpop.f32.mrb[0].mxu0
        %v2615 = vadd.f32 0.0, %v2614
        %v2616 = vpop.f32.mrb[0].mxu0
        %2617 = vmatprep.mubr.bf16.mxu0 0
        %2618 = vmatmul.mubr.bf16.gmra.mrb[0].mxu0 %v2512
        %v2619 = vpop.f32.mrb[0].mxu0
        %v2620 = vadd.f32 0.0, %v2619
        %v2621 = vpop.f32.mrb[0].mxu0
        %v2622 = vpop.f32.mrb[0].mxu0
        %v2623 = vadd.f32 0.0, %v2622
        %v2624 = vpop.f32.mrb[0].mxu0
        %2625 = vmatprep.mubr.bf16.mxu0 0
        %2626 = vmatmul.mubr.bf16.gmra.mrb[0].mxu0 %v2515
        %v2627 = vpop.f32.mrb[0].mxu0
        %v2628 = vadd.f32 0.0, %v2627
        %v2629 = vpop.f32.mrb[0].mxu0
        %v2630 = vpop.f32.mrb[0].mxu0
        %v2631 = vadd.f32 0.0, %v2630
        %v2632 = vpop.f32.mrb[0].mxu0
        %2633 = vmatprep.mubr.bf16.mxu0 0
        %2634 = vmatmul.mubr.bf16.gmra.mrb[0].mxu0 %v2518
        %v2635 = vpop.f32.mrb[0].mxu0
        %v2636 = vadd.f32 0.0, %v2635
        %v2637 = vpop.f32.mrb[0].mxu0
        %v2638 = vpop.f32.mrb[0].mxu0
        %v2639 = vadd.f32 0.0, %v2638
        %v2640 = vpop.f32.mrb[0].mxu0
        %2641 = vmatprep.mubr.bf16.mxu0 0
        %2642 = vmatmul.mubr.bf16.gmra.mrb[0].mxu0 %v2521
        %v2643 = vpop.f32.mrb[0].mxu0
        %v2644 = vadd.f32 0.0, %v2643
        %v2645 = vpop.f32.mrb[0].mxu0
        %v2646 = vpop.f32.mrb[0].mxu0
        %v2647 = vadd.f32 0.0, %v2646
        %v2648 = vpop.f32.mrb[0].mxu0
        %2649 = vmatprep.mubr.bf16.mxu0 0
        %2650 = vmatmul.mubr.bf16.gmra.mrb[0].mxu0 %v2524
        %v2651 = vpop.f32.mrb[0].mxu0
        %v2652 = vadd.f32 0.0, %v2651
        %v2653 = vpop.f32.mrb[0].mxu0
        %v2654 = vpop.f32.mrb[0].mxu0
        %v2655 = vadd.f32 0.0, %v2654
        %v2656 = vpop.f32.mrb[0].mxu0
        %2657 = vmatprep.mubr.bf16.mxu0 0
        %2658 = vmatmul.mubr.bf16.gmra.mrb[0].mxu0 %v2527
        %v2659 = vpop.f32.mrb[0].mxu0
        %v2660 = vadd.f32 0.0, %v2659
        %v2661 = vpop.f32.mrb[0].mxu0
        %v2662 = vpop.f32.mrb[0].mxu0
        %v2663 = vadd.f32 0.0, %v2662
        %v2664 = vpop.f32.mrb[0].mxu0
        %2665 = vdwg.mxu0
        %v2666 = vadd.f32 %v2408, %v2564
        %v2667 = vadd.f32 %v2409, %v2567
        %v2668 = vadd.f32 %v2410, %v2572
        %v2669 = vadd.f32 %v2411, %v2575
        %v2670 = vadd.f32 %v2412, %v2580
        %v2671 = vadd.f32 %v2413, %v2583
        %v2672 = vadd.f32 %v2414, %v2588
        %v2673 = vadd.f32 %v2415, %v2591
        %v2674 = vadd.f32 %v2416, %v2596
        %v2675 = vadd.f32 %v2417, %v2599
        %v2676 = vadd.f32 %v2418, %v2604
        %v2677 = vadd.f32 %v2419, %v2607
        %v2678 = vadd.f32 %v2420, %v2612
        %v2679 = vadd.f32 %v2421, %v2615
        %v2680 = vadd.f32 %v2422, %v2620
        %v2681 = vadd.f32 %v2423, %v2623
        %v2682 = vadd.f32 %v2424, %v2628
        %v2683 = vadd.f32 %v2425, %v2631
        %v2684 = vadd.f32 %v2426, %v2636
        %v2685 = vadd.f32 %v2427, %v2639
        %v2686 = vadd.f32 %v2428, %v2644
        %v2687 = vadd.f32 %v2429, %v2647
        %v2688 = vadd.f32 %v2430, %v2652
        %v2689 = vadd.f32 %v2431, %v2655
        %v2690 = vadd.f32 %v2432, %v2660
        %v2691 = vadd.f32 %v2433, %v2663
        %v2692 = vld [vmem:[#allocation2 + $0x22] sm:$0xff]
        %v2693 = vld [vmem:[#allocation2 + $0x2a] sm:$0xff]
        %v2694 = vld [vmem:[#allocation2 + $0x32] sm:$0xff]
        %v2695 = vld [vmem:[#allocation2 + $0x3a] sm:$0xff]
        %v2696 = vld [vmem:[#allocation2 + $0x42] sm:$0xff]
        %v2697 = vld [vmem:[#allocation2 + $0x4a] sm:$0xff]
        %v2698 = vld [vmem:[#allocation2 + $0x52] sm:$0xff]
        %v2699 = vld [vmem:[#allocation2 + $0x5a] sm:$0xff]
        %v2700 = vld [vmem:[#allocation2 + $0x62] sm:$0xff]
        %v2701 = vld [vmem:[#allocation2 + $0x6a] sm:$0xff]
        %v2702 = vld [vmem:[#allocation2 + $0x72] sm:$0xff]
        %v2703 = vld [vmem:[#allocation2 + $0x7a] sm:$0xff]
        %v2704 = vld [vmem:[#allocation2 + $0x82] sm:$0xff]
        %v2705 = vld [vmem:[#allocation2 + $0x8a] sm:$0xff]
        %v2706 = vld [vmem:[#allocation2 + $0x92] sm:$0xff]
        %v2707 = vld [vmem:[#allocation2 + $0x9a] sm:$0xff]
        %v2708 = vld [vmem:[#allocation2 + $0xa2] sm:$0xff]
        %v2709 = vld [vmem:[#allocation2 + $0xaa] sm:$0xff]
        %v2710 = vld [vmem:[#allocation2 + $0xb2] sm:$0xff]
        %v2711 = vld [vmem:[#allocation2 + $0xba] sm:$0xff]
        %v2712 = vld [vmem:[#allocation2 + $0xc2] sm:$0xff]
        %v2713 = vld [vmem:[#allocation2 + $0xca] sm:$0xff]
        %v2714 = vld [vmem:[#allocation2 + $0xd2] sm:$0xff]
        %v2715 = vld [vmem:[#allocation2 + $0xda] sm:$0xff]
        %v2716 = vld [vmem:[#allocation2 + $0xe2] sm:$0xff]
        %v2717 = vld [vmem:[#allocation2 + $0xea] sm:$0xff]
        %v2718 = vpack.c.bf16 %v2693, %v2692
        %v2719 = vpack.c.bf16 %v2695, %v2694
        %v2720 = vpack.c.bf16 %v2697, %v2696
        %v2721 = vpack.c.bf16 %v2699, %v2698
        %v2722 = vpack.c.bf16 %v2701, %v2700
        %v2723 = vpack.c.bf16 %v2703, %v2702
        %v2724 = vpack.c.bf16 %v2705, %v2704
        %v2725 = vpack.c.bf16 %v2707, %v2706
        %v2726 = vpack.c.bf16 %v2709, %v2708
        %v2727 = vpack.c.bf16 %v2711, %v2710
        %v2728 = vpack.c.bf16 %v2713, %v2712
        %v2729 = vpack.c.bf16 %v2715, %v2714
        %v2730 = vpack.c.bf16 %v2717, %v2716
        %s2731 = scalar_lea.vmem %s3, 128
        %v2732 = vld [vmem:[%s2731] sm:$0xf]
        %v2733 = vld [vmem:[%s2731 + $0x4] sm:$0xf]
        %v2734 = vld [vmem:[%s2731 + $0x8] sm:$0xf]
        %v2735 = vld [vmem:[%s2731 + $0xc] sm:$0xf]
        %v2740 = vunpack.c.l.b16 %v2732
        %v2741 = vunpack.c.l.b16 %v2733
        %v2742 = vunpack.c.l.b16 %v2734
        %v2743 = vunpack.c.l.b16 %v2735
        %v2744 = vpack.c.b16 %v2741, %v2740
        %v2745 = vpack.c.b16 %v2743, %v2742
        %v2749 = vsel %vm410, %v2718, 0
        %v2752 = vsel %vm410, %v2719, 0
        %v2755 = vsel %vm410, %v2720, 0
        %v2758 = vsel %vm410, %v2721, 0
        %v2761 = vsel %vm410, %v2722, 0
        %v2764 = vsel %vm410, %v2723, 0
        %v2767 = vsel %vm410, %v2724, 0
        %v2770 = vsel %vm410, %v2725, 0
        %v2773 = vsel %vm410, %v2726, 0
        %v2776 = vsel %vm410, %v2727, 0
        %v2779 = vsel %vm410, %v2728, 0
        %v2782 = vsel %vm410, %v2729, 0
        %v2785 = vsel %vm410, %v2730, 0
        %2787 = vmatprep.subr.bf16.mxu0 0
        %2788 = vmatpush1.bf16.msra.mxu0 %v2744
        %2789 = vmatprep.subr.bf16.mxu0 0
        %2790 = vmatpush1.bf16.msra.mxu0 %v2745
        %2791 = vmatprep.subr.bf16.mxu0 0
        %2792 = vmatpush1.bf16.msra.mxu0 0
        %2793 = vmatprep.subr.bf16.mxu0 0
        %2794 = vmatpush1.bf16.msra.mxu0 0
        %2795 = vmatprep.subr.bf16.mxu0 0
        %2796 = vmatpush1.bf16.msra.mxu0 0
        %2797 = vmatprep.subr.bf16.mxu0 0
        %2798 = vmatpush1.bf16.msra.mxu0 0
        %2799 = vmatprep.subr.bf16.mxu0 0
        %2800 = vmatpush1.bf16.msra.mxu0 0
        %2801 = vmatprep.subr.bf16.mxu0 0
        %2802 = vmatpush1.bf16.msra.mxu0 0
        %2803 = vmatprep.subr.bf16.mxu0 0
        %2804 = vmatpush1.bf16.msra.mxu0 0
        %2805 = vmatprep.subr.bf16.mxu0 0
        %2806 = vmatpush1.bf16.msra.mxu0 0
        %2807 = vmatprep.subr.bf16.mxu0 0
        %2808 = vmatpush1.bf16.msra.mxu0 0
        %2809 = vmatprep.subr.bf16.mxu0 0
        %2810 = vmatpush1.bf16.msra.mxu0 0
        %2811 = vmatprep.subr.bf16.mxu0 0
        %2812 = vmatpush1.bf16.msra.mxu0 0
        %2813 = vmatprep.subr.bf16.mxu0 0
        %2814 = vmatpush1.bf16.msra.mxu0 0
        %2815 = vmatprep.subr.bf16.mxu0 0
        %2816 = vmatpush1.bf16.msra.mxu0 0
        %2817 = vmatprep.subr.bf16.mxu0 0
        %2818 = vmatpush1.bf16.msra.mxu0 0
        %2819 = vmatprep.mubr.bf16.mxu0 0
        %2820 = vmatmul.mubr.bf16.gmra.mrb[0].mxu0 %v2749
        %v2821 = vpop.f32.mrb[0].mxu0
        %v2822 = vadd.f32 0.0, %v2821
        %v2823 = vpop.f32.mrb[0].mxu0
        %v2824 = vpop.f32.mrb[0].mxu0
        %v2825 = vadd.f32 0.0, %v2824
        %v2826 = vpop.f32.mrb[0].mxu0
        %2827 = vmatprep.mubr.bf16.mxu0 0
        %2828 = vmatmul.mubr.bf16.gmra.mrb[0].mxu0 %v2752
        %v2829 = vpop.f32.mrb[0].mxu0
        %v2830 = vadd.f32 0.0, %v2829
        %v2831 = vpop.f32.mrb[0].mxu0
        %v2832 = vpop.f32.mrb[0].mxu0
        %v2833 = vadd.f32 0.0, %v2832
        %v2834 = vpop.f32.mrb[0].mxu0
        %2835 = vmatprep.mubr.bf16.mxu0 0
        %2836 = vmatmul.mubr.bf16.gmra.mrb[0].mxu0 %v2755
        %v2837 = vpop.f32.mrb[0].mxu0
        %v2838 = vadd.f32 0.0, %v2837
        %v2839 = vpop.f32.mrb[0].mxu0
        %v2840 = vpop.f32.mrb[0].mxu0
        %v2841 = vadd.f32 0.0, %v2840
        %v2842 = vpop.f32.mrb[0].mxu0
        %2843 = vmatprep.mubr.bf16.mxu0 0
        %2844 = vmatmul.mubr.bf16.gmra.mrb[0].mxu0 %v2758
        %v2845 = vpop.f32.mrb[0].mxu0
        %v2846 = vadd.f32 0.0, %v2845
        %v2847 = vpop.f32.mrb[0].mxu0
        %v2848 = vpop.f32.mrb[0].mxu0
        %v2849 = vadd.f32 0.0, %v2848
        %v2850 = vpop.f32.mrb[0].mxu0
        %2851 = vmatprep.mubr.bf16.mxu0 0
        %2852 = vmatmul.mubr.bf16.gmra.mrb[0].mxu0 %v2761
        %v2853 = vpop.f32.mrb[0].mxu0
        %v2854 = vadd.f32 0.0, %v2853
        %v2855 = vpop.f32.mrb[0].mxu0
        %v2856 = vpop.f32.mrb[0].mxu0
        %v2857 = vadd.f32 0.0, %v2856
        %v2858 = vpop.f32.mrb[0].mxu0
        %2859 = vmatprep.mubr.bf16.mxu0 0
        %2860 = vmatmul.mubr.bf16.gmra.mrb[0].mxu0 %v2764
        %v2861 = vpop.f32.mrb[0].mxu0
        %v2862 = vadd.f32 0.0, %v2861
        %v2863 = vpop.f32.mrb[0].mxu0
        %v2864 = vpop.f32.mrb[0].mxu0
        %v2865 = vadd.f32 0.0, %v2864
        %v2866 = vpop.f32.mrb[0].mxu0
        %2867 = vmatprep.mubr.bf16.mxu0 0
        %2868 = vmatmul.mubr.bf16.gmra.mrb[0].mxu0 %v2767
        %v2869 = vpop.f32.mrb[0].mxu0
        %v2870 = vadd.f32 0.0, %v2869
        %v2871 = vpop.f32.mrb[0].mxu0
        %v2872 = vpop.f32.mrb[0].mxu0
        %v2873 = vadd.f32 0.0, %v2872
        %v2874 = vpop.f32.mrb[0].mxu0
        %2875 = vmatprep.mubr.bf16.mxu0 0
        %2876 = vmatmul.mubr.bf16.gmra.mrb[0].mxu0 %v2770
        %v2877 = vpop.f32.mrb[0].mxu0
        %v2878 = vadd.f32 0.0, %v2877
        %v2879 = vpop.f32.mrb[0].mxu0
        %v2880 = vpop.f32.mrb[0].mxu0
        %v2881 = vadd.f32 0.0, %v2880
        %v2882 = vpop.f32.mrb[0].mxu0
        %2883 = vmatprep.mubr.bf16.mxu0 0
        %2884 = vmatmul.mubr.bf16.gmra.mrb[0].mxu0 %v2773
        %v2885 = vpop.f32.mrb[0].mxu0
        %v2886 = vadd.f32 0.0, %v2885
        %v2887 = vpop.f32.mrb[0].mxu0
        %v2888 = vpop.f32.mrb[0].mxu0
        %v2889 = vadd.f32 0.0, %v2888
        %v2890 = vpop.f32.mrb[0].mxu0
        %2891 = vmatprep.mubr.bf16.mxu0 0
        %2892 = vmatmul.mubr.bf16.gmra.mrb[0].mxu0 %v2776
        %v2893 = vpop.f32.mrb[0].mxu0
        %v2894 = vadd.f32 0.0, %v2893
        %v2895 = vpop.f32.mrb[0].mxu0
        %v2896 = vpop.f32.mrb[0].mxu0
        %v2897 = vadd.f32 0.0, %v2896
        %v2898 = vpop.f32.mrb[0].mxu0
        %2899 = vmatprep.mubr.bf16.mxu0 0
        %2900 = vmatmul.mubr.bf16.gmra.mrb[0].mxu0 %v2779
        %v2901 = vpop.f32.mrb[0].mxu0
        %v2902 = vadd.f32 0.0, %v2901
        %v2903 = vpop.f32.mrb[0].mxu0
        %v2904 = vpop.f32.mrb[0].mxu0
        %v2905 = vadd.f32 0.0, %v2904
        %v2906 = vpop.f32.mrb[0].mxu0
        %2907 = vmatprep.mubr.bf16.mxu0 0
        %2908 = vmatmul.mubr.bf16.gmra.mrb[0].mxu0 %v2782
        %v2909 = vpop.f32.mrb[0].mxu0
        %v2910 = vadd.f32 0.0, %v2909
        %v2911 = vpop.f32.mrb[0].mxu0
        %v2912 = vpop.f32.mrb[0].mxu0
        %v2913 = vadd.f32 0.0, %v2912
        %v2914 = vpop.f32.mrb[0].mxu0
        %2915 = vmatprep.mubr.bf16.mxu0 0
        %2916 = vmatmul.mubr.bf16.gmra.mrb[0].mxu0 %v2785
        %v2917 = vpop.f32.mrb[0].mxu0
        %v2918 = vadd.f32 0.0, %v2917
        %v2919 = vpop.f32.mrb[0].mxu0
        %v2920 = vpop.f32.mrb[0].mxu0
        %v2921 = vadd.f32 0.0, %v2920
        %v2922 = vpop.f32.mrb[0].mxu0
        %2923 = vdwg.mxu0
        %v2924 = vadd.f32 %v2666, %v2822
        %v2925 = vadd.f32 %v2667, %v2825
        %v2926 = vadd.f32 %v2668, %v2830
        %v2927 = vadd.f32 %v2669, %v2833
        %v2928 = vadd.f32 %v2670, %v2838
        %v2929 = vadd.f32 %v2671, %v2841
        %v2930 = vadd.f32 %v2672, %v2846
        %v2931 = vadd.f32 %v2673, %v2849
        %v2932 = vadd.f32 %v2674, %v2854
        %v2933 = vadd.f32 %v2675, %v2857
        %v2934 = vadd.f32 %v2676, %v2862
        %v2935 = vadd.f32 %v2677, %v2865
        %v2936 = vadd.f32 %v2678, %v2870
        %v2937 = vadd.f32 %v2679, %v2873
        %v2938 = vadd.f32 %v2680, %v2878
        %v2939 = vadd.f32 %v2681, %v2881
        %v2940 = vadd.f32 %v2682, %v2886
        %v2941 = vadd.f32 %v2683, %v2889
        %v2942 = vadd.f32 %v2684, %v2894
        %v2943 = vadd.f32 %v2685, %v2897
        %v2944 = vadd.f32 %v2686, %v2902
        %v2945 = vadd.f32 %v2687, %v2905
        %v2946 = vadd.f32 %v2688, %v2910
        %v2947 = vadd.f32 %v2689, %v2913
        %v2948 = vadd.f32 %v2690, %v2918
        %v2949 = vadd.f32 %v2691, %v2921
        %v2950 = vld [vmem:[%s4] sm:$0x1]
        %v2952 = vlaneseq
        %v2953 = vshrl.u32 %v2952, 7
        %v2954 = vsub.s32 0, %v2953
        %v2955 = vrot.slane %v2950, %v2954
        %v2957 = vadd.f32 %v2924, %v2955
        %v2958 = vadd.f32 %v2925, %v2955
        %v2959 = vadd.f32 %v2926, %v2955
        %v2960 = vadd.f32 %v2927, %v2955
        %v2961 = vadd.f32 %v2928, %v2955
        %v2962 = vadd.f32 %v2929, %v2955
        %v2963 = vadd.f32 %v2930, %v2955
        %v2964 = vadd.f32 %v2931, %v2955
        %v2965 = vadd.f32 %v2932, %v2955
        %v2966 = vadd.f32 %v2933, %v2955
        %v2967 = vadd.f32 %v2934, %v2955
        %v2968 = vadd.f32 %v2935, %v2955
        %v2969 = vadd.f32 %v2936, %v2955
        %v2970 = vadd.f32 %v2937, %v2955
        %v2971 = vadd.f32 %v2938, %v2955
        %v2972 = vadd.f32 %v2939, %v2955
        %v2973 = vadd.f32 %v2940, %v2955
        %v2974 = vadd.f32 %v2941, %v2955
        %v2975 = vadd.f32 %v2942, %v2955
        %v2976 = vadd.f32 %v2943, %v2955
        %v2977 = vadd.f32 %v2944, %v2955
        %v2978 = vadd.f32 %v2945, %v2955
        %v2979 = vadd.f32 %v2946, %v2955
        %v2980 = vadd.f32 %v2947, %v2955
        %v2981 = vadd.f32 %v2948, %v2955
        %v2982 = vadd.f32 %v2949, %v2955
        %vm2983 = vcmask 523264
        %2984 = vst.msk [vmem:[#allocation3] sm:$0xff] %vm2983, %v2957
        %2985 = vst.msk [vmem:[#allocation3 + $0x8] sm:$0xff] %vm2983, %v2958
        %2986 = vst.msk [vmem:[#allocation3 + $0x10] sm:$0xff] %vm2983, %v2959
        %2987 = vst.msk [vmem:[#allocation3 + $0x18] sm:$0xff] %vm2983, %v2960
        %2988 = vst.msk [vmem:[#allocation3 + $0x20] sm:$0xff] %vm2983, %v2961
        %2989 = vst.msk [vmem:[#allocation3 + $0x28] sm:$0xff] %vm2983, %v2962
        %2990 = vst.msk [vmem:[#allocation3 + $0x30] sm:$0xff] %vm2983, %v2963
        %2991 = vst.msk [vmem:[#allocation3 + $0x38] sm:$0xff] %vm2983, %v2964
        %2992 = vst.msk [vmem:[#allocation3 + $0x40] sm:$0xff] %vm2983, %v2965
        %2993 = vst.msk [vmem:[#allocation3 + $0x48] sm:$0xff] %vm2983, %v2966
        %2994 = vst.msk [vmem:[#allocation3 + $0x50] sm:$0xff] %vm2983, %v2967
        %2995 = vst.msk [vmem:[#allocation3 + $0x58] sm:$0xff] %vm2983, %v2968
        %2996 = vst.msk [vmem:[#allocation3 + $0x60] sm:$0xff] %vm2983, %v2969
        %2997 = vst.msk [vmem:[#allocation3 + $0x68] sm:$0xff] %vm2983, %v2970
        %2998 = vst.msk [vmem:[#allocation3 + $0x70] sm:$0xff] %vm2983, %v2971
        %2999 = vst.msk [vmem:[#allocation3 + $0x78] sm:$0xff] %vm2983, %v2972
        %3000 = vst.msk [vmem:[#allocation3 + $0x80] sm:$0xff] %vm2983, %v2973
        %3001 = vst.msk [vmem:[#allocation3 + $0x88] sm:$0xff] %vm2983, %v2974
        %3002 = vst.msk [vmem:[#allocation3 + $0x90] sm:$0xff] %vm2983, %v2975
        %3003 = vst.msk [vmem:[#allocation3 + $0x98] sm:$0xff] %vm2983, %v2976
        %3004 = vst.msk [vmem:[#allocation3 + $0xa0] sm:$0xff] %vm2983, %v2977
        %3005 = vst.msk [vmem:[#allocation3 + $0xa8] sm:$0xff] %vm2983, %v2978
        %3006 = vst.msk [vmem:[#allocation3 + $0xb0] sm:$0xff] %vm2983, %v2979
        %3007 = vst.msk [vmem:[#allocation3 + $0xb8] sm:$0xff] %vm2983, %v2980
        %3008 = vst.msk [vmem:[#allocation3 + $0xc0] sm:$0xff] %vm2983, %v2981
        %3009 = vst.msk [vmem:[#allocation3 + $0xc8] sm:$0xff] %vm2983, %v2982
        %v3010 = vld [vmem:[#allocation3] sm:$0xff]
        %v3011 = vld [vmem:[#allocation3 + $0x8] sm:$0xff]
        %v3012 = vld [vmem:[#allocation3 + $0x10] sm:$0xff]
        %v3013 = vld [vmem:[#allocation3 + $0x18] sm:$0xff]
        %v3014 = vld [vmem:[#allocation3 + $0x20] sm:$0xff]
        %v3015 = vld [vmem:[#allocation3 + $0x28] sm:$0xff]
        %v3016 = vld [vmem:[#allocation3 + $0x30] sm:$0xff]
        %v3017 = vld [vmem:[#allocation3 + $0x38] sm:$0xff]
        %v3018 = vld [vmem:[#allocation3 + $0x40] sm:$0xff]
        %v3019 = vld [vmem:[#allocation3 + $0x48] sm:$0xff]
        %v3020 = vld [vmem:[#allocation3 + $0x50] sm:$0xff]
        %v3021 = vld [vmem:[#allocation3 + $0x58] sm:$0xff]
        %v3022 = vld [vmem:[#allocation3 + $0x60] sm:$0xff]
        %v3023 = vld [vmem:[#allocation3 + $0x68] sm:$0xff]
        %v3024 = vld [vmem:[#allocation3 + $0x70] sm:$0xff]
        %v3025 = vld [vmem:[#allocation3 + $0x78] sm:$0xff]
        %v3026 = vld [vmem:[#allocation3 + $0x80] sm:$0xff]
        %v3027 = vld [vmem:[#allocation3 + $0x88] sm:$0xff]
        %v3028 = vld [vmem:[#allocation3 + $0x90] sm:$0xff]
        %v3029 = vld [vmem:[#allocation3 + $0x98] sm:$0xff]
        %v3030 = vld [vmem:[#allocation3 + $0xa0] sm:$0xff]
        %v3031 = vld [vmem:[#allocation3 + $0xa8] sm:$0xff]
        %v3032 = vld [vmem:[#allocation3 + $0xb0] sm:$0xff]
        %v3033 = vld [vmem:[#allocation3 + $0x1] sm:$0xff]
        %v3034 = vld [vmem:[#allocation3 + $0x9] sm:$0xff]
        %v3035 = vld [vmem:[#allocation3 + $0x11] sm:$0xff]
        %v3036 = vld [vmem:[#allocation3 + $0x19] sm:$0xff]
        %v3037 = vld [vmem:[#allocation3 + $0x21] sm:$0xff]
        %v3038 = vld [vmem:[#allocation3 + $0x29] sm:$0xff]
        %v3039 = vld [vmem:[#allocation3 + $0x31] sm:$0xff]
        %v3040 = vld [vmem:[#allocation3 + $0x39] sm:$0xff]
        %v3041 = vld [vmem:[#allocation3 + $0x41] sm:$0xff]
        %v3042 = vld [vmem:[#allocation3 + $0x49] sm:$0xff]
        %v3043 = vld [vmem:[#allocation3 + $0x51] sm:$0xff]
        %v3044 = vld [vmem:[#allocation3 + $0x59] sm:$0xff]
        %v3045 = vld [vmem:[#allocation3 + $0x61] sm:$0xff]
        %v3046 = vld [vmem:[#allocation3 + $0x69] sm:$0xff]
        %v3047 = vld [vmem:[#allocation3 + $0x71] sm:$0xff]
        %v3048 = vld [vmem:[#allocation3 + $0x79] sm:$0xff]
        %v3049 = vld [vmem:[#allocation3 + $0x81] sm:$0xff]
        %v3050 = vld [vmem:[#allocation3 + $0x89] sm:$0xff]
        %v3051 = vld [vmem:[#allocation3 + $0x91] sm:$0xff]
        %v3052 = vld [vmem:[#allocation3 + $0x99] sm:$0xff]
        %v3053 = vld [vmem:[#allocation3 + $0xa1] sm:$0xff]
        %v3054 = vld [vmem:[#allocation3 + $0xa9] sm:$0xff]
        %v3055 = vld [vmem:[#allocation3 + $0xb1] sm:$0xff]
        %v3056 = vmax.f32 %v3010, %v3033
        %v3057 = vmax.f32 %v3011, %v3034
        %v3058 = vmax.f32 %v3012, %v3035
        %v3059 = vmax.f32 %v3013, %v3036
        %v3060 = vmax.f32 %v3014, %v3037
        %v3061 = vmax.f32 %v3015, %v3038
        %v3062 = vmax.f32 %v3016, %v3039
        %v3063 = vmax.f32 %v3017, %v3040
        %v3064 = vmax.f32 %v3018, %v3041
        %v3065 = vmax.f32 %v3019, %v3042
        %v3066 = vmax.f32 %v3020, %v3043
        %v3067 = vmax.f32 %v3021, %v3044
        %v3068 = vmax.f32 %v3022, %v3045
        %v3069 = vmax.f32 %v3023, %v3046
        %v3070 = vmax.f32 %v3024, %v3047
        %v3071 = vmax.f32 %v3025, %v3048
        %v3072 = vmax.f32 %v3026, %v3049
        %v3073 = vmax.f32 %v3027, %v3050
        %v3074 = vmax.f32 %v3028, %v3051
        %v3075 = vmax.f32 %v3029, %v3052
        %v3076 = vmax.f32 %v3030, %v3053
        %v3077 = vmax.f32 %v3031, %v3054
        %v3078 = vmax.f32 %v3032, %v3055
        %v3079 = vld [vmem:[#allocation3 + $0xb8] sm:$0xff]
        %v3080 = vld [vmem:[#allocation3 + $0xc0] sm:$0xff]
        %v3081 = vld [vmem:[#allocation3 + $0xb9] sm:$0xff]
        %v3082 = vld [vmem:[#allocation3 + $0xc1] sm:$0xff]
        %v3083 = vmax.f32 %v3079, %v3081
        %v3084 = vmax.f32 %v3080, %v3082
        %v3085 = vmax.f32 %v3056, %v3058
        %v3086 = vmax.f32 %v3057, %v3059
        %v3087 = vmax.f32 %v3058, %v3060
        %v3088 = vmax.f32 %v3059, %v3061
        %v3089 = vmax.f32 %v3060, %v3062
        %v3090 = vmax.f32 %v3061, %v3063
        %v3091 = vmax.f32 %v3062, %v3064
        %v3092 = vmax.f32 %v3063, %v3065
        %v3093 = vmax.f32 %v3064, %v3066
        %v3094 = vmax.f32 %v3065, %v3067
        %v3095 = vmax.f32 %v3066, %v3068
        %v3096 = vmax.f32 %v3067, %v3069
        %v3097 = vmax.f32 %v3068, %v3070
        %v3098 = vmax.f32 %v3069, %v3071
        %v3099 = vmax.f32 %v3070, %v3072
        %v3100 = vmax.f32 %v3071, %v3073
        %v3101 = vmax.f32 %v3072, %v3074
        %v3102 = vmax.f32 %v3073, %v3075
        %v3103 = vmax.f32 %v3074, %v3076
        %v3104 = vmax.f32 %v3075, %v3077
        %v3105 = vmax.f32 %v3076, %v3078
        %v3106 = vmax.f32 %v3077, %v3083
        %v3107 = vmax.f32 %v3078, %v3084
        %v3108 = vmax.f32 %v3085, 0.0
        %v3109 = vmax.f32 %v3086, 0.0
        %v3110 = vmax.f32 %v3087, 0.0
        %v3111 = vmax.f32 %v3088, 0.0
        %v3112 = vmax.f32 %v3089, 0.0
        %v3113 = vmax.f32 %v3090, 0.0
        %v3114 = vmax.f32 %v3091, 0.0
        %v3115 = vmax.f32 %v3092, 0.0
        %v3116 = vmax.f32 %v3093, 0.0
        %v3117 = vmax.f32 %v3094, 0.0
        %v3118 = vmax.f32 %v3095, 0.0
        %v3119 = vmax.f32 %v3096, 0.0
        %v3120 = vmax.f32 %v3097, 0.0
        %v3121 = vmax.f32 %v3098, 0.0
        %v3122 = vmax.f32 %v3099, 0.0
        %v3123 = vmax.f32 %v3100, 0.0
        %v3124 = vmax.f32 %v3101, 0.0
        %v3125 = vmax.f32 %v3102, 0.0
        %v3126 = vmax.f32 %v3103, 0.0
        %v3127 = vmax.f32 %v3104, 0.0
        %v3128 = vmax.f32 %v3105, 0.0
        %v3129 = vmax.f32 %v3106, 0.0
        %v3130 = vmax.f32 %v3107, 0.0
        %v3131 = vpack.c.bf16 %v3109, %v3108
        %v3132 = vpack.c.bf16 %v3111, %v3110
        %v3133 = vpack.c.bf16 %v3113, %v3112
        %v3134 = vpack.c.bf16 %v3115, %v3114
        %v3135 = vpack.c.bf16 %v3117, %v3116
        %v3136 = vpack.c.bf16 %v3119, %v3118
        %v3137 = vpack.c.bf16 %v3121, %v3120
        %v3138 = vpack.c.bf16 %v3123, %v3122
        %v3139 = vpack.c.bf16 %v3125, %v3124
        %v3140 = vpack.c.bf16 %v3127, %v3126
        %v3141 = vpack.c.bf16 %v3129, %v3128
        %v3142 = vpack.c.bf16 %v3130, %v3130
        %v3155 = vunpack.c.l.b16 %v3131
        %v3156 = vunpack.c.h.b16 %v3131
        %v3157 = vunpack.c.l.b16 %v3132
        %v3158 = vunpack.c.h.b16 %v3132
        %v3159 = vunpack.c.l.b16 %v3133
        %v3160 = vunpack.c.h.b16 %v3133
        %v3161 = vunpack.c.l.b16 %v3134
        %v3162 = vunpack.c.h.b16 %v3134
        %v3163 = vunpack.c.l.b16 %v3135
        %v3164 = vunpack.c.h.b16 %v3135
        %v3165 = vunpack.c.l.b16 %v3136
        %v3166 = vunpack.c.h.b16 %v3136
        %v3167 = vunpack.c.l.b16 %v3137
        %v3168 = vunpack.c.h.b16 %v3137
        %v3169 = vunpack.c.l.b16 %v3138
        %v3170 = vunpack.c.h.b16 %v3138
        %v3171 = vunpack.c.l.b16 %v3139
        %v3172 = vunpack.c.h.b16 %v3139
        %v3173 = vunpack.c.l.b16 %v3140
        %v3174 = vunpack.c.h.b16 %v3140
        %v3175 = vunpack.c.l.b16 %v3141
        %v3176 = vunpack.c.h.b16 %v3141
        %v3177 = vunpack.c.l.b16 %v3142
        %v3178 = vpack.c.b16 %v3155, %v3155
        %v3179 = vpack.c.b16 %v3156, %v3156
        %v3180 = vpack.c.b16 %v3157, %v3157
        %v3181 = vpack.c.b16 %v3158, %v3158
        %v3182 = vpack.c.b16 %v3159, %v3159
        %v3183 = vpack.c.b16 %v3160, %v3160
        %v3184 = vpack.c.b16 %v3161, %v3161
        %v3185 = vpack.c.b16 %v3162, %v3162
        %v3186 = vpack.c.b16 %v3163, %v3163
        %v3187 = vpack.c.b16 %v3164, %v3164
        %v3188 = vpack.c.b16 %v3165, %v3165
        %v3189 = vpack.c.b16 %v3166, %v3166
        %v3190 = vpack.c.b16 %v3167, %v3167
        %v3191 = vpack.c.b16 %v3168, %v3168
        %v3192 = vpack.c.b16 %v3169, %v3169
        %v3193 = vpack.c.b16 %v3170, %v3170
        %v3194 = vpack.c.b16 %v3171, %v3171
        %v3195 = vpack.c.b16 %v3172, %v3172
        %v3196 = vpack.c.b16 %v3173, %v3173
        %v3197 = vpack.c.b16 %v3174, %v3174
        %v3198 = vpack.c.b16 %v3175, %v3175
        %v3199 = vpack.c.b16 %v3176, %v3176
        %v3200 = vpack.c.b16 %v3177, %v3177
        %vm3224 = vcmask 519168
        %3225 = vst.msk [vmem:[#allocation4] sm:$0xf] %vm3224, %v3178
        %3226 = vst.msk [vmem:[#allocation4 + $0x4] sm:$0xf] %vm3224, %v3179
        %3227 = vst.msk [vmem:[#allocation4 + $0x8] sm:$0xf] %vm3224, %v3180
        %3228 = vst.msk [vmem:[#allocation4 + $0xc] sm:$0xf] %vm3224, %v3181
        %3229 = vst.msk [vmem:[#allocation4 + $0x10] sm:$0xf] %vm3224, %v3182
        %3230 = vst.msk [vmem:[#allocation4 + $0x14] sm:$0xf] %vm3224, %v3183
        %3231 = vst.msk [vmem:[#allocation4 + $0x18] sm:$0xf] %vm3224, %v3184
        %3232 = vst.msk [vmem:[#allocation4 + $0x1c] sm:$0xf] %vm3224, %v3185
        %3233 = vst.msk [vmem:[#allocation4 + $0x20] sm:$0xf] %vm3224, %v3186
        %3234 = vst.msk [vmem:[#allocation4 + $0x24] sm:$0xf] %vm3224, %v3187
        %3235 = vst.msk [vmem:[#allocation4 + $0x28] sm:$0xf] %vm3224, %v3188
        %3236 = vst.msk [vmem:[#allocation4 + $0x2c] sm:$0xf] %vm3224, %v3189
        %3237 = vst.msk [vmem:[#allocation4 + $0x30] sm:$0xf] %vm3224, %v3190
        %3238 = vst.msk [vmem:[#allocation4 + $0x34] sm:$0xf] %vm3224, %v3191
        %3239 = vst.msk [vmem:[#allocation4 + $0x38] sm:$0xf] %vm3224, %v3192
        %3240 = vst.msk [vmem:[#allocation4 + $0x3c] sm:$0xf] %vm3224, %v3193
        %3241 = vst.msk [vmem:[#allocation4 + $0x40] sm:$0xf] %vm3224, %v3194
        %3242 = vst.msk [vmem:[#allocation4 + $0x44] sm:$0xf] %vm3224, %v3195
        %3243 = vst.msk [vmem:[#allocation4 + $0x48] sm:$0xf] %vm3224, %v3196
        %3244 = vst.msk [vmem:[#allocation4 + $0x4c] sm:$0xf] %vm3224, %v3197
        %3245 = vst.msk [vmem:[#allocation4 + $0x50] sm:$0xf] %vm3224, %v3198
        %3246 = vst.msk [vmem:[#allocation4 + $0x54] sm:$0xf] %vm3224, %v3199
        %3247 = vst.msk [vmem:[#allocation4 + $0x58] sm:$0xf] %vm3224, %v3200
        %v3248 = vld [vmem:[#allocation4] sm:$0xf]
        %v3249 = vld [vmem:[#allocation4 + $0x4] sm:$0xf]
        %v3250 = vld [vmem:[#allocation4 + $0x8] sm:$0xf]
        %v3251 = vld [vmem:[#allocation4 + $0xc] sm:$0xf]
        %v3252 = vld [vmem:[#allocation4 + $0x10] sm:$0xf]
        %v3253 = vld [vmem:[#allocation4 + $0x14] sm:$0xf]
        %v3254 = vld [vmem:[#allocation4 + $0x18] sm:$0xf]
        %v3255 = vld [vmem:[#allocation4 + $0x1c] sm:$0xf]
        %v3256 = vld [vmem:[#allocation4 + $0x20] sm:$0xf]
        %v3257 = vld [vmem:[#allocation4 + $0x24] sm:$0xf]
        %v3258 = vld [vmem:[#allocation4 + $0x28] sm:$0xf]
        %v3259 = vld [vmem:[#allocation4 + $0x2c] sm:$0xf]
        %v3260 = vld [vmem:[#allocation4 + $0x30] sm:$0xf]
        %v3261 = vld [vmem:[#allocation4 + $0x34] sm:$0xf]
        %v3262 = vld [vmem:[%s5] sm:$0xf]
        %v3263 = vld [vmem:[%s5 + $0x4] sm:$0xf]
        %v3264 = vld [vmem:[%s5 + $0x8] sm:$0xf]
        %v3265 = vld [vmem:[%s5 + $0xc] sm:$0xf]
        %v3266 = vld [vmem:[%s5 + $0x10] sm:$0xf]
        %v3267 = vld [vmem:[%s5 + $0x14] sm:$0xf]
        %v3268 = vld [vmem:[%s5 + $0x18] sm:$0xf]
        %v3269 = vld [vmem:[%s5 + $0x1c] sm:$0xf]
        %v3270 = vld [vmem:[#allocation4] sm:$0xe]
        %v3271 = vld [vmem:[#allocation4 + $0x38] sm:$0x1]
        %s3272 = scalar_lea.vmem %s5, 32
        %v3273 = vld [vmem:[%s3272] sm:$0xf]
        %v3274 = vld [vmem:[%s3272 + $0x4] sm:$0xf]
        %v3275 = vld [vmem:[%s3272 + $0x8] sm:$0xf]
        %v3276 = vld [vmem:[%s3272 + $0xc] sm:$0xf]
        %v3277 = vld [vmem:[%s3272 + $0x10] sm:$0xf]
        %v3278 = vld [vmem:[%s3272 + $0x14] sm:$0xf]
        %v3279 = vld [vmem:[%s3272 + $0x18] sm:$0xf]
        %v3280 = vld [vmem:[%s3272 + $0x1c] sm:$0xf]
        %v3296 = vunpack.c.l.b16 %v3270
        %v3297 = vunpack.c.l.b16 %v3249
        %v3298 = vunpack.c.l.b16 %v3250
        %v3299 = vunpack.c.l.b16 %v3251
        %v3300 = vunpack.c.l.b16 %v3252
        %v3301 = vunpack.c.l.b16 %v3253
        %v3302 = vunpack.c.l.b16 %v3254
        %v3303 = vunpack.c.l.b16 %v3255
        %v3304 = vunpack.c.l.b16 %v3256
        %v3305 = vunpack.c.l.b16 %v3257
        %v3306 = vunpack.c.l.b16 %v3258
        %v3307 = vunpack.c.l.b16 %v3259
        %v3308 = vunpack.c.l.b16 %v3260
        %v3309 = vunpack.c.l.b16 %v3261
        %v3310 = vunpack.c.l.b16 %v3271
        %v3311 = vpack.c.b16 %v3297, %v3296
        %v3312 = vpack.c.b16 %v3299, %v3298
        %v3313 = vpack.c.b16 %v3301, %v3300
        %v3314 = vpack.c.b16 %v3303, %v3302
        %v3315 = vpack.c.b16 %v3305, %v3304
        %v3316 = vpack.c.b16 %v3307, %v3306
        %v3317 = vpack.c.b16 %v3309, %v3308
        %v3318 = vpack.c.b16 %v3310, %v3310
        %vm3319 = vcmask 1046528
        %v3320 = vrot.slane %v3311, 1
        %v3321 = vrot.slane %v3312, 1
        %v3322 = vsel %vm3319, %v3320, %v3321
        %v3323 = vrot.slane %v3313, 1
        %v3324 = vsel %vm3319, %v3321, %v3323
        %v3325 = vrot.slane %v3314, 1
        %v3326 = vsel %vm3319, %v3323, %v3325
        %v3327 = vrot.slane %v3315, 1
        %v3328 = vsel %vm3319, %v3325, %v3327
        %v3329 = vrot.slane %v3316, 1
        %v3330 = vsel %vm3319, %v3327, %v3329
        %v3331 = vrot.slane %v3317, 1
        %v3332 = vsel %vm3319, %v3329, %v3331
        %v3333 = vrot.slane %v3318, 1
        %v3334 = vsel %vm3319, %v3331, %v3333
        %v3343 = vunpack.c.l.b16 %v3273
        %v3344 = vunpack.c.l.b16 %v3274
        %v3345 = vunpack.c.l.b16 %v3275
        %v3346 = vunpack.c.l.b16 %v3276
        %v3347 = vunpack.c.l.b16 %v3277
        %v3348 = vunpack.c.l.b16 %v3278
        %v3349 = vunpack.c.l.b16 %v3279
        %v3350 = vunpack.c.l.b16 %v3280
        %v3351 = vpack.c.b16 %v3344, %v3343
        %v3352 = vpack.c.b16 %v3346, %v3345
        %v3353 = vpack.c.b16 %v3348, %v3347
        %v3354 = vpack.c.b16 %v3350, %v3349
        %v3360 = vsel %vm2983, %v3322, 0
        %v3363 = vsel %vm2983, %v3324, 0
        %v3366 = vsel %vm2983, %v3326, 0
        %v3369 = vsel %vm2983, %v3328, 0
        %v3372 = vsel %vm2983, %v3330, 0
        %v3375 = vsel %vm2983, %v3332, 0
        %v3378 = vsel %vm2983, %v3334, 0
        %3380 = vmatprep.subr.bf16.mxu0 0
        %3381 = vmatpush1.bf16.msra.mxu0 %v3351
        %3382 = vmatprep.subr.bf16.mxu0 0
        %3383 = vmatpush1.bf16.msra.mxu0 %v3352
        %3384 = vmatprep.subr.bf16.mxu0 0
        %3385 = vmatpush1.bf16.msra.mxu0 %v3353
        %3386 = vmatprep.subr.bf16.mxu0 0
        %3387 = vmatpush1.bf16.msra.mxu0 %v3354
        %3388 = vmatprep.subr.bf16.mxu0 0
        %3389 = vmatpush1.bf16.msra.mxu0 0
        %3390 = vmatprep.subr.bf16.mxu0 0
        %3391 = vmatpush1.bf16.msra.mxu0 0
        %3392 = vmatprep.subr.bf16.mxu0 0
        %3393 = vmatpush1.bf16.msra.mxu0 0
        %3394 = vmatprep.subr.bf16.mxu0 0
        %3395 = vmatpush1.bf16.msra.mxu0 0
        %3396 = vmatprep.subr.bf16.mxu0 0
        %3397 = vmatpush1.bf16.msra.mxu0 0
        %3398 = vmatprep.subr.bf16.mxu0 0
        %3399 = vmatpush1.bf16.msra.mxu0 0
        %3400 = vmatprep.subr.bf16.mxu0 0
        %3401 = vmatpush1.bf16.msra.mxu0 0
        %3402 = vmatprep.subr.bf16.mxu0 0
        %3403 = vmatpush1.bf16.msra.mxu0 0
        %3404 = vmatprep.subr.bf16.mxu0 0
        %3405 = vmatpush1.bf16.msra.mxu0 0
        %3406 = vmatprep.subr.bf16.mxu0 0
        %3407 = vmatpush1.bf16.msra.mxu0 0
        %3408 = vmatprep.subr.bf16.mxu0 0
        %3409 = vmatpush1.bf16.msra.mxu0 0
        %3410 = vmatprep.subr.bf16.mxu0 0
        %3411 = vmatpush1.bf16.msra.mxu0 0
        %3412 = vmatprep.mubr.bf16.mxu0 0
        %3413 = vmatmul.mubr.bf16.gmra.mrb[0].mxu0 %v3360
        %v3414 = vpop.f32.mrb[0].mxu0
        %v3415 = vadd.f32 0.0, %v3414
        %v3416 = vpop.f32.mrb[0].mxu0
        %v3417 = vpop.f32.mrb[0].mxu0
        %v3418 = vadd.f32 0.0, %v3417
        %v3419 = vpop.f32.mrb[0].mxu0
        %3420 = vmatprep.mubr.bf16.mxu0 0
        %3421 = vmatmul.mubr.bf16.gmra.mrb[0].mxu0 %v3363
        %v3422 = vpop.f32.mrb[0].mxu0
        %v3423 = vadd.f32 0.0, %v3422
        %v3424 = vpop.f32.mrb[0].mxu0
        %v3425 = vpop.f32.mrb[0].mxu0
        %v3426 = vadd.f32 0.0, %v3425
        %v3427 = vpop.f32.mrb[0].mxu0
        %3428 = vmatprep.mubr.bf16.mxu0 0
        %3429 = vmatmul.mubr.bf16.gmra.mrb[0].mxu0 %v3366
        %v3430 = vpop.f32.mrb[0].mxu0
        %v3431 = vadd.f32 0.0, %v3430
        %v3432 = vpop.f32.mrb[0].mxu0
        %v3433 = vpop.f32.mrb[0].mxu0
        %v3434 = vadd.f32 0.0, %v3433
        %v3435 = vpop.f32.mrb[0].mxu0
        %3436 = vmatprep.mubr.bf16.mxu0 0
        %3437 = vmatmul.mubr.bf16.gmra.mrb[0].mxu0 %v3369
        %v3438 = vpop.f32.mrb[0].mxu0
        %v3439 = vadd.f32 0.0, %v3438
        %v3440 = vpop.f32.mrb[0].mxu0
        %v3441 = vpop.f32.mrb[0].mxu0
        %v3442 = vadd.f32 0.0, %v3441
        %v3443 = vpop.f32.mrb[0].mxu0
        %3444 = vmatprep.mubr.bf16.mxu0 0
        %3445 = vmatmul.mubr.bf16.gmra.mrb[0].mxu0 %v3372
        %v3446 = vpop.f32.mrb[0].mxu0
        %v3447 = vadd.f32 0.0, %v3446
        %v3448 = vpop.f32.mrb[0].mxu0
        %v3449 = vpop.f32.mrb[0].mxu0
        %v3450 = vadd.f32 0.0, %v3449
        %v3451 = vpop.f32.mrb[0].mxu0
        %3452 = vmatprep.mubr.bf16.mxu0 0
        %3453 = vmatmul.mubr.bf16.gmra.mrb[0].mxu0 %v3375
        %v3454 = vpop.f32.mrb[0].mxu0
        %v3455 = vadd.f32 0.0, %v3454
        %v3456 = vpop.f32.mrb[0].mxu0
        %v3457 = vpop.f32.mrb[0].mxu0
        %v3458 = vadd.f32 0.0, %v3457
        %v3459 = vpop.f32.mrb[0].mxu0
        %3460 = vmatprep.mubr.bf16.mxu0 0
        %3461 = vmatmul.mubr.bf16.gmra.mrb[0].mxu0 %v3378
        %v3462 = vpop.f32.mrb[0].mxu0
        %v3463 = vadd.f32 0.0, %v3462
        %v3464 = vpop.f32.mrb[0].mxu0
        %v3465 = vpop.f32.mrb[0].mxu0
        %v3466 = vadd.f32 0.0, %v3465
        %v3467 = vpop.f32.mrb[0].mxu0
        %3468 = vdwg.mxu0
        %v3470 = vunpack.c.l.b16 %v3248
        %v3471 = vpack.c.b16 %v3297, %v3470
        %v3480 = vunpack.c.l.b16 %v3262
        %v3481 = vunpack.c.l.b16 %v3263
        %v3482 = vunpack.c.l.b16 %v3264
        %v3483 = vunpack.c.l.b16 %v3265
        %v3484 = vunpack.c.l.b16 %v3266
        %v3485 = vunpack.c.l.b16 %v3267
        %v3486 = vunpack.c.l.b16 %v3268
        %v3487 = vunpack.c.l.b16 %v3269
        %v3488 = vpack.c.b16 %v3481, %v3480
        %v3489 = vpack.c.b16 %v3483, %v3482
        %v3490 = vpack.c.b16 %v3485, %v3484
        %v3491 = vpack.c.b16 %v3487, %v3486
        %v3497 = vsel %vm2983, %v3471, 0
        %v3500 = vsel %vm2983, %v3312, 0
        %v3503 = vsel %vm2983, %v3313, 0
        %v3506 = vsel %vm2983, %v3314, 0
        %v3509 = vsel %vm2983, %v3315, 0
        %v3512 = vsel %vm2983, %v3316, 0
        %v3515 = vsel %vm2983, %v3317, 0
        %3517 = vmatprep.subr.bf16.mxu0 0
        %3518 = vmatpush1.bf16.msra.mxu0 %v3488
        %3519 = vmatprep.subr.bf16.mxu0 0
        %3520 = vmatpush1.bf16.msra.mxu0 %v3489
        %3521 = vmatprep.subr.bf16.mxu0 0
        %3522 = vmatpush1.bf16.msra.mxu0 %v3490
        %3523 = vmatprep.subr.bf16.mxu0 0
        %3524 = vmatpush1.bf16.msra.mxu0 %v3491
        %3525 = vmatprep.subr.bf16.mxu0 0
        %3526 = vmatpush1.bf16.msra.mxu0 0
        %3527 = vmatprep.subr.bf16.mxu0 0
        %3528 = vmatpush1.bf16.msra.mxu0 0
        %3529 = vmatprep.subr.bf16.mxu0 0
        %3530 = vmatpush1.bf16.msra.mxu0 0
        %3531 = vmatprep.subr.bf16.mxu0 0
        %3532 = vmatpush1.bf16.msra.mxu0 0
        %3533 = vmatprep.subr.bf16.mxu0 0
        %3534 = vmatpush1.bf16.msra.mxu0 0
        %3535 = vmatprep.subr.bf16.mxu0 0
        %3536 = vmatpush1.bf16.msra.mxu0 0
        %3537 = vmatprep.subr.bf16.mxu0 0
        %3538 = vmatpush1.bf16.msra.mxu0 0
        %3539 = vmatprep.subr.bf16.mxu0 0
        %3540 = vmatpush1.bf16.msra.mxu0 0
        %3541 = vmatprep.subr.bf16.mxu0 0
        %3542 = vmatpush1.bf16.msra.mxu0 0
        %3543 = vmatprep.subr.bf16.mxu0 0
        %3544 = vmatpush1.bf16.msra.mxu0 0
        %3545 = vmatprep.subr.bf16.mxu0 0
        %3546 = vmatpush1.bf16.msra.mxu0 0
        %3547 = vmatprep.subr.bf16.mxu0 0
        %3548 = vmatpush1.bf16.msra.mxu0 0
        %3549 = vmatprep.mubr.bf16.mxu0 0
        %3550 = vmatmul.mubr.bf16.gmra.mrb[0].mxu0 %v3497
        %v3551 = vpop.f32.mrb[0].mxu0
        %v3552 = vadd.f32 %v3415, %v3551
        %v3553 = vpop.f32.mrb[0].mxu0
        %v3554 = vpop.f32.mrb[0].mxu0
        %v3555 = vadd.f32 %v3418, %v3554
        %v3556 = vpop.f32.mrb[0].mxu0
        %3557 = vmatprep.mubr.bf16.mxu0 0
        %3558 = vmatmul.mubr.bf16.gmra.mrb[0].mxu0 %v3500
        %v3559 = vpop.f32.mrb[0].mxu0
        %v3560 = vadd.f32 %v3423, %v3559
        %v3561 = vpop.f32.mrb[0].mxu0
        %v3562 = vpop.f32.mrb[0].mxu0
        %v3563 = vadd.f32 %v3426, %v3562
        %v3564 = vpop.f32.mrb[0].mxu0
        %3565 = vmatprep.mubr.bf16.mxu0 0
        %3566 = vmatmul.mubr.bf16.gmra.mrb[0].mxu0 %v3503
        %v3567 = vpop.f32.mrb[0].mxu0
        %v3568 = vadd.f32 %v3431, %v3567
        %v3569 = vpop.f32.mrb[0].mxu0
        %v3570 = vpop.f32.mrb[0].mxu0
        %v3571 = vadd.f32 %v3434, %v3570
        %v3572 = vpop.f32.mrb[0].mxu0
        %3573 = vmatprep.mubr.bf16.mxu0 0
        %3574 = vmatmul.mubr.bf16.gmra.mrb[0].mxu0 %v3506
        %v3575 = vpop.f32.mrb[0].mxu0
        %v3576 = vadd.f32 %v3439, %v3575
        %v3577 = vpop.f32.mrb[0].mxu0
        %v3578 = vpop.f32.mrb[0].mxu0
        %v3579 = vadd.f32 %v3442, %v3578
        %v3580 = vpop.f32.mrb[0].mxu0
        %3581 = vmatprep.mubr.bf16.mxu0 0
        %3582 = vmatmul.mubr.bf16.gmra.mrb[0].mxu0 %v3509
        %v3583 = vpop.f32.mrb[0].mxu0
        %v3584 = vadd.f32 %v3447, %v3583
        %v3585 = vpop.f32.mrb[0].mxu0
        %v3586 = vpop.f32.mrb[0].mxu0
        %v3587 = vadd.f32 %v3450, %v3586
        %v3588 = vpop.f32.mrb[0].mxu0
        %3589 = vmatprep.mubr.bf16.mxu0 0
        %3590 = vmatmul.mubr.bf16.gmra.mrb[0].mxu0 %v3512
        %v3591 = vpop.f32.mrb[0].mxu0
        %v3592 = vadd.f32 %v3455, %v3591
        %v3593 = vpop.f32.mrb[0].mxu0
        %v3594 = vpop.f32.mrb[0].mxu0
        %v3595 = vadd.f32 %v3458, %v3594
        %v3596 = vpop.f32.mrb[0].mxu0
        %3597 = vmatprep.mubr.bf16.mxu0 0
        %3598 = vmatmul.mubr.bf16.gmra.mrb[0].mxu0 %v3515
        %v3599 = vpop.f32.mrb[0].mxu0
        %v3600 = vadd.f32 %v3463, %v3599
        %v3601 = vpop.f32.mrb[0].mxu0
        %v3602 = vpop.f32.mrb[0].mxu0
        %v3603 = vadd.f32 %v3466, %v3602
        %v3604 = vpop.f32.mrb[0].mxu0
        %3605 = vdwg.mxu0
        %v3606 = vld [vmem:[#allocation4] sm:$0xc]
        %v3607 = vld [vmem:[#allocation4 + $0x38] sm:$0x3]
        %s3608 = scalar_lea.vmem %s5, 64
        %v3609 = vld [vmem:[%s3608] sm:$0xf]
        %v3610 = vld [vmem:[%s3608 + $0x4] sm:$0xf]
        %v3611 = vld [vmem:[%s3608 + $0x8] sm:$0xf]
        %v3612 = vld [vmem:[%s3608 + $0xc] sm:$0xf]
        %v3613 = vld [vmem:[%s3608 + $0x10] sm:$0xf]
        %v3614 = vld [vmem:[%s3608 + $0x14] sm:$0xf]
        %v3615 = vld [vmem:[%s3608 + $0x18] sm:$0xf]
        %v3616 = vld [vmem:[%s3608 + $0x1c] sm:$0xf]
        %v3619 = vunpack.c.l.b16 %v3606
        %v3620 = vunpack.c.l.b16 %v3607
        %v3621 = vpack.c.b16 %v3297, %v3619
        %v3622 = vpack.c.b16 %v3620, %v3620
        %vm3623 = vcmask 1045504
        %v3624 = vrot.slane %v3621, 2
        %v3625 = vrot.slane %v3312, 2
        %v3626 = vsel %vm3623, %v3624, %v3625
        %v3627 = vrot.slane %v3313, 2
        %v3628 = vsel %vm3623, %v3625, %v3627
        %v3629 = vrot.slane %v3314, 2
        %v3630 = vsel %vm3623, %v3627, %v3629
        %v3631 = vrot.slane %v3315, 2
        %v3632 = vsel %vm3623, %v3629, %v3631
        %v3633 = vrot.slane %v3316, 2
        %v3634 = vsel %vm3623, %v3631, %v3633
        %v3635 = vrot.slane %v3317, 2
        %v3636 = vsel %vm3623, %v3633, %v3635
        %v3637 = vrot.slane %v3622, 2
        %v3638 = vsel %vm3623, %v3635, %v3637
        %v3647 = vunpack.c.l.b16 %v3609
        %v3648 = vunpack.c.l.b16 %v3610
        %v3649 = vunpack.c.l.b16 %v3611
        %v3650 = vunpack.c.l.b16 %v3612
        %v3651 = vunpack.c.l.b16 %v3613
        %v3652 = vunpack.c.l.b16 %v3614
        %v3653 = vunpack.c.l.b16 %v3615
        %v3654 = vunpack.c.l.b16 %v3616
        %v3655 = vpack.c.b16 %v3648, %v3647
        %v3656 = vpack.c.b16 %v3650, %v3649
        %v3657 = vpack.c.b16 %v3652, %v3651
        %v3658 = vpack.c.b16 %v3654, %v3653
        %v3664 = vsel %vm2983, %v3626, 0
        %v3667 = vsel %vm2983, %v3628, 0
        %v3670 = vsel %vm2983, %v3630, 0
        %v3673 = vsel %vm2983, %v3632, 0
        %v3676 = vsel %vm2983, %v3634, 0
        %v3679 = vsel %vm2983, %v3636, 0
        %v3682 = vsel %vm2983, %v3638, 0
        %3684 = vmatprep.subr.bf16.mxu0 0
        %3685 = vmatpush1.bf16.msra.mxu0 %v3655
        %3686 = vmatprep.subr.bf16.mxu0 0
        %3687 = vmatpush1.bf16.msra.mxu0 %v3656
        %3688 = vmatprep.subr.bf16.mxu0 0
        %3689 = vmatpush1.bf16.msra.mxu0 %v3657
        %3690 = vmatprep.subr.bf16.mxu0 0
        %3691 = vmatpush1.bf16.msra.mxu0 %v3658
        %3692 = vmatprep.subr.bf16.mxu0 0
        %3693 = vmatpush1.bf16.msra.mxu0 0
        %3694 = vmatprep.subr.bf16.mxu0 0
        %3695 = vmatpush1.bf16.msra.mxu0 0
        %3696 = vmatprep.subr.bf16.mxu0 0
        %3697 = vmatpush1.bf16.msra.mxu0 0
        %3698 = vmatprep.subr.bf16.mxu0 0
        %3699 = vmatpush1.bf16.msra.mxu0 0
        %3700 = vmatprep.subr.bf16.mxu0 0
        %3701 = vmatpush1.bf16.msra.mxu0 0
        %3702 = vmatprep.subr.bf16.mxu0 0
        %3703 = vmatpush1.bf16.msra.mxu0 0
        %3704 = vmatprep.subr.bf16.mxu0 0
        %3705 = vmatpush1.bf16.msra.mxu0 0
        %3706 = vmatprep.subr.bf16.mxu0 0
        %3707 = vmatpush1.bf16.msra.mxu0 0
        %3708 = vmatprep.subr.bf16.mxu0 0
        %3709 = vmatpush1.bf16.msra.mxu0 0
        %3710 = vmatprep.subr.bf16.mxu0 0
        %3711 = vmatpush1.bf16.msra.mxu0 0
        %3712 = vmatprep.subr.bf16.mxu0 0
        %3713 = vmatpush1.bf16.msra.mxu0 0
        %3714 = vmatprep.subr.bf16.mxu0 0
        %3715 = vmatpush1.bf16.msra.mxu0 0
        %3716 = vmatprep.mubr.bf16.mxu0 0
        %3717 = vmatmul.mubr.bf16.gmra.mrb[0].mxu0 %v3664
        %v3718 = vpop.f32.mrb[0].mxu0
        %v3719 = vadd.f32 0.0, %v3718
        %v3720 = vpop.f32.mrb[0].mxu0
        %v3721 = vpop.f32.mrb[0].mxu0
        %v3722 = vadd.f32 0.0, %v3721
        %v3723 = vpop.f32.mrb[0].mxu0
        %3724 = vmatprep.mubr.bf16.mxu0 0
        %3725 = vmatmul.mubr.bf16.gmra.mrb[0].mxu0 %v3667
        %v3726 = vpop.f32.mrb[0].mxu0
        %v3727 = vadd.f32 0.0, %v3726
        %v3728 = vpop.f32.mrb[0].mxu0
        %v3729 = vpop.f32.mrb[0].mxu0
        %v3730 = vadd.f32 0.0, %v3729
        %v3731 = vpop.f32.mrb[0].mxu0
        %3732 = vmatprep.mubr.bf16.mxu0 0
        %3733 = vmatmul.mubr.bf16.gmra.mrb[0].mxu0 %v3670
        %v3734 = vpop.f32.mrb[0].mxu0
        %v3735 = vadd.f32 0.0, %v3734
        %v3736 = vpop.f32.mrb[0].mxu0
        %v3737 = vpop.f32.mrb[0].mxu0
        %v3738 = vadd.f32 0.0, %v3737
        %v3739 = vpop.f32.mrb[0].mxu0
        %3740 = vmatprep.mubr.bf16.mxu0 0
        %3741 = vmatmul.mubr.bf16.gmra.mrb[0].mxu0 %v3673
        %v3742 = vpop.f32.mrb[0].mxu0
        %v3743 = vadd.f32 0.0, %v3742
        %v3744 = vpop.f32.mrb[0].mxu0
        %v3745 = vpop.f32.mrb[0].mxu0
        %v3746 = vadd.f32 0.0, %v3745
        %v3747 = vpop.f32.mrb[0].mxu0
        %3748 = vmatprep.mubr.bf16.mxu0 0
        %3749 = vmatmul.mubr.bf16.gmra.mrb[0].mxu0 %v3676
        %v3750 = vpop.f32.mrb[0].mxu0
        %v3751 = vadd.f32 0.0, %v3750
        %v3752 = vpop.f32.mrb[0].mxu0
        %v3753 = vpop.f32.mrb[0].mxu0
        %v3754 = vadd.f32 0.0, %v3753
        %v3755 = vpop.f32.mrb[0].mxu0
        %3756 = vmatprep.mubr.bf16.mxu0 0
        %3757 = vmatmul.mubr.bf16.gmra.mrb[0].mxu0 %v3679
        %v3758 = vpop.f32.mrb[0].mxu0
        %v3759 = vadd.f32 0.0, %v3758
        %v3760 = vpop.f32.mrb[0].mxu0
        %v3761 = vpop.f32.mrb[0].mxu0
        %v3762 = vadd.f32 0.0, %v3761
        %v3763 = vpop.f32.mrb[0].mxu0
        %3764 = vmatprep.mubr.bf16.mxu0 0
        %3765 = vmatmul.mubr.bf16.gmra.mrb[0].mxu0 %v3682
        %v3766 = vpop.f32.mrb[0].mxu0
        %v3767 = vadd.f32 0.0, %v3766
        %v3768 = vpop.f32.mrb[0].mxu0
        %v3769 = vpop.f32.mrb[0].mxu0
        %v3770 = vadd.f32 0.0, %v3769
        %v3771 = vpop.f32.mrb[0].mxu0
        %3772 = vdwg.mxu0
        %v3773 = vadd.f32 %v3552, %v3719
        %v3774 = vadd.f32 %v3555, %v3722
        %v3775 = vadd.f32 %v3560, %v3727
        %v3776 = vadd.f32 %v3563, %v3730
        %v3777 = vadd.f32 %v3568, %v3735
        %v3778 = vadd.f32 %v3571, %v3738
        %v3779 = vadd.f32 %v3576, %v3743
        %v3780 = vadd.f32 %v3579, %v3746
        %v3781 = vadd.f32 %v3584, %v3751
        %v3782 = vadd.f32 %v3587, %v3754
        %v3783 = vadd.f32 %v3592, %v3759
        %v3784 = vadd.f32 %v3595, %v3762
        %v3785 = vadd.f32 %v3600, %v3767
        %v3786 = vadd.f32 %v3603, %v3770
        %v3787 = vld [vmem:[#allocation4 + $0x10] sm:$0xf]
        %v3788 = vld [vmem:[#allocation4 + $0x14] sm:$0xf]
        %v3789 = vld [vmem:[#allocation4 + $0x18] sm:$0xf]
        %v3790 = vld [vmem:[#allocation4 + $0x1c] sm:$0xf]
        %v3791 = vld [vmem:[#allocation4 + $0x20] sm:$0xf]
        %v3792 = vld [vmem:[#allocation4 + $0x24] sm:$0xf]
        %v3793 = vld [vmem:[#allocation4 + $0x28] sm:$0xf]
        %v3794 = vld [vmem:[#allocation4 + $0x2c] sm:$0xf]
        %v3795 = vld [vmem:[#allocation4 + $0x30] sm:$0xf]
        %v3796 = vld [vmem:[#allocation4 + $0x34] sm:$0xf]
        %v3797 = vld [vmem:[#allocation4 + $0x38] sm:$0xf]
        %v3798 = vld [vmem:[#allocation4 + $0x3c] sm:$0xf]
        %v3799 = vld [vmem:[#allocation4 + $0x40] sm:$0xf]
        %v3800 = vld [vmem:[#allocation4 + $0x44] sm:$0xf]
        %s3801 = scalar_lea.vmem %s5, 96
        %v3802 = vld [vmem:[%s3801] sm:$0xf]
        %v3803 = vld [vmem:[%s3801 + $0x4] sm:$0xf]
        %v3804 = vld [vmem:[%s3801 + $0x8] sm:$0xf]
        %v3805 = vld [vmem:[%s3801 + $0xc] sm:$0xf]
        %v3806 = vld [vmem:[%s3801 + $0x10] sm:$0xf]
        %v3807 = vld [vmem:[%s3801 + $0x14] sm:$0xf]
        %v3808 = vld [vmem:[%s3801 + $0x18] sm:$0xf]
        %v3809 = vld [vmem:[%s3801 + $0x1c] sm:$0xf]
        %v3824 = vunpack.c.l.b16 %v3787
        %v3825 = vunpack.c.l.b16 %v3788
        %v3826 = vunpack.c.l.b16 %v3789
        %v3827 = vunpack.c.l.b16 %v3790
        %v3828 = vunpack.c.l.b16 %v3791
        %v3829 = vunpack.c.l.b16 %v3792
        %v3830 = vunpack.c.l.b16 %v3793
        %v3831 = vunpack.c.l.b16 %v3794
        %v3832 = vunpack.c.l.b16 %v3795
        %v3833 = vunpack.c.l.b16 %v3796
        %v3834 = vunpack.c.l.b16 %v3797
        %v3835 = vunpack.c.l.b16 %v3798
        %v3836 = vunpack.c.l.b16 %v3799
        %v3837 = vunpack.c.l.b16 %v3800
        %v3838 = vpack.c.b16 %v3825, %v3824
        %v3839 = vpack.c.b16 %v3827, %v3826
        %v3840 = vpack.c.b16 %v3829, %v3828
        %v3841 = vpack.c.b16 %v3831, %v3830
        %v3842 = vpack.c.b16 %v3833, %v3832
        %v3843 = vpack.c.b16 %v3835, %v3834
        %v3844 = vpack.c.b16 %v3837, %v3836
        %v3853 = vunpack.c.l.b16 %v3802
        %v3854 = vunpack.c.l.b16 %v3803
        %v3855 = vunpack.c.l.b16 %v3804
        %v3856 = vunpack.c.l.b16 %v3805
        %v3857 = vunpack.c.l.b16 %v3806
        %v3858 = vunpack.c.l.b16 %v3807
        %v3859 = vunpack.c.l.b16 %v3808
        %v3860 = vunpack.c.l.b16 %v3809
        %v3861 = vpack.c.b16 %v3854, %v3853
        %v3862 = vpack.c.b16 %v3856, %v3855
        %v3863 = vpack.c.b16 %v3858, %v3857
        %v3864 = vpack.c.b16 %v3860, %v3859
        %v3870 = vsel %vm2983, %v3838, 0
        %v3873 = vsel %vm2983, %v3839, 0
        %v3876 = vsel %vm2983, %v3840, 0
        %v3879 = vsel %vm2983, %v3841, 0
        %v3882 = vsel %vm2983, %v3842, 0
        %v3885 = vsel %vm2983, %v3843, 0
        %v3888 = vsel %vm2983, %v3844, 0
        %3890 = vmatprep.subr.bf16.mxu0 0
        %3891 = vmatpush1.bf16.msra.mxu0 %v3861
        %3892 = vmatprep.subr.bf16.mxu0 0
        %3893 = vmatpush1.bf16.msra.mxu0 %v3862
        %3894 = vmatprep.subr.bf16.mxu0 0
        %3895 = vmatpush1.bf16.msra.mxu0 %v3863
        %3896 = vmatprep.subr.bf16.mxu0 0
        %3897 = vmatpush1.bf16.msra.mxu0 %v3864
        %3898 = vmatprep.subr.bf16.mxu0 0
        %3899 = vmatpush1.bf16.msra.mxu0 0
        %3900 = vmatprep.subr.bf16.mxu0 0
        %3901 = vmatpush1.bf16.msra.mxu0 0
        %3902 = vmatprep.subr.bf16.mxu0 0
        %3903 = vmatpush1.bf16.msra.mxu0 0
        %3904 = vmatprep.subr.bf16.mxu0 0
        %3905 = vmatpush1.bf16.msra.mxu0 0
        %3906 = vmatprep.subr.bf16.mxu0 0
        %3907 = vmatpush1.bf16.msra.mxu0 0
        %3908 = vmatprep.subr.bf16.mxu0 0
        %3909 = vmatpush1.bf16.msra.mxu0 0
        %3910 = vmatprep.subr.bf16.mxu0 0
        %3911 = vmatpush1.bf16.msra.mxu0 0
        %3912 = vmatprep.subr.bf16.mxu0 0
        %3913 = vmatpush1.bf16.msra.mxu0 0
        %3914 = vmatprep.subr.bf16.mxu0 0
        %3915 = vmatpush1.bf16.msra.mxu0 0
        %3916 = vmatprep.subr.bf16.mxu0 0
        %3917 = vmatpush1.bf16.msra.mxu0 0
        %3918 = vmatprep.subr.bf16.mxu0 0
        %3919 = vmatpush1.bf16.msra.mxu0 0
        %3920 = vmatprep.subr.bf16.mxu0 0
        %3921 = vmatpush1.bf16.msra.mxu0 0
        %3922 = vmatprep.mubr.bf16.mxu0 0
        %3923 = vmatmul.mubr.bf16.gmra.mrb[0].mxu0 %v3870
        %v3924 = vpop.f32.mrb[0].mxu0
        %v3925 = vadd.f32 0.0, %v3924
        %v3926 = vpop.f32.mrb[0].mxu0
        %v3927 = vpop.f32.mrb[0].mxu0
        %v3928 = vadd.f32 0.0, %v3927
        %v3929 = vpop.f32.mrb[0].mxu0
        %3930 = vmatprep.mubr.bf16.mxu0 0
        %3931 = vmatmul.mubr.bf16.gmra.mrb[0].mxu0 %v3873
        %v3932 = vpop.f32.mrb[0].mxu0
        %v3933 = vadd.f32 0.0, %v3932
        %v3934 = vpop.f32.mrb[0].mxu0
        %v3935 = vpop.f32.mrb[0].mxu0
        %v3936 = vadd.f32 0.0, %v3935
        %v3937 = vpop.f32.mrb[0].mxu0
        %3938 = vmatprep.mubr.bf16.mxu0 0
        %3939 = vmatmul.mubr.bf16.gmra.mrb[0].mxu0 %v3876
        %v3940 = vpop.f32.mrb[0].mxu0
        %v3941 = vadd.f32 0.0, %v3940
        %v3942 = vpop.f32.mrb[0].mxu0
        %v3943 = vpop.f32.mrb[0].mxu0
        %v3944 = vadd.f32 0.0, %v3943
        %v3945 = vpop.f32.mrb[0].mxu0
        %3946 = vmatprep.mubr.bf16.mxu0 0
        %3947 = vmatmul.mubr.bf16.gmra.mrb[0].mxu0 %v3879
        %v3948 = vpop.f32.mrb[0].mxu0
        %v3949 = vadd.f32 0.0, %v3948
        %v3950 = vpop.f32.mrb[0].mxu0
        %v3951 = vpop.f32.mrb[0].mxu0
        %v3952 = vadd.f32 0.0, %v3951
        %v3953 = vpop.f32.mrb[0].mxu0
        %3954 = vmatprep.mubr.bf16.mxu0 0
        %3955 = vmatmul.mubr.bf16.gmra.mrb[0].mxu0 %v3882
        %v3956 = vpop.f32.mrb[0].mxu0
        %v3957 = vadd.f32 0.0, %v3956
        %v3958 = vpop.f32.mrb[0].mxu0
        %v3959 = vpop.f32.mrb[0].mxu0
        %v3960 = vadd.f32 0.0, %v3959
        %v3961 = vpop.f32.mrb[0].mxu0
        %3962 = vmatprep.mubr.bf16.mxu0 0
        %3963 = vmatmul.mubr.bf16.gmra.mrb[0].mxu0 %v3885
        %v3964 = vpop.f32.mrb[0].mxu0
        %v3965 = vadd.f32 0.0, %v3964
        %v3966 = vpop.f32.mrb[0].mxu0
        %v3967 = vpop.f32.mrb[0].mxu0
        %v3968 = vadd.f32 0.0, %v3967
        %v3969 = vpop.f32.mrb[0].mxu0
        %3970 = vmatprep.mubr.bf16.mxu0 0
        %3971 = vmatmul.mubr.bf16.gmra.mrb[0].mxu0 %v3888
        %v3972 = vpop.f32.mrb[0].mxu0
        %v3973 = vadd.f32 0.0, %v3972
        %v3974 = vpop.f32.mrb[0].mxu0
        %v3975 = vpop.f32.mrb[0].mxu0
        %v3976 = vadd.f32 0.0, %v3975
        %v3977 = vpop.f32.mrb[0].mxu0
        %3978 = vdwg.mxu0
        %v3979 = vadd.f32 %v3773, %v3925
        %v3980 = vadd.f32 %v3774, %v3928
        %v3981 = vadd.f32 %v3775, %v3933
        %v3982 = vadd.f32 %v3776, %v3936
        %v3983 = vadd.f32 %v3777, %v3941
        %v3984 = vadd.f32 %v3778, %v3944
        %v3985 = vadd.f32 %v3779, %v3949
        %v3986 = vadd.f32 %v3780, %v3952
        %v3987 = vadd.f32 %v3781, %v3957
        %v3988 = vadd.f32 %v3782, %v3960
        %v3989 = vadd.f32 %v3783, %v3965
        %v3990 = vadd.f32 %v3784, %v3968
        %v3991 = vadd.f32 %v3785, %v3973
        %v3992 = vadd.f32 %v3786, %v3976
        %v3993 = vld [vmem:[#allocation4 + $0x10] sm:$0xe]
        %v3994 = vld [vmem:[#allocation4 + $0x14] sm:$0xf]
        %v3995 = vld [vmem:[#allocation4 + $0x18] sm:$0xf]
        %v3996 = vld [vmem:[#allocation4 + $0x1c] sm:$0xf]
        %v3997 = vld [vmem:[#allocation4 + $0x20] sm:$0xf]
        %v3998 = vld [vmem:[#allocation4 + $0x24] sm:$0xf]
        %v3999 = vld [vmem:[#allocation4 + $0x28] sm:$0xf]
        %v4000 = vld [vmem:[#allocation4 + $0x2c] sm:$0xf]
        %v4001 = vld [vmem:[#allocation4 + $0x30] sm:$0xf]
        %v4002 = vld [vmem:[#allocation4 + $0x34] sm:$0xf]
        %v4003 = vld [vmem:[#allocation4 + $0x38] sm:$0xf]
        %v4004 = vld [vmem:[#allocation4 + $0x3c] sm:$0xf]
        %v4005 = vld [vmem:[#allocation4 + $0x40] sm:$0xf]
        %v4006 = vld [vmem:[#allocation4 + $0x44] sm:$0xf]
        %v4007 = vld [vmem:[#allocation4 + $0x48] sm:$0x1]
        %s4008 = scalar_lea.vmem %s5, 128
        %v4009 = vld [vmem:[%s4008] sm:$0xf]
        %v4010 = vld [vmem:[%s4008 + $0x4] sm:$0xf]
        %v4011 = vld [vmem:[%s4008 + $0x8] sm:$0xf]
        %v4012 = vld [vmem:[%s4008 + $0xc] sm:$0xf]
        %v4013 = vld [vmem:[%s4008 + $0x10] sm:$0xf]
        %v4014 = vld [vmem:[%s4008 + $0x14] sm:$0xf]
        %v4015 = vld [vmem:[%s4008 + $0x18] sm:$0xf]
        %v4016 = vld [vmem:[%s4008 + $0x1c] sm:$0xf]
        %v4032 = vunpack.c.l.b16 %v3993
        %v4033 = vunpack.c.l.b16 %v3994
        %v4034 = vunpack.c.l.b16 %v3995
        %v4035 = vunpack.c.l.b16 %v3996
        %v4036 = vunpack.c.l.b16 %v3997
        %v4037 = vunpack.c.l.b16 %v3998
        %v4038 = vunpack.c.l.b16 %v3999
        %v4039 = vunpack.c.l.b16 %v4000
        %v4040 = vunpack.c.l.b16 %v4001
        %v4041 = vunpack.c.l.b16 %v4002
        %v4042 = vunpack.c.l.b16 %v4003
        %v4043 = vunpack.c.l.b16 %v4004
        %v4044 = vunpack.c.l.b16 %v4005
        %v4045 = vunpack.c.l.b16 %v4006
        %v4046 = vunpack.c.l.b16 %v4007
        %v4047 = vpack.c.b16 %v4033, %v4032
        %v4048 = vpack.c.b16 %v4035, %v4034
        %v4049 = vpack.c.b16 %v4037, %v4036
        %v4050 = vpack.c.b16 %v4039, %v4038
        %v4051 = vpack.c.b16 %v4041, %v4040
        %v4052 = vpack.c.b16 %v4043, %v4042
        %v4053 = vpack.c.b16 %v4045, %v4044
        %v4054 = vpack.c.b16 %v4046, %v4046
        %v4055 = vrot.slane %v4047, 1
        %v4056 = vrot.slane %v4048, 1
        %v4057 = vsel %vm3319, %v4055, %v4056
        %v4058 = vrot.slane %v4049, 1
        %v4059 = vsel %vm3319, %v4056, %v4058
        %v4060 = vrot.slane %v4050, 1
        %v4061 = vsel %vm3319, %v4058, %v4060
        %v4062 = vrot.slane %v4051, 1
        %v4063 = vsel %vm3319, %v4060, %v4062
        %v4064 = vrot.slane %v4052, 1
        %v4065 = vsel %vm3319, %v4062, %v4064
        %v4066 = vrot.slane %v4053, 1
        %v4067 = vsel %vm3319, %v4064, %v4066
        %v4068 = vrot.slane %v4054, 1
        %v4069 = vsel %vm3319, %v4066, %v4068
        %v4078 = vunpack.c.l.b16 %v4009
        %v4079 = vunpack.c.l.b16 %v4010
        %v4080 = vunpack.c.l.b16 %v4011
        %v4081 = vunpack.c.l.b16 %v4012
        %v4082 = vunpack.c.l.b16 %v4013
        %v4083 = vunpack.c.l.b16 %v4014
        %v4084 = vunpack.c.l.b16 %v4015
        %v4085 = vunpack.c.l.b16 %v4016
        %v4086 = vpack.c.b16 %v4079, %v4078
        %v4087 = vpack.c.b16 %v4081, %v4080
        %v4088 = vpack.c.b16 %v4083, %v4082
        %v4089 = vpack.c.b16 %v4085, %v4084
        %v4095 = vsel %vm2983, %v4057, 0
        %v4098 = vsel %vm2983, %v4059, 0
        %v4101 = vsel %vm2983, %v4061, 0
        %v4104 = vsel %vm2983, %v4063, 0
        %v4107 = vsel %vm2983, %v4065, 0
        %v4110 = vsel %vm2983, %v4067, 0
        %v4113 = vsel %vm2983, %v4069, 0
        %4115 = vmatprep.subr.bf16.mxu0 0
        %4116 = vmatpush1.bf16.msra.mxu0 %v4086
        %4117 = vmatprep.subr.bf16.mxu0 0
        %4118 = vmatpush1.bf16.msra.mxu0 %v4087
        %4119 = vmatprep.subr.bf16.mxu0 0
        %4120 = vmatpush1.bf16.msra.mxu0 %v4088
        %4121 = vmatprep.subr.bf16.mxu0 0
        %4122 = vmatpush1.bf16.msra.mxu0 %v4089
        %4123 = vmatprep.subr.bf16.mxu0 0
        %4124 = vmatpush1.bf16.msra.mxu0 0
        %4125 = vmatprep.subr.bf16.mxu0 0
        %4126 = vmatpush1.bf16.msra.mxu0 0
        %4127 = vmatprep.subr.bf16.mxu0 0
        %4128 = vmatpush1.bf16.msra.mxu0 0
        %4129 = vmatprep.subr.bf16.mxu0 0
        %4130 = vmatpush1.bf16.msra.mxu0 0
        %4131 = vmatprep.subr.bf16.mxu0 0
        %4132 = vmatpush1.bf16.msra.mxu0 0
        %4133 = vmatprep.subr.bf16.mxu0 0
        %4134 = vmatpush1.bf16.msra.mxu0 0
        %4135 = vmatprep.subr.bf16.mxu0 0
        %4136 = vmatpush1.bf16.msra.mxu0 0
        %4137 = vmatprep.subr.bf16.mxu0 0
        %4138 = vmatpush1.bf16.msra.mxu0 0
        %4139 = vmatprep.subr.bf16.mxu0 0
        %4140 = vmatpush1.bf16.msra.mxu0 0
        %4141 = vmatprep.subr.bf16.mxu0 0
        %4142 = vmatpush1.bf16.msra.mxu0 0
        %4143 = vmatprep.subr.bf16.mxu0 0
        %4144 = vmatpush1.bf16.msra.mxu0 0
        %4145 = vmatprep.subr.bf16.mxu0 0
        %4146 = vmatpush1.bf16.msra.mxu0 0
        %4147 = vmatprep.mubr.bf16.mxu0 0
        %4148 = vmatmul.mubr.bf16.gmra.mrb[0].mxu0 %v4095
        %v4149 = vpop.f32.mrb[0].mxu0
        %v4150 = vadd.f32 0.0, %v4149
        %v4151 = vpop.f32.mrb[0].mxu0
        %v4152 = vpop.f32.mrb[0].mxu0
        %v4153 = vadd.f32 0.0, %v4152
        %v4154 = vpop.f32.mrb[0].mxu0
        %4155 = vmatprep.mubr.bf16.mxu0 0
        %4156 = vmatmul.mubr.bf16.gmra.mrb[0].mxu0 %v4098
        %v4157 = vpop.f32.mrb[0].mxu0
        %v4158 = vadd.f32 0.0, %v4157
        %v4159 = vpop.f32.mrb[0].mxu0
        %v4160 = vpop.f32.mrb[0].mxu0
        %v4161 = vadd.f32 0.0, %v4160
        %v4162 = vpop.f32.mrb[0].mxu0
        %4163 = vmatprep.mubr.bf16.mxu0 0
        %4164 = vmatmul.mubr.bf16.gmra.mrb[0].mxu0 %v4101
        %v4165 = vpop.f32.mrb[0].mxu0
        %v4166 = vadd.f32 0.0, %v4165
        %v4167 = vpop.f32.mrb[0].mxu0
        %v4168 = vpop.f32.mrb[0].mxu0
        %v4169 = vadd.f32 0.0, %v4168
        %v4170 = vpop.f32.mrb[0].mxu0
        %4171 = vmatprep.mubr.bf16.mxu0 0
        %4172 = vmatmul.mubr.bf16.gmra.mrb[0].mxu0 %v4104
        %v4173 = vpop.f32.mrb[0].mxu0
        %v4174 = vadd.f32 0.0, %v4173
        %v4175 = vpop.f32.mrb[0].mxu0
        %v4176 = vpop.f32.mrb[0].mxu0
        %v4177 = vadd.f32 0.0, %v4176
        %v4178 = vpop.f32.mrb[0].mxu0
        %4179 = vmatprep.mubr.bf16.mxu0 0
        %4180 = vmatmul.mubr.bf16.gmra.mrb[0].mxu0 %v4107
        %v4181 = vpop.f32.mrb[0].mxu0
        %v4182 = vadd.f32 0.0, %v4181
        %v4183 = vpop.f32.mrb[0].mxu0
        %v4184 = vpop.f32.mrb[0].mxu0
        %v4185 = vadd.f32 0.0, %v4184
        %v4186 = vpop.f32.mrb[0].mxu0
        %4187 = vmatprep.mubr.bf16.mxu0 0
        %4188 = vmatmul.mubr.bf16.gmra.mrb[0].mxu0 %v4110
        %v4189 = vpop.f32.mrb[0].mxu0
        %v4190 = vadd.f32 0.0, %v4189
        %v4191 = vpop.f32.mrb[0].mxu0
        %v4192 = vpop.f32.mrb[0].mxu0
        %v4193 = vadd.f32 0.0, %v4192
        %v4194 = vpop.f32.mrb[0].mxu0
        %4195 = vmatprep.mubr.bf16.mxu0 0
        %4196 = vmatmul.mubr.bf16.gmra.mrb[0].mxu0 %v4113
        %v4197 = vpop.f32.mrb[0].mxu0
        %v4198 = vadd.f32 0.0, %v4197
        %v4199 = vpop.f32.mrb[0].mxu0
        %v4200 = vpop.f32.mrb[0].mxu0
        %v4201 = vadd.f32 0.0, %v4200
        %v4202 = vpop.f32.mrb[0].mxu0
        %4203 = vdwg.mxu0
        %v4204 = vadd.f32 %v3979, %v4150
        %v4205 = vadd.f32 %v3980, %v4153
        %v4206 = vadd.f32 %v3981, %v4158
        %v4207 = vadd.f32 %v3982, %v4161
        %v4208 = vadd.f32 %v3983, %v4166
        %v4209 = vadd.f32 %v3984, %v4169
        %v4210 = vadd.f32 %v3985, %v4174
        %v4211 = vadd.f32 %v3986, %v4177
        %v4212 = vadd.f32 %v3987, %v4182
        %v4213 = vadd.f32 %v3988, %v4185
        %v4214 = vadd.f32 %v3989, %v4190
        %v4215 = vadd.f32 %v3990, %v4193
        %v4216 = vadd.f32 %v3991, %v4198
        %v4217 = vadd.f32 %v3992, %v4201
        %v4218 = vld [vmem:[#allocation4 + $0x10] sm:$0xc]
        %v4219 = vld [vmem:[#allocation4 + $0x48] sm:$0x3]
        %s4220 = scalar_lea.vmem %s5, 160
        %v4221 = vld [vmem:[%s4220] sm:$0xf]
        %v4222 = vld [vmem:[%s4220 + $0x4] sm:$0xf]
        %v4223 = vld [vmem:[%s4220 + $0x8] sm:$0xf]
        %v4224 = vld [vmem:[%s4220 + $0xc] sm:$0xf]
        %v4225 = vld [vmem:[%s4220 + $0x10] sm:$0xf]
        %v4226 = vld [vmem:[%s4220 + $0x14] sm:$0xf]
        %v4227 = vld [vmem:[%s4220 + $0x18] sm:$0xf]
        %v4228 = vld [vmem:[%s4220 + $0x1c] sm:$0xf]
        %v4231 = vunpack.c.l.b16 %v4218
        %v4232 = vunpack.c.l.b16 %v4219
        %v4233 = vpack.c.b16 %v4033, %v4231
        %v4234 = vpack.c.b16 %v4232, %v4232
        %v4235 = vrot.slane %v4233, 2
        %v4236 = vrot.slane %v4048, 2
        %v4237 = vsel %vm3623, %v4235, %v4236
        %v4238 = vrot.slane %v4049, 2
        %v4239 = vsel %vm3623, %v4236, %v4238
        %v4240 = vrot.slane %v4050, 2
        %v4241 = vsel %vm3623, %v4238, %v4240
        %v4242 = vrot.slane %v4051, 2
        %v4243 = vsel %vm3623, %v4240, %v4242
        %v4244 = vrot.slane %v4052, 2
        %v4245 = vsel %vm3623, %v4242, %v4244
        %v4246 = vrot.slane %v4053, 2
        %v4247 = vsel %vm3623, %v4244, %v4246
        %v4248 = vrot.slane %v4234, 2
        %v4249 = vsel %vm3623, %v4246, %v4248
        %v4258 = vunpack.c.l.b16 %v4221
        %v4259 = vunpack.c.l.b16 %v4222
        %v4260 = vunpack.c.l.b16 %v4223
        %v4261 = vunpack.c.l.b16 %v4224
        %v4262 = vunpack.c.l.b16 %v4225
        %v4263 = vunpack.c.l.b16 %v4226
        %v4264 = vunpack.c.l.b16 %v4227
        %v4265 = vunpack.c.l.b16 %v4228
        %v4266 = vpack.c.b16 %v4259, %v4258
        %v4267 = vpack.c.b16 %v4261, %v4260
        %v4268 = vpack.c.b16 %v4263, %v4262
        %v4269 = vpack.c.b16 %v4265, %v4264
        %v4275 = vsel %vm2983, %v4237, 0
        %v4278 = vsel %vm2983, %v4239, 0
        %v4281 = vsel %vm2983, %v4241, 0
        %v4284 = vsel %vm2983, %v4243, 0
        %v4287 = vsel %vm2983, %v4245, 0
        %v4290 = vsel %vm2983, %v4247, 0
        %v4293 = vsel %vm2983, %v4249, 0
        %4295 = vmatprep.subr.bf16.mxu0 0
        %4296 = vmatpush1.bf16.msra.mxu0 %v4266
        %4297 = vmatprep.subr.bf16.mxu0 0
        %4298 = vmatpush1.bf16.msra.mxu0 %v4267
        %4299 = vmatprep.subr.bf16.mxu0 0
        %4300 = vmatpush1.bf16.msra.mxu0 %v4268
        %4301 = vmatprep.subr.bf16.mxu0 0
        %4302 = vmatpush1.bf16.msra.mxu0 %v4269
        %4303 = vmatprep.subr.bf16.mxu0 0
        %4304 = vmatpush1.bf16.msra.mxu0 0
        %4305 = vmatprep.subr.bf16.mxu0 0
        %4306 = vmatpush1.bf16.msra.mxu0 0
        %4307 = vmatprep.subr.bf16.mxu0 0
        %4308 = vmatpush1.bf16.msra.mxu0 0
        %4309 = vmatprep.subr.bf16.mxu0 0
        %4310 = vmatpush1.bf16.msra.mxu0 0
        %4311 = vmatprep.subr.bf16.mxu0 0
        %4312 = vmatpush1.bf16.msra.mxu0 0
        %4313 = vmatprep.subr.bf16.mxu0 0
        %4314 = vmatpush1.bf16.msra.mxu0 0
        %4315 = vmatprep.subr.bf16.mxu0 0
        %4316 = vmatpush1.bf16.msra.mxu0 0
        %4317 = vmatprep.subr.bf16.mxu0 0
        %4318 = vmatpush1.bf16.msra.mxu0 0
        %4319 = vmatprep.subr.bf16.mxu0 0
        %4320 = vmatpush1.bf16.msra.mxu0 0
        %4321 = vmatprep.subr.bf16.mxu0 0
        %4322 = vmatpush1.bf16.msra.mxu0 0
        %4323 = vmatprep.subr.bf16.mxu0 0
        %4324 = vmatpush1.bf16.msra.mxu0 0
        %4325 = vmatprep.subr.bf16.mxu0 0
        %4326 = vmatpush1.bf16.msra.mxu0 0
        %4327 = vmatprep.mubr.bf16.mxu0 0
        %4328 = vmatmul.mubr.bf16.gmra.mrb[0].mxu0 %v4275
        %v4329 = vpop.f32.mrb[0].mxu0
        %v4330 = vadd.f32 0.0, %v4329
        %v4331 = vpop.f32.mrb[0].mxu0
        %v4332 = vpop.f32.mrb[0].mxu0
        %v4333 = vadd.f32 0.0, %v4332
        %v4334 = vpop.f32.mrb[0].mxu0
        %4335 = vmatprep.mubr.bf16.mxu0 0
        %4336 = vmatmul.mubr.bf16.gmra.mrb[0].mxu0 %v4278
        %v4337 = vpop.f32.mrb[0].mxu0
        %v4338 = vadd.f32 0.0, %v4337
        %v4339 = vpop.f32.mrb[0].mxu0
        %v4340 = vpop.f32.mrb[0].mxu0
        %v4341 = vadd.f32 0.0, %v4340
        %v4342 = vpop.f32.mrb[0].mxu0
        %4343 = vmatprep.mubr.bf16.mxu0 0
        %4344 = vmatmul.mubr.bf16.gmra.mrb[0].mxu0 %v4281
        %v4345 = vpop.f32.mrb[0].mxu0
        %v4346 = vadd.f32 0.0, %v4345
        %v4347 = vpop.f32.mrb[0].mxu0
        %v4348 = vpop.f32.mrb[0].mxu0
        %v4349 = vadd.f32 0.0, %v4348
        %v4350 = vpop.f32.mrb[0].mxu0
        %4351 = vmatprep.mubr.bf16.mxu0 0
        %4352 = vmatmul.mubr.bf16.gmra.mrb[0].mxu0 %v4284
        %v4353 = vpop.f32.mrb[0].mxu0
        %v4354 = vadd.f32 0.0, %v4353
        %v4355 = vpop.f32.mrb[0].mxu0
        %v4356 = vpop.f32.mrb[0].mxu0
        %v4357 = vadd.f32 0.0, %v4356
        %v4358 = vpop.f32.mrb[0].mxu0
        %4359 = vmatprep.mubr.bf16.mxu0 0
        %4360 = vmatmul.mubr.bf16.gmra.mrb[0].mxu0 %v4287
        %v4361 = vpop.f32.mrb[0].mxu0
        %v4362 = vadd.f32 0.0, %v4361
        %v4363 = vpop.f32.mrb[0].mxu0
        %v4364 = vpop.f32.mrb[0].mxu0
        %v4365 = vadd.f32 0.0, %v4364
        %v4366 = vpop.f32.mrb[0].mxu0
        %4367 = vmatprep.mubr.bf16.mxu0 0
        %4368 = vmatmul.mubr.bf16.gmra.mrb[0].mxu0 %v4290
        %v4369 = vpop.f32.mrb[0].mxu0
        %v4370 = vadd.f32 0.0, %v4369
        %v4371 = vpop.f32.mrb[0].mxu0
        %v4372 = vpop.f32.mrb[0].mxu0
        %v4373 = vadd.f32 0.0, %v4372
        %v4374 = vpop.f32.mrb[0].mxu0
        %4375 = vmatprep.mubr.bf16.mxu0 0
        %4376 = vmatmul.mubr.bf16.gmra.mrb[0].mxu0 %v4293
        %v4377 = vpop.f32.mrb[0].mxu0
        %v4378 = vadd.f32 0.0, %v4377
        %v4379 = vpop.f32.mrb[0].mxu0
        %v4380 = vpop.f32.mrb[0].mxu0
        %v4381 = vadd.f32 0.0, %v4380
        %v4382 = vpop.f32.mrb[0].mxu0
        %4383 = vdwg.mxu0
        %v4384 = vadd.f32 %v4204, %v4330
        %v4385 = vadd.f32 %v4205, %v4333
        %v4386 = vadd.f32 %v4206, %v4338
        %v4387 = vadd.f32 %v4207, %v4341
        %v4388 = vadd.f32 %v4208, %v4346
        %v4389 = vadd.f32 %v4209, %v4349
        %v4390 = vadd.f32 %v4210, %v4354
        %v4391 = vadd.f32 %v4211, %v4357
        %v4392 = vadd.f32 %v4212, %v4362
        %v4393 = vadd.f32 %v4213, %v4365
        %v4394 = vadd.f32 %v4214, %v4370
        %v4395 = vadd.f32 %v4215, %v4373
        %v4396 = vadd.f32 %v4216, %v4378
        %v4397 = vadd.f32 %v4217, %v4381
        %v4398 = vld [vmem:[#allocation4 + $0x20] sm:$0xf]
        %v4399 = vld [vmem:[#allocation4 + $0x24] sm:$0xf]
        %v4400 = vld [vmem:[#allocation4 + $0x28] sm:$0xf]
        %v4401 = vld [vmem:[#allocation4 + $0x2c] sm:$0xf]
        %v4402 = vld [vmem:[#allocation4 + $0x30] sm:$0xf]
        %v4403 = vld [vmem:[#allocation4 + $0x34] sm:$0xf]
        %v4404 = vld [vmem:[#allocation4 + $0x38] sm:$0xf]
        %v4405 = vld [vmem:[#allocation4 + $0x3c] sm:$0xf]
        %v4406 = vld [vmem:[#allocation4 + $0x40] sm:$0xf]
        %v4407 = vld [vmem:[#allocation4 + $0x44] sm:$0xf]
        %v4408 = vld [vmem:[#allocation4 + $0x48] sm:$0xf]
        %v4409 = vld [vmem:[#allocation4 + $0x4c] sm:$0xf]
        %v4410 = vld [vmem:[#allocation4 + $0x50] sm:$0xf]
        %v4411 = vld [vmem:[#allocation4 + $0x54] sm:$0xf]
        %s4412 = scalar_lea.vmem %s5, 192
        %v4413 = vld [vmem:[%s4412] sm:$0xf]
        %v4414 = vld [vmem:[%s4412 + $0x4] sm:$0xf]
        %v4415 = vld [vmem:[%s4412 + $0x8] sm:$0xf]
        %v4416 = vld [vmem:[%s4412 + $0xc] sm:$0xf]
        %v4417 = vld [vmem:[%s4412 + $0x10] sm:$0xf]
        %v4418 = vld [vmem:[%s4412 + $0x14] sm:$0xf]
        %v4419 = vld [vmem:[%s4412 + $0x18] sm:$0xf]
        %v4420 = vld [vmem:[%s4412 + $0x1c] sm:$0xf]
        %v4435 = vunpack.c.l.b16 %v4398
        %v4436 = vunpack.c.l.b16 %v4399
        %v4437 = vunpack.c.l.b16 %v4400
        %v4438 = vunpack.c.l.b16 %v4401
        %v4439 = vunpack.c.l.b16 %v4402
        %v4440 = vunpack.c.l.b16 %v4403
        %v4441 = vunpack.c.l.b16 %v4404
        %v4442 = vunpack.c.l.b16 %v4405
        %v4443 = vunpack.c.l.b16 %v4406
        %v4444 = vunpack.c.l.b16 %v4407
        %v4445 = vunpack.c.l.b16 %v4408
        %v4446 = vunpack.c.l.b16 %v4409
        %v4447 = vunpack.c.l.b16 %v4410
        %v4448 = vunpack.c.l.b16 %v4411
        %v4449 = vpack.c.b16 %v4436, %v4435
        %v4450 = vpack.c.b16 %v4438, %v4437
        %v4451 = vpack.c.b16 %v4440, %v4439
        %v4452 = vpack.c.b16 %v4442, %v4441
        %v4453 = vpack.c.b16 %v4444, %v4443
        %v4454 = vpack.c.b16 %v4446, %v4445
        %v4455 = vpack.c.b16 %v4448, %v4447
        %v4464 = vunpack.c.l.b16 %v4413
        %v4465 = vunpack.c.l.b16 %v4414
        %v4466 = vunpack.c.l.b16 %v4415
        %v4467 = vunpack.c.l.b16 %v4416
        %v4468 = vunpack.c.l.b16 %v4417
        %v4469 = vunpack.c.l.b16 %v4418
        %v4470 = vunpack.c.l.b16 %v4419
        %v4471 = vunpack.c.l.b16 %v4420
        %v4472 = vpack.c.b16 %v4465, %v4464
        %v4473 = vpack.c.b16 %v4467, %v4466
        %v4474 = vpack.c.b16 %v4469, %v4468
        %v4475 = vpack.c.b16 %v4471, %v4470
        %v4481 = vsel %vm2983, %v4449, 0
        %v4484 = vsel %vm2983, %v4450, 0
        %v4487 = vsel %vm2983, %v4451, 0
        %v4490 = vsel %vm2983, %v4452, 0
        %v4493 = vsel %vm2983, %v4453, 0
        %v4496 = vsel %vm2983, %v4454, 0
        %v4499 = vsel %vm2983, %v4455, 0
        %4501 = vmatprep.subr.bf16.mxu0 0
        %4502 = vmatpush1.bf16.msra.mxu0 %v4472
        %4503 = vmatprep.subr.bf16.mxu0 0
        %4504 = vmatpush1.bf16.msra.mxu0 %v4473
        %4505 = vmatprep.subr.bf16.mxu0 0
        %4506 = vmatpush1.bf16.msra.mxu0 %v4474
        %4507 = vmatprep.subr.bf16.mxu0 0
        %4508 = vmatpush1.bf16.msra.mxu0 %v4475
        %4509 = vmatprep.subr.bf16.mxu0 0
        %4510 = vmatpush1.bf16.msra.mxu0 0
        %4511 = vmatprep.subr.bf16.mxu0 0
        %4512 = vmatpush1.bf16.msra.mxu0 0
        %4513 = vmatprep.subr.bf16.mxu0 0
        %4514 = vmatpush1.bf16.msra.mxu0 0
        %4515 = vmatprep.subr.bf16.mxu0 0
        %4516 = vmatpush1.bf16.msra.mxu0 0
        %4517 = vmatprep.subr.bf16.mxu0 0
        %4518 = vmatpush1.bf16.msra.mxu0 0
        %4519 = vmatprep.subr.bf16.mxu0 0
        %4520 = vmatpush1.bf16.msra.mxu0 0
        %4521 = vmatprep.subr.bf16.mxu0 0
        %4522 = vmatpush1.bf16.msra.mxu0 0
        %4523 = vmatprep.subr.bf16.mxu0 0
        %4524 = vmatpush1.bf16.msra.mxu0 0
        %4525 = vmatprep.subr.bf16.mxu0 0
        %4526 = vmatpush1.bf16.msra.mxu0 0
        %4527 = vmatprep.subr.bf16.mxu0 0
        %4528 = vmatpush1.bf16.msra.mxu0 0
        %4529 = vmatprep.subr.bf16.mxu0 0
        %4530 = vmatpush1.bf16.msra.mxu0 0
        %4531 = vmatprep.subr.bf16.mxu0 0
        %4532 = vmatpush1.bf16.msra.mxu0 0
        %4533 = vmatprep.mubr.bf16.mxu0 0
        %4534 = vmatmul.mubr.bf16.gmra.mrb[0].mxu0 %v4481
        %v4535 = vpop.f32.mrb[0].mxu0
        %v4536 = vadd.f32 0.0, %v4535
        %v4537 = vpop.f32.mrb[0].mxu0
        %v4538 = vpop.f32.mrb[0].mxu0
        %v4539 = vadd.f32 0.0, %v4538
        %v4540 = vpop.f32.mrb[0].mxu0
        %4541 = vmatprep.mubr.bf16.mxu0 0
        %4542 = vmatmul.mubr.bf16.gmra.mrb[0].mxu0 %v4484
        %v4543 = vpop.f32.mrb[0].mxu0
        %v4544 = vadd.f32 0.0, %v4543
        %v4545 = vpop.f32.mrb[0].mxu0
        %v4546 = vpop.f32.mrb[0].mxu0
        %v4547 = vadd.f32 0.0, %v4546
        %v4548 = vpop.f32.mrb[0].mxu0
        %4549 = vmatprep.mubr.bf16.mxu0 0
        %4550 = vmatmul.mubr.bf16.gmra.mrb[0].mxu0 %v4487
        %v4551 = vpop.f32.mrb[0].mxu0
        %v4552 = vadd.f32 0.0, %v4551
        %v4553 = vpop.f32.mrb[0].mxu0
        %v4554 = vpop.f32.mrb[0].mxu0
        %v4555 = vadd.f32 0.0, %v4554
        %v4556 = vpop.f32.mrb[0].mxu0
        %4557 = vmatprep.mubr.bf16.mxu0 0
        %4558 = vmatmul.mubr.bf16.gmra.mrb[0].mxu0 %v4490
        %v4559 = vpop.f32.mrb[0].mxu0
        %v4560 = vadd.f32 0.0, %v4559
        %v4561 = vpop.f32.mrb[0].mxu0
        %v4562 = vpop.f32.mrb[0].mxu0
        %v4563 = vadd.f32 0.0, %v4562
        %v4564 = vpop.f32.mrb[0].mxu0
        %4565 = vmatprep.mubr.bf16.mxu0 0
        %4566 = vmatmul.mubr.bf16.gmra.mrb[0].mxu0 %v4493
        %v4567 = vpop.f32.mrb[0].mxu0
        %v4568 = vadd.f32 0.0, %v4567
        %v4569 = vpop.f32.mrb[0].mxu0
        %v4570 = vpop.f32.mrb[0].mxu0
        %v4571 = vadd.f32 0.0, %v4570
        %v4572 = vpop.f32.mrb[0].mxu0
        %4573 = vmatprep.mubr.bf16.mxu0 0
        %4574 = vmatmul.mubr.bf16.gmra.mrb[0].mxu0 %v4496
        %v4575 = vpop.f32.mrb[0].mxu0
        %v4576 = vadd.f32 0.0, %v4575
        %v4577 = vpop.f32.mrb[0].mxu0
        %v4578 = vpop.f32.mrb[0].mxu0
        %v4579 = vadd.f32 0.0, %v4578
        %v4580 = vpop.f32.mrb[0].mxu0
        %4581 = vmatprep.mubr.bf16.mxu0 0
        %4582 = vmatmul.mubr.bf16.gmra.mrb[0].mxu0 %v4499
        %v4583 = vpop.f32.mrb[0].mxu0
        %v4584 = vadd.f32 0.0, %v4583
        %v4585 = vpop.f32.mrb[0].mxu0
        %v4586 = vpop.f32.mrb[0].mxu0
        %v4587 = vadd.f32 0.0, %v4586
        %v4588 = vpop.f32.mrb[0].mxu0
        %4589 = vdwg.mxu0
        %v4590 = vadd.f32 %v4384, %v4536
        %v4591 = vadd.f32 %v4385, %v4539
        %v4592 = vadd.f32 %v4386, %v4544
        %v4593 = vadd.f32 %v4387, %v4547
        %v4594 = vadd.f32 %v4388, %v4552
        %v4595 = vadd.f32 %v4389, %v4555
        %v4596 = vadd.f32 %v4390, %v4560
        %v4597 = vadd.f32 %v4391, %v4563
        %v4598 = vadd.f32 %v4392, %v4568
        %v4599 = vadd.f32 %v4393, %v4571
        %v4600 = vadd.f32 %v4394, %v4576
        %v4601 = vadd.f32 %v4395, %v4579
        %v4602 = vadd.f32 %v4396, %v4584
        %v4603 = vadd.f32 %v4397, %v4587
        %v4604 = vld [vmem:[#allocation4 + $0x20] sm:$0xe]
        %v4605 = vld [vmem:[#allocation4 + $0x24] sm:$0xf]
        %v4606 = vld [vmem:[#allocation4 + $0x28] sm:$0xf]
        %v4607 = vld [vmem:[#allocation4 + $0x2c] sm:$0xf]
        %v4608 = vld [vmem:[#allocation4 + $0x30] sm:$0xf]
        %v4609 = vld [vmem:[#allocation4 + $0x34] sm:$0xf]
        %v4610 = vld [vmem:[#allocation4 + $0x38] sm:$0xf]
        %v4611 = vld [vmem:[#allocation4 + $0x3c] sm:$0xf]
        %v4612 = vld [vmem:[#allocation4 + $0x40] sm:$0xf]
        %v4613 = vld [vmem:[#allocation4 + $0x44] sm:$0xf]
        %v4614 = vld [vmem:[#allocation4 + $0x48] sm:$0xf]
        %v4615 = vld [vmem:[#allocation4 + $0x4c] sm:$0xf]
        %v4616 = vld [vmem:[#allocation4 + $0x50] sm:$0xf]
        %v4617 = vld [vmem:[#allocation4 + $0x54] sm:$0xf]
        %v4618 = vld [vmem:[#allocation4 + $0x58] sm:$0x1]
        %s4619 = scalar_lea.vmem %s5, 224
        %v4620 = vld [vmem:[%s4619] sm:$0xf]
        %v4621 = vld [vmem:[%s4619 + $0x4] sm:$0xf]
        %v4622 = vld [vmem:[%s4619 + $0x8] sm:$0xf]
        %v4623 = vld [vmem:[%s4619 + $0xc] sm:$0xf]
        %v4624 = vld [vmem:[%s4619 + $0x10] sm:$0xf]
        %v4625 = vld [vmem:[%s4619 + $0x14] sm:$0xf]
        %v4626 = vld [vmem:[%s4619 + $0x18] sm:$0xf]
        %v4627 = vld [vmem:[%s4619 + $0x1c] sm:$0xf]
        %v4643 = vunpack.c.l.b16 %v4604
        %v4644 = vunpack.c.l.b16 %v4605
        %v4645 = vunpack.c.l.b16 %v4606
        %v4646 = vunpack.c.l.b16 %v4607
        %v4647 = vunpack.c.l.b16 %v4608
        %v4648 = vunpack.c.l.b16 %v4609
        %v4649 = vunpack.c.l.b16 %v4610
        %v4650 = vunpack.c.l.b16 %v4611
        %v4651 = vunpack.c.l.b16 %v4612
        %v4652 = vunpack.c.l.b16 %v4613
        %v4653 = vunpack.c.l.b16 %v4614
        %v4654 = vunpack.c.l.b16 %v4615
        %v4655 = vunpack.c.l.b16 %v4616
        %v4656 = vunpack.c.l.b16 %v4617
        %v4657 = vunpack.c.l.b16 %v4618
        %v4658 = vpack.c.b16 %v4644, %v4643
        %v4659 = vpack.c.b16 %v4646, %v4645
        %v4660 = vpack.c.b16 %v4648, %v4647
        %v4661 = vpack.c.b16 %v4650, %v4649
        %v4662 = vpack.c.b16 %v4652, %v4651
        %v4663 = vpack.c.b16 %v4654, %v4653
        %v4664 = vpack.c.b16 %v4656, %v4655
        %v4665 = vpack.c.b16 %v4657, %v4657
        %v4666 = vrot.slane %v4658, 1
        %v4667 = vrot.slane %v4659, 1
        %v4668 = vsel %vm3319, %v4666, %v4667
        %v4669 = vrot.slane %v4660, 1
        %v4670 = vsel %vm3319, %v4667, %v4669
        %v4671 = vrot.slane %v4661, 1
        %v4672 = vsel %vm3319, %v4669, %v4671
        %v4673 = vrot.slane %v4662, 1
        %v4674 = vsel %vm3319, %v4671, %v4673
        %v4675 = vrot.slane %v4663, 1
        %v4676 = vsel %vm3319, %v4673, %v4675
        %v4677 = vrot.slane %v4664, 1
        %v4678 = vsel %vm3319, %v4675, %v4677
        %v4679 = vrot.slane %v4665, 1
        %v4680 = vsel %vm3319, %v4677, %v4679
        %v4689 = vunpack.c.l.b16 %v4620
        %v4690 = vunpack.c.l.b16 %v4621
        %v4691 = vunpack.c.l.b16 %v4622
        %v4692 = vunpack.c.l.b16 %v4623
        %v4693 = vunpack.c.l.b16 %v4624
        %v4694 = vunpack.c.l.b16 %v4625
        %v4695 = vunpack.c.l.b16 %v4626
        %v4696 = vunpack.c.l.b16 %v4627
        %v4697 = vpack.c.b16 %v4690, %v4689
        %v4698 = vpack.c.b16 %v4692, %v4691
        %v4699 = vpack.c.b16 %v4694, %v4693
        %v4700 = vpack.c.b16 %v4696, %v4695
        %v4706 = vsel %vm2983, %v4668, 0
        %v4709 = vsel %vm2983, %v4670, 0
        %v4712 = vsel %vm2983, %v4672, 0
        %v4715 = vsel %vm2983, %v4674, 0
        %v4718 = vsel %vm2983, %v4676, 0
        %v4721 = vsel %vm2983, %v4678, 0
        %v4724 = vsel %vm2983, %v4680, 0
        %4726 = vmatprep.subr.bf16.mxu0 0
        %4727 = vmatpush1.bf16.msra.mxu0 %v4697
        %4728 = vmatprep.subr.bf16.mxu0 0
        %4729 = vmatpush1.bf16.msra.mxu0 %v4698
        %4730 = vmatprep.subr.bf16.mxu0 0
        %4731 = vmatpush1.bf16.msra.mxu0 %v4699
        %4732 = vmatprep.subr.bf16.mxu0 0
        %4733 = vmatpush1.bf16.msra.mxu0 %v4700
        %4734 = vmatprep.subr.bf16.mxu0 0
        %4735 = vmatpush1.bf16.msra.mxu0 0
        %4736 = vmatprep.subr.bf16.mxu0 0
        %4737 = vmatpush1.bf16.msra.mxu0 0
        %4738 = vmatprep.subr.bf16.mxu0 0
        %4739 = vmatpush1.bf16.msra.mxu0 0
        %4740 = vmatprep.subr.bf16.mxu0 0
        %4741 = vmatpush1.bf16.msra.mxu0 0
        %4742 = vmatprep.subr.bf16.mxu0 0
        %4743 = vmatpush1.bf16.msra.mxu0 0
        %4744 = vmatprep.subr.bf16.mxu0 0
        %4745 = vmatpush1.bf16.msra.mxu0 0
        %4746 = vmatprep.subr.bf16.mxu0 0
        %4747 = vmatpush1.bf16.msra.mxu0 0
        %4748 = vmatprep.subr.bf16.mxu0 0
        %4749 = vmatpush1.bf16.msra.mxu0 0
        %4750 = vmatprep.subr.bf16.mxu0 0
        %4751 = vmatpush1.bf16.msra.mxu0 0
        %4752 = vmatprep.subr.bf16.mxu0 0
        %4753 = vmatpush1.bf16.msra.mxu0 0
        %4754 = vmatprep.subr.bf16.mxu0 0
        %4755 = vmatpush1.bf16.msra.mxu0 0
        %4756 = vmatprep.subr.bf16.mxu0 0
        %4757 = vmatpush1.bf16.msra.mxu0 0
        %4758 = vmatprep.mubr.bf16.mxu0 0
        %4759 = vmatmul.mubr.bf16.gmra.mrb[0].mxu0 %v4706
        %v4760 = vpop.f32.mrb[0].mxu0
        %v4761 = vadd.f32 0.0, %v4760
        %v4762 = vpop.f32.mrb[0].mxu0
        %v4763 = vpop.f32.mrb[0].mxu0
        %v4764 = vadd.f32 0.0, %v4763
        %v4765 = vpop.f32.mrb[0].mxu0
        %4766 = vmatprep.mubr.bf16.mxu0 0
        %4767 = vmatmul.mubr.bf16.gmra.mrb[0].mxu0 %v4709
        %v4768 = vpop.f32.mrb[0].mxu0
        %v4769 = vadd.f32 0.0, %v4768
        %v4770 = vpop.f32.mrb[0].mxu0
        %v4771 = vpop.f32.mrb[0].mxu0
        %v4772 = vadd.f32 0.0, %v4771
        %v4773 = vpop.f32.mrb[0].mxu0
        %4774 = vmatprep.mubr.bf16.mxu0 0
        %4775 = vmatmul.mubr.bf16.gmra.mrb[0].mxu0 %v4712
        %v4776 = vpop.f32.mrb[0].mxu0
        %v4777 = vadd.f32 0.0, %v4776
        %v4778 = vpop.f32.mrb[0].mxu0
        %v4779 = vpop.f32.mrb[0].mxu0
        %v4780 = vadd.f32 0.0, %v4779
        %v4781 = vpop.f32.mrb[0].mxu0
        %4782 = vmatprep.mubr.bf16.mxu0 0
        %4783 = vmatmul.mubr.bf16.gmra.mrb[0].mxu0 %v4715
        %v4784 = vpop.f32.mrb[0].mxu0
        %v4785 = vadd.f32 0.0, %v4784
        %v4786 = vpop.f32.mrb[0].mxu0
        %v4787 = vpop.f32.mrb[0].mxu0
        %v4788 = vadd.f32 0.0, %v4787
        %v4789 = vpop.f32.mrb[0].mxu0
        %4790 = vmatprep.mubr.bf16.mxu0 0
        %4791 = vmatmul.mubr.bf16.gmra.mrb[0].mxu0 %v4718
        %v4792 = vpop.f32.mrb[0].mxu0
        %v4793 = vadd.f32 0.0, %v4792
        %v4794 = vpop.f32.mrb[0].mxu0
        %v4795 = vpop.f32.mrb[0].mxu0
        %v4796 = vadd.f32 0.0, %v4795
        %v4797 = vpop.f32.mrb[0].mxu0
        %4798 = vmatprep.mubr.bf16.mxu0 0
        %4799 = vmatmul.mubr.bf16.gmra.mrb[0].mxu0 %v4721
        %v4800 = vpop.f32.mrb[0].mxu0
        %v4801 = vadd.f32 0.0, %v4800
        %v4802 = vpop.f32.mrb[0].mxu0
        %v4803 = vpop.f32.mrb[0].mxu0
        %v4804 = vadd.f32 0.0, %v4803
        %v4805 = vpop.f32.mrb[0].mxu0
        %4806 = vmatprep.mubr.bf16.mxu0 0
        %4807 = vmatmul.mubr.bf16.gmra.mrb[0].mxu0 %v4724
        %v4808 = vpop.f32.mrb[0].mxu0
        %v4809 = vadd.f32 0.0, %v4808
        %v4810 = vpop.f32.mrb[0].mxu0
        %v4811 = vpop.f32.mrb[0].mxu0
        %v4812 = vadd.f32 0.0, %v4811
        %v4813 = vpop.f32.mrb[0].mxu0
        %4814 = vdwg.mxu0
        %v4815 = vadd.f32 %v4590, %v4761
        %v4816 = vadd.f32 %v4591, %v4764
        %v4817 = vadd.f32 %v4592, %v4769
        %v4818 = vadd.f32 %v4593, %v4772
        %v4819 = vadd.f32 %v4594, %v4777
        %v4820 = vadd.f32 %v4595, %v4780
        %v4821 = vadd.f32 %v4596, %v4785
        %v4822 = vadd.f32 %v4597, %v4788
        %v4823 = vadd.f32 %v4598, %v4793
        %v4824 = vadd.f32 %v4599, %v4796
        %v4825 = vadd.f32 %v4600, %v4801
        %v4826 = vadd.f32 %v4601, %v4804
        %v4827 = vadd.f32 %v4602, %v4809
        %v4828 = vadd.f32 %v4603, %v4812
        %v4829 = vld [vmem:[#allocation4 + $0x20] sm:$0xc]
        %v4830 = vld [vmem:[#allocation4 + $0x58] sm:$0x3]
        %s4831 = scalar_lea.vmem %s5, 256
        %v4832 = vld [vmem:[%s4831] sm:$0xf]
        %v4833 = vld [vmem:[%s4831 + $0x4] sm:$0xf]
        %v4834 = vld [vmem:[%s4831 + $0x8] sm:$0xf]
        %v4835 = vld [vmem:[%s4831 + $0xc] sm:$0xf]
        %v4836 = vld [vmem:[%s4831 + $0x10] sm:$0xf]
        %v4837 = vld [vmem:[%s4831 + $0x14] sm:$0xf]
        %v4838 = vld [vmem:[%s4831 + $0x18] sm:$0xf]
        %v4839 = vld [vmem:[%s4831 + $0x1c] sm:$0xf]
        %v4842 = vunpack.c.l.b16 %v4829
        %v4843 = vunpack.c.l.b16 %v4830
        %v4844 = vpack.c.b16 %v4644, %v4842
        %v4845 = vpack.c.b16 %v4843, %v4843
        %v4846 = vrot.slane %v4844, 2
        %v4847 = vrot.slane %v4659, 2
        %v4848 = vsel %vm3623, %v4846, %v4847
        %v4849 = vrot.slane %v4660, 2
        %v4850 = vsel %vm3623, %v4847, %v4849
        %v4851 = vrot.slane %v4661, 2
        %v4852 = vsel %vm3623, %v4849, %v4851
        %v4853 = vrot.slane %v4662, 2
        %v4854 = vsel %vm3623, %v4851, %v4853
        %v4855 = vrot.slane %v4663, 2
        %v4856 = vsel %vm3623, %v4853, %v4855
        %v4857 = vrot.slane %v4664, 2
        %v4858 = vsel %vm3623, %v4855, %v4857
        %v4859 = vrot.slane %v4845, 2
        %v4860 = vsel %vm3623, %v4857, %v4859
        %v4869 = vunpack.c.l.b16 %v4832
        %v4870 = vunpack.c.l.b16 %v4833
        %v4871 = vunpack.c.l.b16 %v4834
        %v4872 = vunpack.c.l.b16 %v4835
        %v4873 = vunpack.c.l.b16 %v4836
        %v4874 = vunpack.c.l.b16 %v4837
        %v4875 = vunpack.c.l.b16 %v4838
        %v4876 = vunpack.c.l.b16 %v4839
        %v4877 = vpack.c.b16 %v4870, %v4869
        %v4878 = vpack.c.b16 %v4872, %v4871
        %v4879 = vpack.c.b16 %v4874, %v4873
        %v4880 = vpack.c.b16 %v4876, %v4875
        %v4886 = vsel %vm2983, %v4848, 0
        %v4889 = vsel %vm2983, %v4850, 0
        %v4892 = vsel %vm2983, %v4852, 0
        %v4895 = vsel %vm2983, %v4854, 0
        %v4898 = vsel %vm2983, %v4856, 0
        %v4901 = vsel %vm2983, %v4858, 0
        %v4904 = vsel %vm2983, %v4860, 0
        %4906 = vmatprep.subr.bf16.mxu0 0
        %4907 = vmatpush1.bf16.msra.mxu0 %v4877
        %4908 = vmatprep.subr.bf16.mxu0 0
        %4909 = vmatpush1.bf16.msra.mxu0 %v4878
        %4910 = vmatprep.subr.bf16.mxu0 0
        %4911 = vmatpush1.bf16.msra.mxu0 %v4879
        %4912 = vmatprep.subr.bf16.mxu0 0
        %4913 = vmatpush1.bf16.msra.mxu0 %v4880
        %4914 = vmatprep.subr.bf16.mxu0 0
        %4915 = vmatpush1.bf16.msra.mxu0 0
        %4916 = vmatprep.subr.bf16.mxu0 0
        %4917 = vmatpush1.bf16.msra.mxu0 0
        %4918 = vmatprep.subr.bf16.mxu0 0
        %4919 = vmatpush1.bf16.msra.mxu0 0
        %4920 = vmatprep.subr.bf16.mxu0 0
        %4921 = vmatpush1.bf16.msra.mxu0 0
        %4922 = vmatprep.subr.bf16.mxu0 0
        %4923 = vmatpush1.bf16.msra.mxu0 0
        %4924 = vmatprep.subr.bf16.mxu0 0
        %4925 = vmatpush1.bf16.msra.mxu0 0
        %4926 = vmatprep.subr.bf16.mxu0 0
        %4927 = vmatpush1.bf16.msra.mxu0 0
        %4928 = vmatprep.subr.bf16.mxu0 0
        %4929 = vmatpush1.bf16.msra.mxu0 0
        %4930 = vmatprep.subr.bf16.mxu0 0
        %4931 = vmatpush1.bf16.msra.mxu0 0
        %4932 = vmatprep.subr.bf16.mxu0 0
        %4933 = vmatpush1.bf16.msra.mxu0 0
        %4934 = vmatprep.subr.bf16.mxu0 0
        %4935 = vmatpush1.bf16.msra.mxu0 0
        %4936 = vmatprep.subr.bf16.mxu0 0
        %4937 = vmatpush1.bf16.msra.mxu0 0
        %4938 = vmatprep.mubr.bf16.mxu0 0
        %4939 = vmatmul.mubr.bf16.gmra.mrb[0].mxu0 %v4886
        %v4940 = vpop.f32.mrb[0].mxu0
        %v4941 = vadd.f32 0.0, %v4940
        %v4942 = vpop.f32.mrb[0].mxu0
        %v4943 = vpop.f32.mrb[0].mxu0
        %v4944 = vadd.f32 0.0, %v4943
        %v4945 = vpop.f32.mrb[0].mxu0
        %4946 = vmatprep.mubr.bf16.mxu0 0
        %4947 = vmatmul.mubr.bf16.gmra.mrb[0].mxu0 %v4889
        %v4948 = vpop.f32.mrb[0].mxu0
        %v4949 = vadd.f32 0.0, %v4948
        %v4950 = vpop.f32.mrb[0].mxu0
        %v4951 = vpop.f32.mrb[0].mxu0
        %v4952 = vadd.f32 0.0, %v4951
        %v4953 = vpop.f32.mrb[0].mxu0
        %4954 = vmatprep.mubr.bf16.mxu0 0
        %4955 = vmatmul.mubr.bf16.gmra.mrb[0].mxu0 %v4892
        %v4956 = vpop.f32.mrb[0].mxu0
        %v4957 = vadd.f32 0.0, %v4956
        %v4958 = vpop.f32.mrb[0].mxu0
        %v4959 = vpop.f32.mrb[0].mxu0
        %v4960 = vadd.f32 0.0, %v4959
        %v4961 = vpop.f32.mrb[0].mxu0
        %4962 = vmatprep.mubr.bf16.mxu0 0
        %4963 = vmatmul.mubr.bf16.gmra.mrb[0].mxu0 %v4895
        %v4964 = vpop.f32.mrb[0].mxu0
        %v4965 = vadd.f32 0.0, %v4964
        %v4966 = vpop.f32.mrb[0].mxu0
        %v4967 = vpop.f32.mrb[0].mxu0
        %v4968 = vadd.f32 0.0, %v4967
        %v4969 = vpop.f32.mrb[0].mxu0
        %4970 = vmatprep.mubr.bf16.mxu0 0
        %4971 = vmatmul.mubr.bf16.gmra.mrb[0].mxu0 %v4898
        %v4972 = vpop.f32.mrb[0].mxu0
        %v4973 = vadd.f32 0.0, %v4972
        %v4974 = vpop.f32.mrb[0].mxu0
        %v4975 = vpop.f32.mrb[0].mxu0
        %v4976 = vadd.f32 0.0, %v4975
        %v4977 = vpop.f32.mrb[0].mxu0
        %4978 = vmatprep.mubr.bf16.mxu0 0
        %4979 = vmatmul.mubr.bf16.gmra.mrb[0].mxu0 %v4901
        %v4980 = vpop.f32.mrb[0].mxu0
        %v4981 = vadd.f32 0.0, %v4980
        %v4982 = vpop.f32.mrb[0].mxu0
        %v4983 = vpop.f32.mrb[0].mxu0
        %v4984 = vadd.f32 0.0, %v4983
        %v4985 = vpop.f32.mrb[0].mxu0
        %4986 = vmatprep.mubr.bf16.mxu0 0
        %4987 = vmatmul.mubr.bf16.gmra.mrb[0].mxu0 %v4904
        %v4988 = vpop.f32.mrb[0].mxu0
        %v4989 = vadd.f32 0.0, %v4988
        %v4990 = vpop.f32.mrb[0].mxu0
        %v4991 = vpop.f32.mrb[0].mxu0
        %v4992 = vadd.f32 0.0, %v4991
        %v4993 = vpop.f32.mrb[0].mxu0
        %4994 = vdwg.mxu0
        %v4995 = vadd.f32 %v4815, %v4941
        %v4996 = vadd.f32 %v4816, %v4944
        %v4997 = vadd.f32 %v4817, %v4949
        %v4998 = vadd.f32 %v4818, %v4952
        %v4999 = vadd.f32 %v4819, %v4957
        %v5000 = vadd.f32 %v4820, %v4960
        %v5001 = vadd.f32 %v4821, %v4965
        %v5002 = vadd.f32 %v4822, %v4968
        %v5003 = vadd.f32 %v4823, %v4973
        %v5004 = vadd.f32 %v4824, %v4976
        %v5005 = vadd.f32 %v4825, %v4981
        %v5006 = vadd.f32 %v4826, %v4984
        %v5007 = vadd.f32 %v4827, %v4989
        %v5008 = vadd.f32 %v4828, %v4992
        %v5009 = vld [vmem:[%s6] sm:$0x1]
        %v5011 = vlaneseq
        %v5012 = vshrl.u32 %v5011, 7
        %v5013 = vsub.s32 0, %v5012
        %v5014 = vrot.slane %v5009, %v5013
        %v5016 = vadd.f32 %v4995, %v5014
        %v5017 = vadd.f32 %v4996, %v5014
        %v5018 = vadd.f32 %v4997, %v5014
        %v5019 = vadd.f32 %v4998, %v5014
        %v5020 = vadd.f32 %v4999, %v5014
        %v5021 = vadd.f32 %v5000, %v5014
        %v5022 = vadd.f32 %v5001, %v5014
        %v5023 = vadd.f32 %v5002, %v5014
        %v5024 = vadd.f32 %v5003, %v5014
        %v5025 = vadd.f32 %v5004, %v5014
        %v5026 = vadd.f32 %v5005, %v5014
        %v5027 = vadd.f32 %v5006, %v5014
        %v5028 = vadd.f32 %v5007, %v5014
        %v5029 = vadd.f32 %v5008, %v5014
        %5030 = vst [vmem:[#allocation5] sm:$0xff] %v5016
        %5031 = vst [vmem:[#allocation5 + $0x8] sm:$0xff] %v5017
        %5032 = vst [vmem:[#allocation5 + $0x10] sm:$0xff] %v5018
        %5033 = vst [vmem:[#allocation5 + $0x18] sm:$0xff] %v5019
        %5034 = vst [vmem:[#allocation5 + $0x20] sm:$0xff] %v5020
        %5035 = vst [vmem:[#allocation5 + $0x28] sm:$0xff] %v5021
        %5036 = vst [vmem:[#allocation5 + $0x30] sm:$0xff] %v5022
        %5037 = vst [vmem:[#allocation5 + $0x38] sm:$0xff] %v5023
        %5038 = vst [vmem:[#allocation5 + $0x40] sm:$0xff] %v5024
        %5039 = vst [vmem:[#allocation5 + $0x48] sm:$0xff] %v5025
        %5040 = vst [vmem:[#allocation5 + $0x50] sm:$0xff] %v5026
        %5041 = vst [vmem:[#allocation5 + $0x58] sm:$0xff] %v5027
        %5042 = vst [vmem:[#allocation5 + $0x60] sm:$0xff] %v5028
        %5043 = vst [vmem:[#allocation5 + $0x68] sm:$0xff] %v5029
        %v5044 = vld [vmem:[#allocation5] sm:$0xff]
        %v5045 = vld [vmem:[#allocation5 + $0x8] sm:$0xff]
        %v5046 = vld [vmem:[#allocation5 + $0x10] sm:$0xff]
        %v5047 = vld [vmem:[#allocation5 + $0x18] sm:$0xff]
        %v5048 = vld [vmem:[#allocation5 + $0x20] sm:$0xff]
        %v5049 = vld [vmem:[#allocation5 + $0x28] sm:$0xff]
        %v5050 = vld [vmem:[#allocation5 + $0x30] sm:$0xff]
        %v5051 = vld [vmem:[#allocation5 + $0x38] sm:$0xff]
        %v5052 = vld [vmem:[#allocation5 + $0x40] sm:$0xff]
        %v5053 = vld [vmem:[#allocation5 + $0x2] sm:$0xff]
        %v5054 = vld [vmem:[#allocation5 + $0xa] sm:$0xff]
        %v5055 = vld [vmem:[#allocation5 + $0x12] sm:$0xff]
        %v5056 = vld [vmem:[#allocation5 + $0x1a] sm:$0xff]
        %v5057 = vld [vmem:[#allocation5 + $0x22] sm:$0xff]
        %v5058 = vld [vmem:[#allocation5 + $0x2a] sm:$0xff]
        %v5059 = vld [vmem:[#allocation5 + $0x32] sm:$0xff]
        %v5060 = vld [vmem:[#allocation5 + $0x3a] sm:$0xff]
        %v5061 = vld [vmem:[#allocation5 + $0x42] sm:$0xff]
        %v5062 = vmax.f32 %v5044, %v5053
        %v5063 = vmax.f32 %v5045, %v5054
        %v5064 = vmax.f32 %v5046, %v5055
        %v5065 = vmax.f32 %v5047, %v5056
        %v5066 = vmax.f32 %v5048, %v5057
        %v5067 = vmax.f32 %v5049, %v5058
        %v5068 = vmax.f32 %v5050, %v5059
        %v5069 = vmax.f32 %v5051, %v5060
        %v5070 = vmax.f32 %v5052, %v5061
        %v5071 = vld [vmem:[#allocation5 + $0x48] sm:$0xff]
        %v5072 = vld [vmem:[#allocation5 + $0x50] sm:$0xff]
        %v5073 = vld [vmem:[#allocation5 + $0x58] sm:$0xff]
        %v5074 = vld [vmem:[#allocation5 + $0x60] sm:$0xff]
        %v5075 = vld [vmem:[#allocation5 + $0x4a] sm:$0xff]
        %v5076 = vld [vmem:[#allocation5 + $0x52] sm:$0xff]
        %v5077 = vld [vmem:[#allocation5 + $0x5a] sm:$0xff]
        %v5078 = vld [vmem:[#allocation5 + $0x62] sm:$0xff]
        %v5079 = vmax.f32 %v5071, %v5075
        %v5080 = vmax.f32 %v5072, %v5076
        %v5081 = vmax.f32 %v5073, %v5077
        %v5082 = vmax.f32 %v5074, %v5078
        %v5083 = vmax.f32 %v5062, %v5066
        %v5084 = vmax.f32 %v5063, %v5067
        %v5085 = vmax.f32 %v5064, %v5068
        %v5086 = vmax.f32 %v5065, %v5069
        %v5087 = vmax.f32 %v5066, %v5070
        %v5088 = vmax.f32 %v5067, %v5079
        %v5089 = vmax.f32 %v5068, %v5080
        %v5090 = vmax.f32 %v5069, %v5081
        %v5091 = vmax.f32 %v5070, %v5082
        %v5092 = vmax.f32 %v5083, 0.0
        %v5093 = vmax.f32 %v5084, 0.0
        %v5094 = vmax.f32 %v5085, 0.0
        %v5095 = vmax.f32 %v5086, 0.0
        %v5096 = vmax.f32 %v5087, 0.0
        %v5097 = vmax.f32 %v5088, 0.0
        %v5098 = vmax.f32 %v5089, 0.0
        %v5099 = vmax.f32 %v5090, 0.0
        %v5100 = vmax.f32 %v5091, 0.0
        %5101 = vst [vmem:[#allocation6] sm:$0xff] %v5092
        %5102 = vst [vmem:[#allocation6 + $0x8] sm:$0xff] %v5093
        %5103 = vst [vmem:[#allocation6 + $0x10] sm:$0xff] %v5094
        %5104 = vst [vmem:[#allocation6 + $0x18] sm:$0xff] %v5095
        %5105 = vst [vmem:[#allocation6 + $0x20] sm:$0xff] %v5096
        %5106 = vst [vmem:[#allocation6 + $0x28] sm:$0xff] %v5097
        %5107 = vst [vmem:[#allocation6 + $0x30] sm:$0xff] %v5098
        %5108 = vst [vmem:[#allocation6 + $0x38] sm:$0xff] %v5099
        %5109 = vst [vmem:[#allocation6 + $0x40] sm:$0xff] %v5100
        %v5110 = vld [vmem:[#allocation6] ss:$4 sm:$0x3]
        %5111 = vst [vmem:[%s271] sm:$0x3] %v5110
        %s5112 = scalar_lea.vmem [#allocation6], 64
        %v5113 = vld [vmem:[%s5112] ss:$4 sm:$0x3]
        %5114 = vst [vmem:[%s271 + $0x2] sm:$0x3] %v5113
        %s5115 = sand.u32 %s181, 1
        %s5116 = scalar_lea.sflag [#allocation8], %s5115
        %s5117 = sand.u32 %s181, 1
        %s5118 = smul.addr %s5117, 4
        %s5119 = scalar_lea.vmem [#allocation7], %s5118
        // Predicated region
        $region49: #{cnn_network_forward.1} parent=47 // pred_check
          %p5120 = pneg %p191
        $region50: #{cnn_network_forward.1} parent=47 // pred_check_branch
          %5122 = sbr.rel (%p5120) target = $region52
        $region51: #{cnn_network_forward.1} parent=47 // pred_region
          %s5124 = ssub.s32 64, 64
          %5125 = vsyncadd %s5116, %s5124
          %s5126 = smul.addr %s21, 64
          %s5127 = scalar_lea.hbm %s7, %s5126
          %s5129 = sshll.u32 %s5119, 4
          %s5130 = int_to_ptr.vmem [resolvable:$true] %s5129
          %5132 = dma.vmem_to_hbm [thread:$0]  %s5130, 64, %s5127, %s5116
        $region52: #{cnn_network_forward.1} parent=47 // pred_fallthru
          _
      $region48: #{cnn_network_forward.1} parent=5 // pred_fallthru
        _
      %p5133 = scmp.le.s32.totalorder 2, %s16
      // Predicated region
      $region53: #{cnn_network_forward.1} parent=5 // pred_check
        %p5134 = pneg %p5133
      $region54: #{cnn_network_forward.1} parent=5 // pred_check_branch
        %5136 = sbr.rel (%p5134) target = $region56
      $region55: #{cnn_network_forward.1} parent=5 // pred_region
        %s5137 = ssub.s32 %s16, 2
        // Predicated region
        $region57: #{cnn_network_forward.1} parent=55 // pred_check
          %p5138 = pneg %p197
        $region58: #{cnn_network_forward.1} parent=55 // pred_check_branch
          %5140 = sbr.rel (%p5138) target = $region60
        $region59: #{cnn_network_forward.1} parent=55 // pred_region
          %s5141 = sand.u32 %s182, 1
          %s5142 = scalar_lea.sflag [#allocation8], %s5141
          %s5143 = sand.u32 %s182, 1
          %s5144 = smul.addr %s5143, 4
          %s5145 = scalar_lea.vmem [#allocation7], %s5144
          %5146 = dma.done %s5142, 64
        $region60: #{cnn_network_forward.1} parent=55 // pred_fallthru
          _
      $region56: #{cnn_network_forward.1} parent=5 // pred_fallthru
        _
    $region6: #{cnn_network_forward.1} parent=1 // loop_footer
      %s20 = sadd.s32 1, %s16
    $region7: #{cnn_network_forward.1} parent=1 // loop_footer_branch
      %15 = sbr.rel target = $region3
    $region8: #{cnn_network_forward.1} parent=1 // loop_exit
      _
    %5147 = vsyncpa [#allocation8], 1
    %s5148 = scalar_lea.sflag [#allocation8], 1
    %5149 = vsyncpa %s5148, 1

</llo_original>
